<compile_context>
chip_gen: v5e
topology: v5e:2x2
jax: 0.10.0
libtpu: 0.0.40
codegen_flags: <defaults>
</compile_context>

<pallas_src>
import functools

import jax
import jax.numpy as jnp
import numpy as np
from jax import lax
from jax.experimental import pallas as pl
from jax.experimental.pallas import tpu as pltpu

EPS = 1e-5                       # nn.BatchNorm2d default eps
LANE = 128                       # channel dims are zero-padded to a multiple of this
VMEM_LIMIT = 48 * 1024 * 1024    # fits v5e/v6e (128 MiB) and v7x (64 MiB) VMEM


def _round_up(n, m):
    return (n + m - 1) // m * m


def _pact(y, alpha):
    # PACT / MyReLU.forward: relu(0.5 * (|x| - |x - alpha| + alpha))
    return jnp.maximum(0.5 * (jnp.abs(y) - jnp.abs(y - alpha) + alpha), 0.0)


# ---------------------------------------------------------------------------
# Parameter preparation (plain-JAX glue, done once): fold eval-mode BatchNorm
# into the conv weights, cast weights to bf16 (MXU native); biases stay f32.
# ---------------------------------------------------------------------------
def _fold_bn(bn):
    gamma, beta, mean, var = (jnp.asarray(t, jnp.float32) for t in bn)
    scale = gamma / jnp.sqrt(var + EPS)
    return scale, beta - mean * scale


def _prepare_folded(params, need_proj):
    fold = {"alpha": jnp.asarray(params["alpha"], jnp.float32)}
    for tag, wkey, bnkey in (("1", "w1", "bn1"), ("2", "w2", "bn2"), ("3", "w3", "bn3")):
        s, b = _fold_bn(params[bnkey])
        w = jnp.asarray(params[wkey], jnp.float32)
        fold["w" + tag + "f"] = (w * s[:, None, None, None]).astype(jnp.bfloat16)
        fold["b" + tag] = b
    if need_proj:
        s, b = _fold_bn(params["bns"])
        fold["wsf"] = (jnp.asarray(params["ws"], jnp.float32)
                       * s[:, None, None, None]).astype(jnp.bfloat16)
        fold["bs"] = b
    return fold


def _to_matmul_1x1(w):                 # [O, I, 1, 1] -> [I, O]
    return jnp.transpose(w[:, :, 0, 0], (1, 0))


def _to_taps_3x3(w):                   # [O, I, 3, 3] -> [9, I, O]; tap k = dy*3 + dx
    o, i = w.shape[0], w.shape[1]
    return jnp.transpose(w, (2, 3, 1, 0)).reshape(9, i, o)


def _pad_last2(a, rows, cols):
    pad = [(0, 0)] * (a.ndim - 2) + [(0, rows - a.shape[-2]), (0, cols - a.shape[-1])]
    return jnp.pad(a, pad)


def _pad_bias(b, cols):
    b = jnp.asarray(b, jnp.float32)
    return jnp.pad(b, (0, cols - b.shape[0])).reshape(1, cols)


# ---------------------------------------------------------------------------
# Fully-fused Bottleneck kernel (stride == 1).
#
# Layout: the zero-padded (H+2, W+2) image is kept flattened as rows of a
# (Lp, C) 2-D array (channels on the 128-lane axis).  For the 3x3 conv, tap
# (dy, dx) of output position q = y*(W+2) + x is simply row q + dy*(W+2) + dx
# of the flattened conv1 output, so conv2 becomes 9 shifted matmuls.  Columns
# x >= W of the pseudo-output are garbage and are discarded in the glue.
# ---------------------------------------------------------------------------
def _bottleneck_fused_kernel(x_ref, m_ref, w1_ref, b1_ref, w2_ref, b2_ref,
                             w3_ref, b3_ref, *rest, W, Lq, has_proj):
    if has_proj:
        ws_ref, bs_ref, alpha_ref, o_ref, o1_scr = rest
    else:
        alpha_ref, o_ref, o1_scr = rest

    Wp = W + 2
    alpha = alpha_ref[0]

    x = x_ref[0]                                      # (Lp, Cpi) bf16
    xf = x.astype(jnp.float32)

    # ---- conv1 (1x1) + bn1 + PACT at every padded position; mask restores ---
    # ---- exact zero spatial padding for the 3x3 conv that follows. ----------
    y1 = jnp.dot(x, w1_ref[...], preferred_element_type=jnp.float32) + b1_ref[...]
    y1 = _pact(y1, alpha) * m_ref[...]
    o1_scr[...] = y1                                  # f32 scratch, bf16 at use

    # ---- conv2 (3x3, pad 1, stride 1) + bn2 + PACT: 9 shifted MXU matmuls ----
    acc = jnp.zeros((Lq, w2_ref.shape[-1]), jnp.float32)
    for dy in range(3):
        for dx in range(3):
            off = dy * Wp + dx
            win = o1_scr[off:off + Lq, :].astype(jnp.bfloat16)
            acc = acc + jnp.dot(win, w2_ref[dy * 3 + dx],
                                preferred_element_type=jnp.float32)
    y2 = _pact(acc + b2_ref[...], alpha).astype(jnp.bfloat16)

    # ---- conv3 (1x1) + bn3 ---------------------------------------------------
    y3 = jnp.dot(y2, w3_ref[...], preferred_element_type=jnp.float32) + b3_ref[...]

    # ---- shortcut (identity rows of x, or 1x1 projection) + add + PACT ------
    r0 = Wp + 1                                       # row of original pixel (y, x)
    res_rows = xf[r0:r0 + Lq, :]
    if has_proj:
        res = jnp.dot(res_rows.astype(jnp.bfloat16), ws_ref[...],
                      preferred_element_type=jnp.float32) + bs_ref[...]
    else:
        res = res_rows
    o_ref[0] = _pact(y3 + res, alpha).astype(o_ref.dtype)


def _bottleneck_fused_stride1(x, fold, planes):
    N, H, W, Cin = x.shape
    Cout = 4 * planes
    has_proj = "wsf" in fold
    if not has_proj:
        assert Cin == Cout, "identity shortcut requires Cin == 4 * planes"

    Cpi = _round_up(Cin, LANE)
    Cpm = _round_up(planes, LANE)
    Cpo = _round_up(Cout, LANE)
    Wp = W + 2
    Lq = H * Wp                                   # pseudo-output rows per image
    Lp = _round_up((H + 2) * Wp + 2, 8)           # padded flattened input rows

    # flattened, zero-padded (spatial ring + channels) input, bf16
    xp = jnp.pad(x, ((0, 0), (1, 1), (1, 1), (0, Cpi - Cin)))
    x_flat = jnp.pad(xp.reshape(N, (H + 2) * Wp, Cpi),
                     ((0, 0), (0, Lp - (H + 2) * Wp), (0, 0))).astype(jnp.bfloat16)

    # interior mask (1 inside the original HxW image, 0 on the padding ring)
    pidx = np.arange(Lp)
    rr, cc = pidx // Wp, pidx % Wp
    mask = jnp.asarray(((rr >= 1) & (rr <= H) & (cc >= 1) & (cc <= W))
                       .astype(np.float32).reshape(Lp, 1))

    w1 = _pad_last2(_to_matmul_1x1(fold["w1f"]), Cpi, Cpm)
    w2 = _pad_last2(_to_taps_3x3(fold["w2f"]), Cpm, Cpm)
    w3 = _pad_last2(_to_matmul_1x1(fold["w3f"]), Cpm, Cpo)
    b1 = _pad_bias(fold["b1"], Cpm)
    b2 = _pad_bias(fold["b2"], Cpm)
    b3 = _pad_bias(fold["b3"], Cpo)
    alpha = jnp.asarray(fold["alpha"], jnp.float32).reshape(1)

    inputs = [x_flat, mask, w1, b1, w2, b2, w3, b3]
    in_specs = [
        pl.BlockSpec((1, Lp, Cpi), lambda n: (n, 0, 0)),
        pl.BlockSpec((Lp, 1), lambda n: (0, 0)),
        pl.BlockSpec((Cpi, Cpm), lambda n: (0, 0)),
        pl.BlockSpec((1, Cpm), lambda n: (0, 0)),
        pl.BlockSpec((9, Cpm, Cpm), lambda n: (0, 0, 0)),
        pl.BlockSpec((1, Cpm), lambda n: (0, 0)),
        pl.BlockSpec((Cpm, Cpo), lambda n: (0, 0)),
        pl.BlockSpec((1, Cpo), lambda n: (0, 0)),
    ]
    if has_proj:
        inputs += [_pad_last2(_to_matmul_1x1(fold["wsf"]), Cpi, Cpo),
                   _pad_bias(fold["bs"], Cpo)]
        in_specs += [pl.BlockSpec((Cpi, Cpo), lambda n: (0, 0)),
                     pl.BlockSpec((1, Cpo), lambda n: (0, 0))]
    inputs.append(alpha)
    in_specs.append(pl.BlockSpec(memory_space=pltpu.MemorySpace.SMEM))

    out = pl.pallas_call(
        functools.partial(_bottleneck_fused_kernel, W=W, Lq=Lq, has_proj=has_proj),
        grid=(N,),
        in_specs=in_specs,
        out_specs=pl.BlockSpec((1, Lq, Cpo), lambda n: (n, 0, 0)),
        out_shape=jax.ShapeDtypeStruct((N, Lq, Cpo), jnp.float32),
        scratch_shapes=[pltpu.VMEM((Lp, Cpm), jnp.float32)],
        compiler_params=pltpu.CompilerParams(
            dimension_semantics=("parallel",),
            vmem_limit_bytes=VMEM_LIMIT),
    )(*inputs)

    # drop the pseudo-columns (x >= W) and the zero-padded channels
    return out.reshape(N, H, Wp, Cpo)[:, :, :W, :Cout]


# ---------------------------------------------------------------------------
# General fallback path (stride != 1 or very large spatial extents):
# robustly M-tiled matmul + bias (+ residual) + PACT kernel.
# ---------------------------------------------------------------------------
def _matmul_kernel(x_ref, w_ref, b_ref, *rest, apply_act, has_res):
    if has_res:
        r_ref, a_ref, o_ref = rest
    else:
        a_ref, o_ref = rest
    y = jnp.dot(x_ref[...], w_ref[...], preferred_element_type=jnp.float32)
    y = y + b_ref[...]
    if has_res:
        y = y + r_ref[...].astype(jnp.float32)
    if apply_act:
        y = _pact(y, a_ref[0])
    o_ref[...] = y.astype(o_ref.dtype)


def _fused_matmul(x2d, w2d, bias, alpha, *, apply_act, residual=None,
                  out_dtype=jnp.float32, tile_m=512):
    M, K = x2d.shape
    Nc = w2d.shape[1]
    tile_m = min(tile_m, _round_up(M, 8))
    Mp = _round_up(M, tile_m)

    xb = jnp.pad(x2d.astype(jnp.bfloat16), ((0, Mp - M), (0, 0)))
    b2 = jnp.asarray(bias, jnp.float32).reshape(1, Nc)
    a1 = jnp.asarray(alpha, jnp.float32).reshape(1)

    inputs = [xb, w2d.astype(jnp.bfloat16), b2]
    in_specs = [pl.BlockSpec((tile_m, K), lambda i: (i, 0)),
                pl.BlockSpec((K, Nc), lambda i: (0, 0)),
                pl.BlockSpec((1, Nc), lambda i: (0, 0))]
    if residual is not None:
        inputs.append(jnp.pad(residual.astype(jnp.float32), ((0, Mp - M), (0, 0))))
        in_specs.append(pl.BlockSpec((tile_m, Nc), lambda i: (i, 0)))
    inputs.append(a1)
    in_specs.append(pl.BlockSpec(memory_space=pltpu.MemorySpace.SMEM))

    out = pl.pallas_call(
        functools.partial(_matmul_kernel, apply_act=apply_act,
                          has_res=residual is not None),
        grid=(Mp // tile_m,),
        in_specs=in_specs,
        out_specs=pl.BlockSpec((tile_m, Nc), lambda i: (i, 0)),
        out_shape=jax.ShapeDtypeStruct((Mp, Nc), out_dtype),
        compiler_params=pltpu.CompilerParams(
            dimension_semantics=("parallel",),
            vmem_limit_bytes=VMEM_LIMIT),
    )(*inputs)
    return out[:M]


def _im2col_3x3(x_nhwc, stride):
    """3x3, padding=1 im2col. Returns ([N*Ho*Wo, 9*C], Ho, Wo)."""
    N, H, W, C = x_nhwc.shape
    xp = jnp.pad(x_nhwc, ((0, 0), (1, 1), (1, 1), (0, 0)))
    Ho = (H + 2 - 3) // stride + 1
    Wo = (W + 2 - 3) // stride + 1
    cols = []
    for dy in range(3):
        for dx in range(3):
            cols.append(
                xp[:, dy:dy + stride * (Ho - 1) + 1:stride,
                      dx:dx + stride * (Wo - 1) + 1:stride, :])
    patches = jnp.concatenate(cols, axis=-1)          # tap-major, channel-minor
    return patches.reshape(N * Ho * Wo, 9 * C), Ho, Wo


def _bottleneck_general(x, fold, planes, stride):
    # TODO(synk): this general-stride path still materializes im2col patches in
    # HBM (not halo-fused); it is only used for configs the original torch
    # module cannot even instantiate (stride != 1) or for oversized images.
    N, H, W, Cin = x.shape
    Cout = 4 * planes
    alpha = fold["alpha"]

    o1 = _fused_matmul(x.reshape(N * H * W, Cin), _to_matmul_1x1(fold["w1f"]),
                       fold["b1"], alpha, apply_act=True, out_dtype=jnp.bfloat16)
    o1 = o1.reshape(N, H, W, planes)

    patches, Ho, Wo = _im2col_3x3(o1, stride)
    w2 = jnp.transpose(fold["w2f"], (2, 3, 1, 0)).reshape(9 * planes, planes)
    o2 = _fused_matmul(patches, w2, fold["b2"], alpha, apply_act=True,
                       out_dtype=jnp.bfloat16)

    xs = x[:, ::stride, ::stride, :].reshape(N * Ho * Wo, Cin)
    if "wsf" in fold:
        res = _fused_matmul(xs, _to_matmul_1x1(fold["wsf"]), fold["bs"], alpha,
                            apply_act=False)
    else:
        res = xs.astype(jnp.float32)

    o3 = _fused_matmul(o2, _to_matmul_1x1(fold["w3f"]), fold["b3"], alpha,
                       apply_act=True, residual=res)
    return o3.reshape(N, Ho, Wo, Cout)


# ---------------------------------------------------------------------------
# Top-level forward
# ---------------------------------------------------------------------------
@functools.partial(jax.jit, static_argnames=("stride",))
def bottleneck_forward(x_nhwc, params, stride=1):
    N, H, W, Cin = x_nhwc.shape
    planes = params["w1"].shape[0]
    need_proj = (stride != 1) or (Cin != 4 * planes)
    fold = _prepare_folded(params, need_proj)

    if stride == 1:
        Cpi = _round_up(Cin, LANE)
        Cpm = _round_up(planes, LANE)
        Cpo = _round_up(4 * planes, LANE)
        Wp = W + 2
        Lq = H * Wp
        Lp = _round_up((H + 2) * Wp + 2, 8)
        vmem_est = (2 * Lp * Cpi * 2                  # x (bf16, double-buffered)
                    + Lp * Cpm * 4                    # conv1 scratch (f32)
                    + 4 * (Cpi * Cpm + 9 * Cpm * Cpm + Cpm * Cpo)  # bf16 weights (db)
                    + 2 * Lq * Cpo * 4                # output (f32, double-buffered)
                    + Lq * (Cpm + Cpo) * 8)           # live temporaries
        if vmem_est <= 24 * 1024 * 1024:
            return _bottleneck_fused_stride1(x_nhwc, fold, planes)
    return _bottleneck_general(x_nhwc, fold, planes, stride)


# ---------------------------------------------------------------------------
# References
# ---------------------------------------------------------------------------
def ref_forward_f32(x_nhwc, params, stride=1):
    """Pure f32 reference matching the torch module (eval-mode BN)."""
    def conv(h, w, s, pad):
        return lax.conv_general_dilated(
            h, jnp.transpose(jnp.asarray(w, jnp.float32), (2, 3, 1, 0)),
            window_strides=(s, s), padding=[(pad, pad), (pad, pad)],
            dimension_numbers=("NHWC", "HWIO", "NHWC"),
            precision=lax.Precision.HIGHEST)

    def bn(y, p):
        g, b, m, v = p
        return (y - m) / jnp.sqrt(v + EPS) * g + b

    a = params["alpha"]
    o = _pact(bn(conv(x_nhwc, params["w1"], 1, 0), params["bn1"]), a)
    o = _pact(bn(conv(o, params["w2"], stride, 1), params["bn2"]), a)
    o = bn(conv(o, params["w3"], 1, 0), params["bn3"])
    Cin = x_nhwc.shape[-1]
    planes = params["w1"].shape[0]
    if stride != 1 or Cin != 4 * planes:
        sc = bn(conv(x_nhwc, params["ws"], stride, 0), params["bns"])
    else:
        sc = x_nhwc
    return _pact(o + sc, a)


def ref_forward_policy(x_nhwc, fold, stride=1):
    """Reference applying the kernel's precision policy (bf16 operands /
    intermediates, f32 accumulation, BN folded into the weights)."""
    f32, bf16 = jnp.float32, jnp.bfloat16

    def conv(h, w, s, pad):
        return lax.conv_general_dilated(
            h, jnp.transpose(w.astype(f32), (2, 3, 1, 0)),
            window_strides=(s, s), padding=[(pad, pad), (pad, pad)],
            dimension_numbers=("NHWC", "HWIO", "NHWC"))

    a = fold["alpha"]
    xb = x_nhwc.astype(bf16).astype(f32)
    o = _pact(conv(xb, fold["w1f"], 1, 0) + fold["b1"], a)
    o = _pact(conv(o.astype(bf16).astype(f32), fold["w2f"], stride, 1) + fold["b2"], a)
    o = conv(o.astype(bf16).astype(f32), fold["w3f"], 1, 0) + fold["b3"]
    if "wsf" in fold:
        sc = conv(xb, fold["wsf"], stride, 0) + fold["bs"]
    else:
        sc = xb
    return _pact(o + sc, a)


# ---------------------------------------------------------------------------
if __name__ == "__main__":
    key = jax.random.PRNGKey(0)
    N, H, W = 2, 16, 16
    planes = 4
    in_planes = 4 * planes   # identity shortcut: the only config the original torch
                             # module can instantiate (its projection branch refers
                             # to an undefined `Conv2`)
    stride = 1

    keys = jax.random.split(key, 8)
    x = jax.random.normal(keys[0], (N, H, W, in_planes), jnp.float32)

    def bn_params(k, c):
        k1, k2, k3, k4 = jax.random.split(k, 4)
        gamma = jax.random.uniform(k1, (c,), jnp.float32, 0.75, 1.25)
        beta = 0.1 * jax.random.normal(k2, (c,), jnp.float32)
        mean = 0.1 * jax.random.normal(k3, (c,), jnp.float32)
        var = jax.random.uniform(k4, (c,), jnp.float32, 0.75, 1.25)
        return (gamma, beta, mean, var)

    params = {
        "w1": 0.15 * jax.random.normal(keys[1], (planes, in_planes, 1, 1), jnp.float32),
        "w2": 0.15 * jax.random.normal(keys[2], (planes, planes, 3, 3), jnp.float32),
        "w3": 0.15 * jax.random.normal(keys[3], (4 * planes, planes, 1, 1), jnp.float32),
        "bn1": bn_params(keys[4], planes),
        "bn2": bn_params(keys[5], planes),
        "bn3": bn_params(keys[6], 4 * planes),
        "alpha": 10.0,   # PACT alpha init: torch.tensor(10.)
    }

    out = jax.block_until_ready(bottleneck_forward(x, params, stride=stride))

    # Tight check against a reference using the same precision policy
    # (bf16 operands / intermediates, BN folded, f32 accumulation): only
    # accumulation-order differences should remain.
    fold = _prepare_folded(params, need_proj=False)
    ref_bf16 = ref_forward_policy(x, fold, stride=stride)
    np.testing.assert_allclose(np.asarray(out), np.asarray(ref_bf16),
                               atol=2e-3, rtol=2e-3)

    # Loose check against the pure-f32 module semantics (bf16 rounding noise only).
    ref_f32 = ref_forward_f32(x, params, stride=stride)
    np.testing.assert_allclose(np.asarray(out), np.asarray(ref_f32),
                               atol=1e-1, rtol=1e-1)

    print("KERNEL_OK")
</pallas_src>

<mosaic_0001>
module attributes {stable_mosaic.version = 11 : i64} {
  func.func @_bottleneck_fused_kernel(%arg0: i32, %arg1: memref<1x328x128xbf16, #tpu.memory_space<vmem>>, %arg2: memref<328x1xf32, #tpu.memory_space<vmem>>, %arg3: memref<128x128xbf16, #tpu.memory_space<vmem>>, %arg4: memref<1x128xf32, #tpu.memory_space<vmem>>, %arg5: memref<9x128x128xbf16, #tpu.memory_space<vmem>>, %arg6: memref<1x128xf32, #tpu.memory_space<vmem>>, %arg7: memref<128x128xbf16, #tpu.memory_space<vmem>>, %arg8: memref<1x128xf32, #tpu.memory_space<vmem>>, %arg9: memref<1xf32, #tpu.memory_space<smem>>, %arg10: memref<1x288x128xf32, #tpu.memory_space<vmem>>, %arg11: memref<328x128xf32, #tpu.memory_space<vmem>>) attributes {dimension_semantics = [#tpu.dimension_semantics<parallel>], iteration_bounds = array<i64: 2>, scalar_prefetch = 0 : i64, scratch_operands = 1 : i64, tpu.core_type = #tpu.core_type<tc>, window_params = [{transform_indices = @transform_0, window_bounds = array<i64: 1, 328, 128>}, {pipeline_mode = #tpu.pipeline_mode<synchronous>, transform_indices = @transform_1, window_bounds = array<i64: 328, 1>}, {pipeline_mode = #tpu.pipeline_mode<synchronous>, transform_indices = @transform_2, window_bounds = array<i64: 128, 128>}, {pipeline_mode = #tpu.pipeline_mode<synchronous>, transform_indices = @transform_3, window_bounds = array<i64: 1, 128>}, {pipeline_mode = #tpu.pipeline_mode<synchronous>, transform_indices = @transform_4, window_bounds = array<i64: 9, 128, 128>}, {pipeline_mode = #tpu.pipeline_mode<synchronous>, transform_indices = @transform_5, window_bounds = array<i64: 1, 128>}, {pipeline_mode = #tpu.pipeline_mode<synchronous>, transform_indices = @transform_6, window_bounds = array<i64: 128, 128>}, {pipeline_mode = #tpu.pipeline_mode<synchronous>, transform_indices = @transform_7, window_bounds = array<i64: 1, 128>}, {transform_indices = @transform_8, window_bounds = array<i64: 1>}, {transform_indices = @transform_9, window_bounds = array<i64: 1, 288, 128>}]} {
    %c0 = arith.constant 0 : index
    %0 = memref.load %arg9[%c0] : memref<1xf32, #tpu.memory_space<smem>>
    %c0_0 = arith.constant 0 : index
    %c0_1 = arith.constant 0 : index
    %c0_2 = arith.constant 0 : index
    %1 = vector.load %arg1[%c0_0, %c0_1, %c0_2] : memref<1x328x128xbf16, #tpu.memory_space<vmem>>, vector<1x328x128xbf16>
    %2 = vector.shape_cast %1 : vector<1x328x128xbf16> to vector<328x128xbf16>
    %3 = arith.extf %2 : vector<328x128xbf16> to vector<328x128xf32>
    %c0_3 = arith.constant 0 : index
    %c0_4 = arith.constant 0 : index
    %4 = vector.load %arg3[%c0_3, %c0_4] : memref<128x128xbf16, #tpu.memory_space<vmem>>, vector<128x128xbf16>
    %cst = arith.constant dense<0.000000e+00> : vector<328x128xf32>
    %5 = tpu.matmul %2, %4, %cst {dimension_numbers = #tpu.dot_dimension_numbers<[1], [0], [0], [1], [0, 0, 1, 1], [], []>} : vector<328x128xbf16>, vector<128x128xbf16>, vector<328x128xf32> -> vector<328x128xf32>
    %c0_5 = arith.constant 0 : index
    %c0_6 = arith.constant 0 : index
    %6 = vector.load %arg4[%c0_5, %c0_6] : memref<1x128xf32, #tpu.memory_space<vmem>>, vector<1x128xf32>
    %7 = vector.broadcast %6 : vector<1x128xf32> to vector<328x128xf32>
    %8 = arith.addf %5, %7 : vector<328x128xf32>
    %9 = math.absf %8 : vector<328x128xf32>
    %10 = vector.broadcast %0 : f32 to vector<328x128xf32>
    %11 = arith.subf %8, %10 : vector<328x128xf32>
    %12 = math.absf %11 : vector<328x128xf32>
    %13 = arith.subf %9, %12 : vector<328x128xf32>
    %14 = vector.broadcast %0 : f32 to vector<328x128xf32>
    %15 = arith.addf %13, %14 : vector<328x128xf32>
    %cst_7 = arith.constant 5.000000e-01 : f32
    %16 = vector.broadcast %cst_7 : f32 to vector<328x128xf32>
    %17 = arith.mulf %16, %15 : vector<328x128xf32>
    %cst_8 = arith.constant 0.000000e+00 : f32
    %18 = vector.broadcast %cst_8 : f32 to vector<328x128xf32>
    %19 = arith.maximumf %17, %18 : vector<328x128xf32>
    %c0_9 = arith.constant 0 : index
    %c0_10 = arith.constant 0 : index
    %20 = vector.load %arg2[%c0_9, %c0_10] : memref<328x1xf32, #tpu.memory_space<vmem>>, vector<328x1xf32>
    %21 = vector.broadcast %20 : vector<328x1xf32> to vector<328x128xf32>
    %22 = arith.mulf %19, %21 : vector<328x128xf32>
    %c0_11 = arith.constant 0 : index
    %c0_12 = arith.constant 0 : index
    %23 = vector.load %arg11[%c0_11, %c0_12] : memref<328x128xf32, #tpu.memory_space<vmem>>, vector<328x128xf32>
    tpu.vector_store %arg11[%c0_11, %c0_12], %22 {strides = array<i32>} : memref<328x128xf32, #tpu.memory_space<vmem>>, vector<328x128xf32>,
    %cst_13 = arith.constant 0.000000e+00 : f32
    %24 = vector.broadcast %cst_13 : f32 to vector<288x128xf32>
    %c0_14 = arith.constant 0 : index
    %c0_15 = arith.constant 0 : index
    %25 = vector.load %arg11[%c0_14, %c0_15] : memref<328x128xf32, #tpu.memory_space<vmem>>, vector<288x128xf32>
    %26 = arith.truncf %25 : vector<288x128xf32> to vector<288x128xbf16>
    %c0_16 = arith.constant 0 : index
    %c0_17 = arith.constant 0 : index
    %c0_18 = arith.constant 0 : index
    %27 = vector.load %arg5[%c0_16, %c0_17, %c0_18] : memref<9x128x128xbf16, #tpu.memory_space<vmem>>, vector<1x128x128xbf16>
    %28 = vector.shape_cast %27 : vector<1x128x128xbf16> to vector<128x128xbf16>
    %cst_19 = arith.constant dense<0.000000e+00> : vector<288x128xf32>
    %29 = tpu.matmul %26, %28, %cst_19 {dimension_numbers = #tpu.dot_dimension_numbers<[1], [0], [0], [1], [0, 0, 1, 1], [], []>} : vector<288x128xbf16>, vector<128x128xbf16>, vector<288x128xf32> -> vector<288x128xf32>
    %30 = arith.addf %24, %29 : vector<288x128xf32>
    %c1 = arith.constant 1 : index
    %c0_20 = arith.constant 0 : index
    %31 = vector.load %arg11[%c1, %c0_20] : memref<328x128xf32, #tpu.memory_space<vmem>>, vector<288x128xf32>
    %32 = arith.truncf %31 : vector<288x128xf32> to vector<288x128xbf16>
    %c1_21 = arith.constant 1 : index
    %c0_22 = arith.constant 0 : index
    %c0_23 = arith.constant 0 : index
    %33 = vector.load %arg5[%c1_21, %c0_22, %c0_23] : memref<9x128x128xbf16, #tpu.memory_space<vmem>>, vector<1x128x128xbf16>
    %34 = vector.shape_cast %33 : vector<1x128x128xbf16> to vector<128x128xbf16>
    %cst_24 = arith.constant dense<0.000000e+00> : vector<288x128xf32>
    %35 = tpu.matmul %32, %34, %cst_24 {dimension_numbers = #tpu.dot_dimension_numbers<[1], [0], [0], [1], [0, 0, 1, 1], [], []>} : vector<288x128xbf16>, vector<128x128xbf16>, vector<288x128xf32> -> vector<288x128xf32>
    %36 = arith.addf %30, %35 : vector<288x128xf32>
    %c2 = arith.constant 2 : index
    %c0_25 = arith.constant 0 : index
    %37 = vector.load %arg11[%c2, %c0_25] : memref<328x128xf32, #tpu.memory_space<vmem>>, vector<288x128xf32>
    %38 = arith.truncf %37 : vector<288x128xf32> to vector<288x128xbf16>
    %c2_26 = arith.constant 2 : index
    %c0_27 = arith.constant 0 : index
    %c0_28 = arith.constant 0 : index
    %39 = vector.load %arg5[%c2_26, %c0_27, %c0_28] : memref<9x128x128xbf16, #tpu.memory_space<vmem>>, vector<1x128x128xbf16>
    %40 = vector.shape_cast %39 : vector<1x128x128xbf16> to vector<128x128xbf16>
    %cst_29 = arith.constant dense<0.000000e+00> : vector<288x128xf32>
    %41 = tpu.matmul %38, %40, %cst_29 {dimension_numbers = #tpu.dot_dimension_numbers<[1], [0], [0], [1], [0, 0, 1, 1], [], []>} : vector<288x128xbf16>, vector<128x128xbf16>, vector<288x128xf32> -> vector<288x128xf32>
    %42 = arith.addf %36, %41 : vector<288x128xf32>
    %c18 = arith.constant 18 : index
    %c0_30 = arith.constant 0 : index
    %43 = vector.load %arg11[%c18, %c0_30] : memref<328x128xf32, #tpu.memory_space<vmem>>, vector<288x128xf32>
    %44 = arith.truncf %43 : vector<288x128xf32> to vector<288x128xbf16>
    %c3 = arith.constant 3 : index
    %c0_31 = arith.constant 0 : index
    %c0_32 = arith.constant 0 : index
    %45 = vector.load %arg5[%c3, %c0_31, %c0_32] : memref<9x128x128xbf16, #tpu.memory_space<vmem>>, vector<1x128x128xbf16>
    %46 = vector.shape_cast %45 : vector<1x128x128xbf16> to vector<128x128xbf16>
    %cst_33 = arith.constant dense<0.000000e+00> : vector<288x128xf32>
    %47 = tpu.matmul %44, %46, %cst_33 {dimension_numbers = #tpu.dot_dimension_numbers<[1], [0], [0], [1], [0, 0, 1, 1], [], []>} : vector<288x128xbf16>, vector<128x128xbf16>, vector<288x128xf32> -> vector<288x128xf32>
    %48 = arith.addf %42, %47 : vector<288x128xf32>
    %c19 = arith.constant 19 : index
    %c0_34 = arith.constant 0 : index
    %49 = vector.load %arg11[%c19, %c0_34] : memref<328x128xf32, #tpu.memory_space<vmem>>, vector<288x128xf32>
    %50 = arith.truncf %49 : vector<288x128xf32> to vector<288x128xbf16>
    %c4 = arith.constant 4 : index
    %c0_35 = arith.constant 0 : index
    %c0_36 = arith.constant 0 : index
    %51 = vector.load %arg5[%c4, %c0_35, %c0_36] : memref<9x128x128xbf16, #tpu.memory_space<vmem>>, vector<1x128x128xbf16>
    %52 = vector.shape_cast %51 : vector<1x128x128xbf16> to vector<128x128xbf16>
    %cst_37 = arith.constant dense<0.000000e+00> : vector<288x128xf32>
    %53 = tpu.matmul %50, %52, %cst_37 {dimension_numbers = #tpu.dot_dimension_numbers<[1], [0], [0], [1], [0, 0, 1, 1], [], []>} : vector<288x128xbf16>, vector<128x128xbf16>, vector<288x128xf32> -> vector<288x128xf32>
    %54 = arith.addf %48, %53 : vector<288x128xf32>
    %c20 = arith.constant 20 : index
    %c0_38 = arith.constant 0 : index
    %55 = vector.load %arg11[%c20, %c0_38] : memref<328x128xf32, #tpu.memory_space<vmem>>, vector<288x128xf32>
    %56 = arith.truncf %55 : vector<288x128xf32> to vector<288x128xbf16>
    %c5 = arith.constant 5 : index
    %c0_39 = arith.constant 0 : index
    %c0_40 = arith.constant 0 : index
    %57 = vector.load %arg5[%c5, %c0_39, %c0_40] : memref<9x128x128xbf16, #tpu.memory_space<vmem>>, vector<1x128x128xbf16>
    %58 = vector.shape_cast %57 : vector<1x128x128xbf16> to vector<128x128xbf16>
    %cst_41 = arith.constant dense<0.000000e+00> : vector<288x128xf32>
    %59 = tpu.matmul %56, %58, %cst_41 {dimension_numbers = #tpu.dot_dimension_numbers<[1], [0], [0], [1], [0, 0, 1, 1], [], []>} : vector<288x128xbf16>, vector<128x128xbf16>, vector<288x128xf32> -> vector<288x128xf32>
    %60 = arith.addf %54, %59 : vector<288x128xf32>
    %c36 = arith.constant 36 : index
    %c0_42 = arith.constant 0 : index
    %61 = vector.load %arg11[%c36, %c0_42] : memref<328x128xf32, #tpu.memory_space<vmem>>, vector<288x128xf32>
    %62 = arith.truncf %61 : vector<288x128xf32> to vector<288x128xbf16>
    %c6 = arith.constant 6 : index
    %c0_43 = arith.constant 0 : index
    %c0_44 = arith.constant 0 : index
    %63 = vector.load %arg5[%c6, %c0_43, %c0_44] : memref<9x128x128xbf16, #tpu.memory_space<vmem>>, vector<1x128x128xbf16>
    %64 = vector.shape_cast %63 : vector<1x128x128xbf16> to vector<128x128xbf16>
    %cst_45 = arith.constant dense<0.000000e+00> : vector<288x128xf32>
    %65 = tpu.matmul %62, %64, %cst_45 {dimension_numbers = #tpu.dot_dimension_numbers<[1], [0], [0], [1], [0, 0, 1, 1], [], []>} : vector<288x128xbf16>, vector<128x128xbf16>, vector<288x128xf32> -> vector<288x128xf32>
    %66 = arith.addf %60, %65 : vector<288x128xf32>
    %c37 = arith.constant 37 : index
    %c0_46 = arith.constant 0 : index
    %67 = vector.load %arg11[%c37, %c0_46] : memref<328x128xf32, #tpu.memory_space<vmem>>, vector<288x128xf32>
    %68 = arith.truncf %67 : vector<288x128xf32> to vector<288x128xbf16>
    %c7 = arith.constant 7 : index
    %c0_47 = arith.constant 0 : index
    %c0_48 = arith.constant 0 : index
    %69 = vector.load %arg5[%c7, %c0_47, %c0_48] : memref<9x128x128xbf16, #tpu.memory_space<vmem>>, vector<1x128x128xbf16>
    %70 = vector.shape_cast %69 : vector<1x128x128xbf16> to vector<128x128xbf16>
    %cst_49 = arith.constant dense<0.000000e+00> : vector<288x128xf32>
    %71 = tpu.matmul %68, %70, %cst_49 {dimension_numbers = #tpu.dot_dimension_numbers<[1], [0], [0], [1], [0, 0, 1, 1], [], []>} : vector<288x128xbf16>, vector<128x128xbf16>, vector<288x128xf32> -> vector<288x128xf32>
    %72 = arith.addf %66, %71 : vector<288x128xf32>
    %c38 = arith.constant 38 : index
    %c0_50 = arith.constant 0 : index
    %73 = vector.load %arg11[%c38, %c0_50] : memref<328x128xf32, #tpu.memory_space<vmem>>, vector<288x128xf32>
    %74 = arith.truncf %73 : vector<288x128xf32> to vector<288x128xbf16>
    %c8 = arith.constant 8 : index
    %c0_51 = arith.constant 0 : index
    %c0_52 = arith.constant 0 : index
    %75 = vector.load %arg5[%c8, %c0_51, %c0_52] : memref<9x128x128xbf16, #tpu.memory_space<vmem>>, vector<1x128x128xbf16>
    %76 = vector.shape_cast %75 : vector<1x128x128xbf16> to vector<128x128xbf16>
    %cst_53 = arith.constant dense<0.000000e+00> : vector<288x128xf32>
    %77 = tpu.matmul %74, %76, %cst_53 {dimension_numbers = #tpu.dot_dimension_numbers<[1], [0], [0], [1], [0, 0, 1, 1], [], []>} : vector<288x128xbf16>, vector<128x128xbf16>, vector<288x128xf32> -> vector<288x128xf32>
    %78 = arith.addf %72, %77 : vector<288x128xf32>
    %c0_54 = arith.constant 0 : index
    %c0_55 = arith.constant 0 : index
    %79 = vector.load %arg6[%c0_54, %c0_55] : memref<1x128xf32, #tpu.memory_space<vmem>>, vector<1x128xf32>
    %80 = vector.broadcast %79 : vector<1x128xf32> to vector<288x128xf32>
    %81 = arith.addf %78, %80 : vector<288x128xf32>
    %82 = math.absf %81 : vector<288x128xf32>
    %83 = vector.broadcast %0 : f32 to vector<288x128xf32>
    %84 = arith.subf %81, %83 : vector<288x128xf32>
    %85 = math.absf %84 : vector<288x128xf32>
    %86 = arith.subf %82, %85 : vector<288x128xf32>
    %87 = vector.broadcast %0 : f32 to vector<288x128xf32>
    %88 = arith.addf %86, %87 : vector<288x128xf32>
    %cst_56 = arith.constant 5.000000e-01 : f32
    %89 = vector.broadcast %cst_56 : f32 to vector<288x128xf32>
    %90 = arith.mulf %89, %88 : vector<288x128xf32>
    %cst_57 = arith.constant 0.000000e+00 : f32
    %91 = vector.broadcast %cst_57 : f32 to vector<288x128xf32>
    %92 = arith.maximumf %90, %91 : vector<288x128xf32>
    %93 = arith.truncf %92 : vector<288x128xf32> to vector<288x128xbf16>
    %c0_58 = arith.constant 0 : index
    %c0_59 = arith.constant 0 : index
    %94 = vector.load %arg7[%c0_58, %c0_59] : memref<128x128xbf16, #tpu.memory_space<vmem>>, vector<128x128xbf16>
    %cst_60 = arith.constant dense<0.000000e+00> : vector<288x128xf32>
    %95 = tpu.matmul %93, %94, %cst_60 {dimension_numbers = #tpu.dot_dimension_numbers<[1], [0], [0], [1], [0, 0, 1, 1], [], []>} : vector<288x128xbf16>, vector<128x128xbf16>, vector<288x128xf32> -> vector<288x128xf32>
    %c0_61 = arith.constant 0 : index
    %c0_62 = arith.constant 0 : index
    %96 = vector.load %arg8[%c0_61, %c0_62] : memref<1x128xf32, #tpu.memory_space<vmem>>, vector<1x128xf32>
    %97 = vector.broadcast %96 : vector<1x128xf32> to vector<288x128xf32>
    %98 = arith.addf %95, %97 : vector<288x128xf32>
    %99 = vector.extract_strided_slice %3 {offsets = [19, 0], sizes = [288, 128], strides = [1, 1]} : vector<328x128xf32> to vector<288x128xf32>
    %100 = arith.addf %98, %99 : vector<288x128xf32>
    %101 = math.absf %100 : vector<288x128xf32>
    %102 = vector.broadcast %0 : f32 to vector<288x128xf32>
    %103 = arith.subf %100, %102 : vector<288x128xf32>
    %104 = math.absf %103 : vector<288x128xf32>
    %105 = arith.subf %101, %104 : vector<288x128xf32>
    %106 = vector.broadcast %0 : f32 to vector<288x128xf32>
    %107 = arith.addf %105, %106 : vector<288x128xf32>
    %cst_63 = arith.constant 5.000000e-01 : f32
    %108 = vector.broadcast %cst_63 : f32 to vector<288x128xf32>
    %109 = arith.mulf %108, %107 : vector<288x128xf32>
    %cst_64 = arith.constant 0.000000e+00 : f32
    %110 = vector.broadcast %cst_64 : f32 to vector<288x128xf32>
    %111 = arith.maximumf %109, %110 : vector<288x128xf32>
    %c0_65 = arith.constant 0 : index
    %c0_66 = arith.constant 0 : index
    %c0_67 = arith.constant 0 : index
    %112 = vector.load %arg10[%c0_65, %c0_66, %c0_67] : memref<1x288x128xf32, #tpu.memory_space<vmem>>, vector<1x288x128xf32>
    %113 = vector.shape_cast %112 : vector<1x288x128xf32> to vector<288x128xf32>
    %114 = vector.shape_cast %111 : vector<288x128xf32> to vector<1x288x128xf32>
    tpu.vector_store %arg10[%c0_65, %c0_66, %c0_67], %114 {strides = array<i32>} : memref<1x288x128xf32, #tpu.memory_space<vmem>>, vector<1x288x128xf32>,
    return
  }
  func.func @transform_0(%arg0: i32) -> (i32, i32, i32) {
    %c0_i32 = arith.constant 0 : i32
    %c0_i32_0 = arith.constant 0 : i32
    %c0_i32_1 = arith.constant 0 : i32
    return %arg0, %c0_i32, %c0_i32_0 : i32, i32, i32
  }
  func.func @transform_1(%arg0: i32) -> (i32, i32) {
    %c0_i32 = arith.constant 0 : i32
    %c0_i32_0 = arith.constant 0 : i32
    %c0_i32_1 = arith.constant 0 : i32
    return %c0_i32, %c0_i32_0 : i32, i32
  }
  func.func @transform_2(%arg0: i32) -> (i32, i32) {
    %c0_i32 = arith.constant 0 : i32
    %c0_i32_0 = arith.constant 0 : i32
    %c0_i32_1 = arith.constant 0 : i32
    return %c0_i32, %c0_i32_0 : i32, i32
  }
  func.func @transform_3(%arg0: i32) -> (i32, i32) {
    %c0_i32 = arith.constant 0 : i32
    %c0_i32_0 = arith.constant 0 : i32
    %c0_i32_1 = arith.constant 0 : i32
    return %c0_i32, %c0_i32_0 : i32, i32
  }
  func.func @transform_4(%arg0: i32) -> (i32, i32, i32) {
    %c0_i32 = arith.constant 0 : i32
    %c0_i32_0 = arith.constant 0 : i32
    %c0_i32_1 = arith.constant 0 : i32
    %c0_i32_2 = arith.constant 0 : i32
    return %c0_i32, %c0_i32_0, %c0_i32_1 : i32, i32, i32
  }
  func.func @transform_5(%arg0: i32) -> (i32, i32) {
    %c0_i32 = arith.constant 0 : i32
    %c0_i32_0 = arith.constant 0 : i32
    %c0_i32_1 = arith.constant 0 : i32
    return %c0_i32, %c0_i32_0 : i32, i32
  }
  func.func @transform_6(%arg0: i32) -> (i32, i32) {
    %c0_i32 = arith.constant 0 : i32
    %c0_i32_0 = arith.constant 0 : i32
    %c0_i32_1 = arith.constant 0 : i32
    return %c0_i32, %c0_i32_0 : i32, i32
  }
  func.func @transform_7(%arg0: i32) -> (i32, i32) {
    %c0_i32 = arith.constant 0 : i32
    %c0_i32_0 = arith.constant 0 : i32
    %c0_i32_1 = arith.constant 0 : i32
    return %c0_i32, %c0_i32_0 : i32, i32
  }
  func.func @transform_8(%arg0: i32) -> i32 {
    %c0_i32 = arith.constant 0 : i32
    %c0_i32_0 = arith.constant 0 : i32
    return %c0_i32 : i32
  }
  func.func @transform_9(%arg0: i32) -> (i32, i32, i32) {
    %c0_i32 = arith.constant 0 : i32
    %c0_i32_0 = arith.constant 0 : i32
    %c0_i32_1 = arith.constant 0 : i32
    return %arg0, %c0_i32, %c0_i32_0 : i32, i32, i32
  }
}

</mosaic_0001>

<llo_original>
// kernel: bottleneck_forward.1
$region0: #{bottleneck_forward.1}
  #allocation0 [shape = 'u32[]', space=smem, size = 0x4, offset = 0x4, fixed_abs, tag = 'smem constant byte address 0x4 - core index']
  #allocation1 [shape = 'u32[72,128]{1,0:T(1,128)}', space=vmem, size = 0x9000, scoped, tag = 'internal scratch']
  #allocation2 [shape = 'f32[328,128]{1,0:T(8,128)}', space=vmem, size = 0x29000, scoped, tag = 'scratch operand']
  #allocation3 [shape = 'f32[1]{0:T(128)S(6)}', space=smem, size = 0x200, scoped, tag = 'scoped memory for bottleneck_forward.1']
  %s0 = inlined_call_operand.vmem [shape: bf16[2,328,128], index: 0, kind: input, shape index: {}]
  %s1 = inlined_call_operand.vmem [shape: f32[328,1], index: 1, kind: input, shape index: {}]
  %s2 = inlined_call_operand.vmem [shape: bf16[128,128], index: 2, kind: input, shape index: {}]
  %s3 = inlined_call_operand.vmem [shape: f32[1,128], index: 3, kind: input, shape index: {}]
  %s4 = inlined_call_operand.vmem [shape: bf16[9,128,128], index: 4, kind: input, shape index: {}]
  %s5 = inlined_call_operand.vmem [shape: f32[1,128], index: 5, kind: input, shape index: {}]
  %s6 = inlined_call_operand.vmem [shape: bf16[128,128], index: 6, kind: input, shape index: {}]
  %s7 = inlined_call_operand.vmem [shape: f32[1,128], index: 7, kind: input, shape index: {}]
  %s8 = inlined_call_operand.<no memory space> [shape: f32[1], index: 8, kind: input, shape index: {}]
  %s9 = inlined_call_operand.vmem [shape: f32[2,288,128], index: 9, kind: output, shape index: {}]
  %s10 = sld [smem:[#allocation0]]
  $region69: #{bottleneck_forward.1} parent=0
    _
  %s12 = ssub.s32 1, %s10
  %s13 = scalar_select 0, %s12, %s10
  %14 = sst [smem:[#allocation3]] %s8
  loop: start=0, step=1, limit=4
  $region2: #{bottleneck_forward.1} parent=0 // loop_pre_header
    _
  $region3: #{bottleneck_forward.1} parent=0 // loop_header
    %s16 = sphi 0, %s20
    %p17 = scmp.ge.s32.totalorder %s16, 4
    %s26 = sphi 0, %s28
    %s29 = sphi 0, %s26
    %s30 = sphi 0, %s29
    %s46 = sphi 0, %s30
    %s50 = sphi 0, %s50
    %s52 = sphi 0, %s50
    %s53 = sphi 0, %s52
    %s67 = sphi 0, %s53
    %s71 = sphi 0, %s71
    %s73 = sphi 0, %s71
    %s74 = sphi 0, %s73
    %s88 = sphi 0, %s74
    %s92 = sphi 0, %s92
    %s94 = sphi 0, %s92
    %s95 = sphi 0, %s94
    %s109 = sphi 0, %s95
    %s113 = sphi 0, %s113
    %s115 = sphi 0, %s113
    %s116 = sphi 0, %s115
    %s130 = sphi 0, %s116
    %s134 = sphi 0, %s134
    %s136 = sphi 0, %s134
    %s137 = sphi 0, %s136
    %s151 = sphi 0, %s137
    %s155 = sphi 0, %s155
    %s157 = sphi 0, %s155
    %s158 = sphi 0, %s157
    %s172 = sphi 0, %s158
    %s176 = sphi 0, %s176
    %s178 = sphi 0, %s176
    %s179 = sphi 0, %s178
    %s193 = sphi 0, %s179
    %s197 = sphi 0, %s197
    %s199 = sphi 0, %s197
    %s200 = sphi 0, %s199
    %s214 = sphi 0, %s200
    %s220 = sphi 0, %s222
    %s223 = sphi 0, %s220
    %s224 = sphi 0, %s223
    %s240 = sphi 0, %s224
  $region4: #{bottleneck_forward.1} parent=0 // loop_header_branch
    %19 = sbr.rel (%p17) target = $region8
  $region5: #{bottleneck_forward.1} parent=0 // loop_body
    %s21 = ssub.s32 %s16, 1
    %s22 = ssub.s32 %s16, 2
    %s23 = sadd.s32 %s16, 1
    %s24 = ssub.s32 %s16, %s23
    %p25 = scmp.eq.s32.totalorder %s24, 0
    %s27 = sadd.s32 %s26, 1
    %s28 = scalar_select %p25, %s26, %s27
    %p31 = pneg %p25
    %p32 = scmp.eq.s32.totalorder %s16, 1
    %p33 = por %p31, %p32
    %p34 = scmp.ne.s32.totalorder %s26, %s29
    %p35 = scmp.eq.s32.totalorder %s16, 0
    %p36 = por %p34, %p35
    %p37 = scmp.ne.s32.totalorder %s26, %s29
    %p38 = scmp.eq.s32.totalorder %s21, 1
    %p39 = por %p37, %p38
    %p40 = scmp.ne.s32.totalorder %s29, %s30
    %p41 = scmp.eq.s32.totalorder %s21, 0
    %p42 = por %p40, %p41
    %p43 = scmp.ne.s32.totalorder %s29, %s30
    %p44 = scmp.eq.s32.totalorder %s22, 1
    %p45 = por %p43, %p44
    %p47 = scmp.ne.s32.totalorder %s30, %s46
    %p48 = scmp.eq.s32.totalorder %s22, 0
    %p49 = por %p47, %p48
    %s51 = sadd.s32 %s50, 1
    %p54 = scmp.eq.s32.totalorder %s16, 1
    %p55 = scmp.ne.s32.totalorder %s50, %s52
    %p56 = scmp.eq.s32.totalorder %s16, 0
    %p57 = por %p55, %p56
    %p58 = scmp.ne.s32.totalorder %s50, %s52
    %p59 = scmp.eq.s32.totalorder %s21, 1
    %p60 = por %p58, %p59
    %p61 = scmp.ne.s32.totalorder %s52, %s53
    %p62 = scmp.eq.s32.totalorder %s21, 0
    %p63 = por %p61, %p62
    %p64 = scmp.ne.s32.totalorder %s52, %s53
    %p65 = scmp.eq.s32.totalorder %s22, 1
    %p66 = por %p64, %p65
    %p68 = scmp.ne.s32.totalorder %s53, %s67
    %p69 = scmp.eq.s32.totalorder %s22, 0
    %p70 = por %p68, %p69
    %s72 = sadd.s32 %s71, 1
    %p75 = scmp.eq.s32.totalorder %s16, 1
    %p76 = scmp.ne.s32.totalorder %s71, %s73
    %p77 = scmp.eq.s32.totalorder %s16, 0
    %p78 = por %p76, %p77
    %p79 = scmp.ne.s32.totalorder %s71, %s73
    %p80 = scmp.eq.s32.totalorder %s21, 1
    %p81 = por %p79, %p80
    %p82 = scmp.ne.s32.totalorder %s73, %s74
    %p83 = scmp.eq.s32.totalorder %s21, 0
    %p84 = por %p82, %p83
    %p85 = scmp.ne.s32.totalorder %s73, %s74
    %p86 = scmp.eq.s32.totalorder %s22, 1
    %p87 = por %p85, %p86
    %p89 = scmp.ne.s32.totalorder %s74, %s88
    %p90 = scmp.eq.s32.totalorder %s22, 0
    %p91 = por %p89, %p90
    %s93 = sadd.s32 %s92, 1
    %p96 = scmp.eq.s32.totalorder %s16, 1
    %p97 = scmp.ne.s32.totalorder %s92, %s94
    %p98 = scmp.eq.s32.totalorder %s16, 0
    %p99 = por %p97, %p98
    %p100 = scmp.ne.s32.totalorder %s92, %s94
    %p101 = scmp.eq.s32.totalorder %s21, 1
    %p102 = por %p100, %p101
    %p103 = scmp.ne.s32.totalorder %s94, %s95
    %p104 = scmp.eq.s32.totalorder %s21, 0
    %p105 = por %p103, %p104
    %p106 = scmp.ne.s32.totalorder %s94, %s95
    %p107 = scmp.eq.s32.totalorder %s22, 1
    %p108 = por %p106, %p107
    %p110 = scmp.ne.s32.totalorder %s95, %s109
    %p111 = scmp.eq.s32.totalorder %s22, 0
    %p112 = por %p110, %p111
    %s114 = sadd.s32 %s113, 1
    %p117 = scmp.eq.s32.totalorder %s16, 1
    %p118 = scmp.ne.s32.totalorder %s113, %s115
    %p119 = scmp.eq.s32.totalorder %s16, 0
    %p120 = por %p118, %p119
    %p121 = scmp.ne.s32.totalorder %s113, %s115
    %p122 = scmp.eq.s32.totalorder %s21, 1
    %p123 = por %p121, %p122
    %p124 = scmp.ne.s32.totalorder %s115, %s116
    %p125 = scmp.eq.s32.totalorder %s21, 0
    %p126 = por %p124, %p125
    %p127 = scmp.ne.s32.totalorder %s115, %s116
    %p128 = scmp.eq.s32.totalorder %s22, 1
    %p129 = por %p127, %p128
    %p131 = scmp.ne.s32.totalorder %s116, %s130
    %p132 = scmp.eq.s32.totalorder %s22, 0
    %p133 = por %p131, %p132
    %s135 = sadd.s32 %s134, 1
    %p138 = scmp.eq.s32.totalorder %s16, 1
    %p139 = scmp.ne.s32.totalorder %s134, %s136
    %p140 = scmp.eq.s32.totalorder %s16, 0
    %p141 = por %p139, %p140
    %p142 = scmp.ne.s32.totalorder %s134, %s136
    %p143 = scmp.eq.s32.totalorder %s21, 1
    %p144 = por %p142, %p143
    %p145 = scmp.ne.s32.totalorder %s136, %s137
    %p146 = scmp.eq.s32.totalorder %s21, 0
    %p147 = por %p145, %p146
    %p148 = scmp.ne.s32.totalorder %s136, %s137
    %p149 = scmp.eq.s32.totalorder %s22, 1
    %p150 = por %p148, %p149
    %p152 = scmp.ne.s32.totalorder %s137, %s151
    %p153 = scmp.eq.s32.totalorder %s22, 0
    %p154 = por %p152, %p153
    %s156 = sadd.s32 %s155, 1
    %p159 = scmp.eq.s32.totalorder %s16, 1
    %p160 = scmp.ne.s32.totalorder %s155, %s157
    %p161 = scmp.eq.s32.totalorder %s16, 0
    %p162 = por %p160, %p161
    %p163 = scmp.ne.s32.totalorder %s155, %s157
    %p164 = scmp.eq.s32.totalorder %s21, 1
    %p165 = por %p163, %p164
    %p166 = scmp.ne.s32.totalorder %s157, %s158
    %p167 = scmp.eq.s32.totalorder %s21, 0
    %p168 = por %p166, %p167
    %p169 = scmp.ne.s32.totalorder %s157, %s158
    %p170 = scmp.eq.s32.totalorder %s22, 1
    %p171 = por %p169, %p170
    %p173 = scmp.ne.s32.totalorder %s158, %s172
    %p174 = scmp.eq.s32.totalorder %s22, 0
    %p175 = por %p173, %p174
    %s177 = sadd.s32 %s176, 1
    %p180 = scmp.eq.s32.totalorder %s16, 1
    %p181 = scmp.ne.s32.totalorder %s176, %s178
    %p182 = scmp.eq.s32.totalorder %s16, 0
    %p183 = por %p181, %p182
    %p184 = scmp.ne.s32.totalorder %s176, %s178
    %p185 = scmp.eq.s32.totalorder %s21, 1
    %p186 = por %p184, %p185
    %p187 = scmp.ne.s32.totalorder %s178, %s179
    %p188 = scmp.eq.s32.totalorder %s21, 0
    %p189 = por %p187, %p188
    %p190 = scmp.ne.s32.totalorder %s178, %s179
    %p191 = scmp.eq.s32.totalorder %s22, 1
    %p192 = por %p190, %p191
    %p194 = scmp.ne.s32.totalorder %s179, %s193
    %p195 = scmp.eq.s32.totalorder %s22, 0
    %p196 = por %p194, %p195
    %s198 = sadd.s32 %s197, 1
    %p201 = scmp.eq.s32.totalorder %s16, 1
    %p202 = scmp.ne.s32.totalorder %s197, %s199
    %p203 = scmp.eq.s32.totalorder %s16, 0
    %p204 = por %p202, %p203
    %p205 = scmp.ne.s32.totalorder %s197, %s199
    %p206 = scmp.eq.s32.totalorder %s21, 1
    %p207 = por %p205, %p206
    %p208 = scmp.ne.s32.totalorder %s199, %s200
    %p209 = scmp.eq.s32.totalorder %s21, 0
    %p210 = por %p208, %p209
    %p211 = scmp.ne.s32.totalorder %s199, %s200
    %p212 = scmp.eq.s32.totalorder %s22, 1
    %p213 = por %p211, %p212
    %p215 = scmp.ne.s32.totalorder %s200, %s214
    %p216 = scmp.eq.s32.totalorder %s22, 0
    %p217 = por %p215, %p216
    %s218 = ssub.s32 %s16, %s23
    %p219 = scmp.eq.s32.totalorder %s218, 0
    %s221 = sadd.s32 %s220, 1
    %s222 = scalar_select %p219, %s220, %s221
    %p225 = pneg %p219
    %p226 = scmp.eq.s32.totalorder %s16, 1
    %p227 = por %p225, %p226
    %p228 = scmp.ne.s32.totalorder %s220, %s223
    %p229 = scmp.eq.s32.totalorder %s16, 0
    %p230 = por %p228, %p229
    %p231 = scmp.ne.s32.totalorder %s220, %s223
    %p232 = scmp.eq.s32.totalorder %s21, 1
    %p233 = por %p231, %p232
    %p234 = scmp.ne.s32.totalorder %s223, %s224
    %p235 = scmp.eq.s32.totalorder %s21, 0
    %p236 = por %p234, %p235
    %p237 = scmp.ne.s32.totalorder %s223, %s224
    %p238 = scmp.eq.s32.totalorder %s22, 1
    %p239 = por %p237, %p238
    %p241 = scmp.ne.s32.totalorder %s224, %s240
    %p242 = scmp.eq.s32.totalorder %s22, 0
    %p243 = por %p241, %p242
    %p244 = scmp.le.s32.totalorder 1, %s16
    %p245 = scmp.lt.s32.totalorder %s16, 3
    %p246 = pnand %p244, %p245
    %p247 = pneg %p246
    // Predicated region
    $region9: #{bottleneck_forward.1} parent=5 // pred_check
      _
    $region10: #{bottleneck_forward.1} parent=5 // pred_check_branch
      %249 = sbr.rel (%p246) target = $region12
    $region11: #{bottleneck_forward.1} parent=5 // pred_region
      %s250 = ssub.s32 %s16, 1
      // Predicated region
      $region13: #{bottleneck_forward.1} parent=11 // pred_check
        %p251 = pneg %p63
      $region14: #{bottleneck_forward.1} parent=11 // pred_check_branch
        %253 = sbr.rel (%p251) target = $region16
      $region15: #{bottleneck_forward.1} parent=11 // pred_region
        _
      $region16: #{bottleneck_forward.1} parent=11 // pred_fallthru
        _
      // Predicated region
      $region17: #{bottleneck_forward.1} parent=11 // pred_check
        %p254 = pneg %p84
      $region18: #{bottleneck_forward.1} parent=11 // pred_check_branch
        %256 = sbr.rel (%p254) target = $region20
      $region19: #{bottleneck_forward.1} parent=11 // pred_region
        _
      $region20: #{bottleneck_forward.1} parent=11 // pred_fallthru
        _
      // Predicated region
      $region21: #{bottleneck_forward.1} parent=11 // pred_check
        %p257 = pneg %p105
      $region22: #{bottleneck_forward.1} parent=11 // pred_check_branch
        %259 = sbr.rel (%p257) target = $region24
      $region23: #{bottleneck_forward.1} parent=11 // pred_region
        _
      $region24: #{bottleneck_forward.1} parent=11 // pred_fallthru
        _
      // Predicated region
      $region25: #{bottleneck_forward.1} parent=11 // pred_check
        %p260 = pneg %p126
      $region26: #{bottleneck_forward.1} parent=11 // pred_check_branch
        %262 = sbr.rel (%p260) target = $region28
      $region27: #{bottleneck_forward.1} parent=11 // pred_region
        _
      $region28: #{bottleneck_forward.1} parent=11 // pred_fallthru
        _
      // Predicated region
      $region29: #{bottleneck_forward.1} parent=11 // pred_check
        %p263 = pneg %p147
      $region30: #{bottleneck_forward.1} parent=11 // pred_check_branch
        %265 = sbr.rel (%p263) target = $region32
      $region31: #{bottleneck_forward.1} parent=11 // pred_region
        _
      $region32: #{bottleneck_forward.1} parent=11 // pred_fallthru
        _
      // Predicated region
      $region33: #{bottleneck_forward.1} parent=11 // pred_check
        %p266 = pneg %p168
      $region34: #{bottleneck_forward.1} parent=11 // pred_check_branch
        %268 = sbr.rel (%p266) target = $region36
      $region35: #{bottleneck_forward.1} parent=11 // pred_region
        _
      $region36: #{bottleneck_forward.1} parent=11 // pred_fallthru
        _
      // Predicated region
      $region37: #{bottleneck_forward.1} parent=11 // pred_check
        %p269 = pneg %p189
      $region38: #{bottleneck_forward.1} parent=11 // pred_check_branch
        %271 = sbr.rel (%p269) target = $region40
      $region39: #{bottleneck_forward.1} parent=11 // pred_region
        _
      $region40: #{bottleneck_forward.1} parent=11 // pred_fallthru
        _
      // Predicated region
      $region41: #{bottleneck_forward.1} parent=11 // pred_check
        %p272 = pneg %p210
      $region42: #{bottleneck_forward.1} parent=11 // pred_check_branch
        %274 = sbr.rel (%p272) target = $region44
      $region43: #{bottleneck_forward.1} parent=11 // pred_region
        _
      $region44: #{bottleneck_forward.1} parent=11 // pred_fallthru
        _
    $region12: #{bottleneck_forward.1} parent=5 // pred_fallthru
      _
    %p275 = scmp.lt.s32.totalorder %s16, 2
    // Predicated region
    $region45: #{bottleneck_forward.1} parent=5 // pred_check
      %p276 = pneg %p275
    $region46: #{bottleneck_forward.1} parent=5 // pred_check_branch
      %278 = sbr.rel (%p276) target = $region48
    $region47: #{bottleneck_forward.1} parent=5 // pred_region
      // Predicated region
      $region49: #{bottleneck_forward.1} parent=47 // pred_check
        %p279 = pneg %p36
      $region50: #{bottleneck_forward.1} parent=47 // pred_check_branch
        %281 = sbr.rel (%p279) target = $region52
      $region51: #{bottleneck_forward.1} parent=47 // pred_region
        %p282 = scmp.lt.s32.totalorder %s16, 1
        %s283 = scalar_select %p282, %s16, 1
        %s284 = smul.addr %s283, 41
        %s285 = smul.addr %s284, 4
        %s286 = scalar_lea.vmem %s0, %s285
      $region52: #{bottleneck_forward.1} parent=47 // pred_fallthru
        _
    $region48: #{bottleneck_forward.1} parent=5 // pred_fallthru
      _
    %p287 = scmp.le.s32.totalorder 1, %s16
    %p288 = scmp.lt.s32.totalorder %s16, 3
    %p289 = pnand %p287, %p288
    %p290 = pneg %p289
    // Predicated region
    $region53: #{bottleneck_forward.1} parent=5 // pred_check
      _
    $region54: #{bottleneck_forward.1} parent=5 // pred_check_branch
      %292 = sbr.rel (%p289) target = $region56
    $region55: #{bottleneck_forward.1} parent=5 // pred_region
      %s293 = ssub.s32 %s16, 1
      %p294 = scmp.lt.s32.totalorder %s21, 1
      %s295 = scalar_select %p294, %s21, 1
      %s296 = smul.addr %s295, 41
      %s297 = smul.addr %s296, 4
      %s298 = scalar_lea.vmem %s0, %s297
      %p299 = pneg %p42
      %p300 = pneg %p39
      %p301 = pneg %p63
      %p302 = pneg %p60
      %p303 = pneg %p84
      %p304 = pneg %p81
      %p305 = pneg %p105
      %p306 = pneg %p102
      %p307 = pneg %p126
      %p308 = pneg %p123
      %p309 = pneg %p147
      %p310 = pneg %p144
      %p311 = pneg %p168
      %p312 = pneg %p165
      %p313 = pneg %p189
      %p314 = pneg %p186
      %p315 = pneg %p210
      %p316 = pneg %p207
      %p317 = pneg %p236
      %p318 = pneg %p233
      %p319 = scmp.lt.s32.totalorder %s21, 1
      %s320 = scalar_select %p319, %s21, 1
      %s321 = smul.addr %s320, 36
      %s322 = smul.addr %s321, 8
      %s323 = scalar_lea.vmem %s9, %s322
      %p324 = scmp.lt.s32.totalorder %s21, 1
      %s325 = scalar_select %p324, %s21, 1
      %s326 = smul.addr %s325, 41
      %s327 = smul.addr %s326, 4
      %s328 = scalar_lea.vmem %s0, %s327
      %p329 = scmp.lt.s32.totalorder %s21, 1
      %s330 = scalar_select %p329, %s21, 1
      %s331 = smul.addr %s330, 36
      %s332 = smul.addr %s331, 8
      %s333 = scalar_lea.vmem %s9, %s332
      %s334 = sld [smem:[#allocation3]]
      %v335 = vld [vmem:[%s328] sm:$0xf]
      %v336 = vld [vmem:[%s328 + $0x4] sm:$0xf]
      %v337 = vld [vmem:[%s328 + $0x8] sm:$0xf]
      %v338 = vld [vmem:[%s328 + $0xc] sm:$0xf]
      %v339 = vld [vmem:[%s328 + $0x10] sm:$0xf]
      %v340 = vld [vmem:[%s328 + $0x14] sm:$0xf]
      %v341 = vld [vmem:[%s328 + $0x18] sm:$0xf]
      %v342 = vld [vmem:[%s328 + $0x1c] sm:$0xf]
      %v343 = vld [vmem:[%s328 + $0x20] sm:$0xf]
      %v344 = vld [vmem:[%s328 + $0x24] sm:$0xf]
      %v345 = vld [vmem:[%s328 + $0x28] sm:$0xf]
      %v346 = vld [vmem:[%s328 + $0x2c] sm:$0xf]
      %v347 = vld [vmem:[%s328 + $0x30] sm:$0xf]
      %v348 = vld [vmem:[%s328 + $0x34] sm:$0xf]
      %v349 = vld [vmem:[%s328 + $0x38] sm:$0xf]
      %v350 = vld [vmem:[%s328 + $0x3c] sm:$0xf]
      %v351 = vld [vmem:[%s328 + $0x40] sm:$0xf]
      %v352 = vld [vmem:[%s328 + $0x44] sm:$0xf]
      %v353 = vld [vmem:[%s328 + $0x48] sm:$0xf]
      %v354 = vld [vmem:[%s328 + $0x4c] sm:$0xf]
      %v355 = vld [vmem:[%s328 + $0x50] sm:$0xf]
      %v356 = vld [vmem:[%s328 + $0x54] sm:$0xf]
      %v357 = vld [vmem:[%s328 + $0x58] sm:$0xf]
      %v358 = vld [vmem:[%s328 + $0x5c] sm:$0xf]
      %v359 = vld [vmem:[%s328 + $0x60] sm:$0xf]
      %v360 = vld [vmem:[%s328 + $0x64] sm:$0xf]
      %v361 = vld [vmem:[%s328 + $0x68] sm:$0xf]
      %v362 = vld [vmem:[%s328 + $0x6c] sm:$0xf]
      %v363 = vld [vmem:[%s328 + $0x70] sm:$0xf]
      %v364 = vld [vmem:[%s328 + $0x74] sm:$0xf]
      %v365 = vld [vmem:[%s328 + $0x78] sm:$0xf]
      %v366 = vld [vmem:[%s328 + $0x7c] sm:$0xf]
      %v367 = vld [vmem:[%s328 + $0x80] sm:$0xf]
      %v368 = vld [vmem:[%s328 + $0x84] sm:$0xf]
      %v369 = vld [vmem:[%s328 + $0x88] sm:$0xf]
      %v370 = vld [vmem:[%s328 + $0x8c] sm:$0xf]
      %v371 = vld [vmem:[%s328 + $0x90] sm:$0xf]
      %v372 = vld [vmem:[%s328 + $0x94] sm:$0xf]
      %v373 = vld [vmem:[%s328 + $0x98] sm:$0xf]
      %v374 = vld [vmem:[%s328 + $0x9c] sm:$0xf]
      %v375 = vld [vmem:[%s328 + $0xa0] sm:$0xf]
      %v376 = vunpack.c.l.bf16 %v337
      %v377 = vunpack.c.l.bf16 %v338
      %v378 = vunpack.c.l.bf16 %v339
      %v379 = vunpack.c.l.bf16 %v340
      %v380 = vunpack.c.l.bf16 %v341
      %v381 = vunpack.c.l.bf16 %v342
      %v382 = vunpack.c.l.bf16 %v343
      %v383 = vunpack.c.l.bf16 %v344
      %v384 = vunpack.c.l.bf16 %v345
      %v385 = vunpack.c.l.bf16 %v346
      %v386 = vunpack.c.l.bf16 %v347
      %v387 = vunpack.c.l.bf16 %v348
      %v388 = vunpack.c.l.bf16 %v349
      %v389 = vunpack.c.l.bf16 %v350
      %v390 = vunpack.c.l.bf16 %v351
      %v391 = vunpack.c.l.bf16 %v352
      %v392 = vunpack.c.l.bf16 %v353
      %v393 = vunpack.c.l.bf16 %v354
      %v394 = vunpack.c.l.bf16 %v355
      %v395 = vunpack.c.l.bf16 %v356
      %v396 = vunpack.c.l.bf16 %v357
      %v397 = vunpack.c.l.bf16 %v358
      %v398 = vunpack.c.l.bf16 %v359
      %v399 = vunpack.c.l.bf16 %v360
      %v400 = vunpack.c.l.bf16 %v361
      %v401 = vunpack.c.l.bf16 %v362
      %v402 = vunpack.c.l.bf16 %v363
      %v403 = vunpack.c.l.bf16 %v364
      %v404 = vunpack.c.l.bf16 %v365
      %v405 = vunpack.c.l.bf16 %v366
      %v406 = vunpack.c.l.bf16 %v367
      %v407 = vunpack.c.l.bf16 %v368
      %v408 = vunpack.c.l.bf16 %v369
      %v409 = vunpack.c.l.bf16 %v370
      %v410 = vunpack.c.l.bf16 %v371
      %v411 = vunpack.c.l.bf16 %v372
      %v412 = vunpack.c.l.bf16 %v373
      %v413 = vld [vmem:[%s2] sm:$0xf]
      %v414 = vld [vmem:[%s2 + $0x4] sm:$0xf]
      %v415 = vld [vmem:[%s2 + $0x8] sm:$0xf]
      %v416 = vld [vmem:[%s2 + $0xc] sm:$0xf]
      %v417 = vld [vmem:[%s2 + $0x10] sm:$0xf]
      %v418 = vld [vmem:[%s2 + $0x14] sm:$0xf]
      %v419 = vld [vmem:[%s2 + $0x18] sm:$0xf]
      %v420 = vld [vmem:[%s2 + $0x1c] sm:$0xf]
      %v421 = vld [vmem:[%s2 + $0x20] sm:$0xf]
      %v422 = vld [vmem:[%s2 + $0x24] sm:$0xf]
      %v423 = vld [vmem:[%s2 + $0x28] sm:$0xf]
      %v424 = vld [vmem:[%s2 + $0x2c] sm:$0xf]
      %v425 = vld [vmem:[%s2 + $0x30] sm:$0xf]
      %v426 = vld [vmem:[%s2 + $0x34] sm:$0xf]
      %v427 = vld [vmem:[%s2 + $0x38] sm:$0xf]
      %v428 = vld [vmem:[%s2 + $0x3c] sm:$0xf]
      %v429 = vld [vmem:[%s3] sm:$0x1]
      %v431 = vperm.slane %v429, 0
      %v474 = vunpack.c.l.b16 %v335
      %v475 = vunpack.c.l.b16 %v336
      %v476 = vunpack.c.l.b16 %v337
      %v477 = vunpack.c.l.b16 %v338
      %v478 = vunpack.c.l.b16 %v339
      %v479 = vunpack.c.l.b16 %v340
      %v480 = vunpack.c.l.b16 %v341
      %v481 = vunpack.c.l.b16 %v342
      %v482 = vunpack.c.l.b16 %v343
      %v483 = vunpack.c.l.b16 %v344
      %v484 = vunpack.c.l.b16 %v345
      %v485 = vunpack.c.l.b16 %v346
      %v486 = vunpack.c.l.b16 %v347
      %v487 = vunpack.c.l.b16 %v348
      %v488 = vunpack.c.l.b16 %v349
      %v489 = vunpack.c.l.b16 %v350
      %v490 = vunpack.c.l.b16 %v351
      %v491 = vunpack.c.l.b16 %v352
      %v492 = vunpack.c.l.b16 %v353
      %v493 = vunpack.c.l.b16 %v354
      %v494 = vunpack.c.l.b16 %v355
      %v495 = vunpack.c.l.b16 %v356
      %v496 = vunpack.c.l.b16 %v357
      %v497 = vunpack.c.l.b16 %v358
      %v498 = vunpack.c.l.b16 %v359
      %v499 = vunpack.c.l.b16 %v360
      %v500 = vunpack.c.l.b16 %v361
      %v501 = vunpack.c.l.b16 %v362
      %v502 = vunpack.c.l.b16 %v363
      %v503 = vunpack.c.l.b16 %v364
      %v504 = vunpack.c.l.b16 %v365
      %v505 = vunpack.c.l.b16 %v366
      %v506 = vunpack.c.l.b16 %v367
      %v507 = vunpack.c.l.b16 %v368
      %v508 = vunpack.c.l.b16 %v369
      %v509 = vunpack.c.l.b16 %v370
      %v510 = vunpack.c.l.b16 %v371
      %v511 = vunpack.c.l.b16 %v372
      %v512 = vunpack.c.l.b16 %v373
      %v513 = vunpack.c.l.b16 %v374
      %v514 = vunpack.c.l.b16 %v375
      %v515 = vpack.c.b16 %v475, %v474
      %v516 = vpack.c.b16 %v477, %v476
      %v517 = vpack.c.b16 %v479, %v478
      %v518 = vpack.c.b16 %v481, %v480
      %v519 = vpack.c.b16 %v483, %v482
      %v520 = vpack.c.b16 %v485, %v484
      %v521 = vpack.c.b16 %v487, %v486
      %v522 = vpack.c.b16 %v489, %v488
      %v523 = vpack.c.b16 %v491, %v490
      %v524 = vpack.c.b16 %v493, %v492
      %v525 = vpack.c.b16 %v495, %v494
      %v526 = vpack.c.b16 %v497, %v496
      %v527 = vpack.c.b16 %v499, %v498
      %v528 = vpack.c.b16 %v501, %v500
      %v529 = vpack.c.b16 %v503, %v502
      %v530 = vpack.c.b16 %v505, %v504
      %v531 = vpack.c.b16 %v507, %v506
      %v532 = vpack.c.b16 %v509, %v508
      %v533 = vpack.c.b16 %v511, %v510
      %v534 = vpack.c.b16 %v513, %v512
      %v535 = vpack.c.b16 %v514, %v514
      %v573 = vunpack.c.l.b16 %v413
      %v574 = vunpack.c.l.b16 %v414
      %v575 = vunpack.c.l.b16 %v415
      %v576 = vunpack.c.l.b16 %v416
      %v577 = vunpack.c.l.b16 %v417
      %v578 = vunpack.c.l.b16 %v418
      %v579 = vunpack.c.l.b16 %v419
      %v580 = vunpack.c.l.b16 %v420
      %v581 = vunpack.c.l.b16 %v421
      %v582 = vunpack.c.l.b16 %v422
      %v583 = vunpack.c.l.b16 %v423
      %v584 = vunpack.c.l.b16 %v424
      %v585 = vunpack.c.l.b16 %v425
      %v586 = vunpack.c.l.b16 %v426
      %v587 = vunpack.c.l.b16 %v427
      %v588 = vunpack.c.l.b16 %v428
      %v589 = vpack.c.b16 %v574, %v573
      %v590 = vpack.c.b16 %v576, %v575
      %v591 = vpack.c.b16 %v578, %v577
      %v592 = vpack.c.b16 %v580, %v579
      %v593 = vpack.c.b16 %v582, %v581
      %v594 = vpack.c.b16 %v584, %v583
      %v595 = vpack.c.b16 %v586, %v585
      %v596 = vpack.c.b16 %v588, %v587
      %605 = vmatpush.bf16.msra.mxu0 %v596
      %606 = vmatpush.bf16.msra.mxu0 %v595
      %607 = vmatpush.bf16.msra.mxu0 %v594
      %608 = vmatpush.bf16.msra.mxu0 %v593
      %609 = vmatpush.bf16.msra.mxu0 %v592
      %610 = vmatpush.bf16.msra.mxu0 %v591
      %611 = vmatpush.bf16.msra.mxu0 %v590
      %612 = vmatpush.bf16.msra.mxu0 %v589
      %613 = vmatmul.bf16.gmra.mxu0 %v515
      %v614 = vpop.f32.mrf.mxu0
      %v615 = vadd.f32 %v431, %v614
      %v616 = vpop.f32.mrf.mxu0
      %v617 = vadd.f32 %v431, %v616
      %618 = vmatmul.bf16.gmra.mxu0 %v516
      %v619 = vpop.f32.mrf.mxu0
      %v620 = vadd.f32 %v431, %v619
      %v621 = vpop.f32.mrf.mxu0
      %v622 = vadd.f32 %v431, %v621
      %623 = vmatmul.bf16.gmra.mxu0 %v517
      %v624 = vpop.f32.mrf.mxu0
      %v625 = vadd.f32 %v431, %v624
      %v626 = vpop.f32.mrf.mxu0
      %v627 = vadd.f32 %v431, %v626
      %628 = vmatmul.bf16.gmra.mxu0 %v518
      %v629 = vpop.f32.mrf.mxu0
      %v630 = vadd.f32 %v431, %v629
      %v631 = vpop.f32.mrf.mxu0
      %v632 = vadd.f32 %v431, %v631
      %633 = vmatmul.bf16.gmra.mxu0 %v519
      %v634 = vpop.f32.mrf.mxu0
      %v635 = vadd.f32 %v431, %v634
      %v636 = vpop.f32.mrf.mxu0
      %v637 = vadd.f32 %v431, %v636
      %638 = vmatmul.bf16.gmra.mxu0 %v520
      %v639 = vpop.f32.mrf.mxu0
      %v640 = vadd.f32 %v431, %v639
      %v641 = vpop.f32.mrf.mxu0
      %v642 = vadd.f32 %v431, %v641
      %643 = vmatmul.bf16.gmra.mxu0 %v521
      %v644 = vpop.f32.mrf.mxu0
      %v645 = vadd.f32 %v431, %v644
      %v646 = vpop.f32.mrf.mxu0
      %v647 = vadd.f32 %v431, %v646
      %648 = vmatmul.bf16.gmra.mxu0 %v522
      %v649 = vpop.f32.mrf.mxu0
      %v650 = vadd.f32 %v431, %v649
      %v651 = vpop.f32.mrf.mxu0
      %v652 = vadd.f32 %v431, %v651
      %653 = vmatmul.bf16.gmra.mxu0 %v523
      %v654 = vpop.f32.mrf.mxu0
      %v655 = vadd.f32 %v431, %v654
      %v656 = vpop.f32.mrf.mxu0
      %v657 = vadd.f32 %v431, %v656
      %658 = vmatmul.bf16.gmra.mxu0 %v524
      %v659 = vpop.f32.mrf.mxu0
      %v660 = vadd.f32 %v431, %v659
      %v661 = vpop.f32.mrf.mxu0
      %v662 = vadd.f32 %v431, %v661
      %663 = vmatmul.bf16.gmra.mxu0 %v525
      %v664 = vpop.f32.mrf.mxu0
      %v665 = vadd.f32 %v431, %v664
      %v666 = vpop.f32.mrf.mxu0
      %v667 = vadd.f32 %v431, %v666
      %668 = vmatmul.bf16.gmra.mxu0 %v526
      %v669 = vpop.f32.mrf.mxu0
      %v670 = vadd.f32 %v431, %v669
      %v671 = vpop.f32.mrf.mxu0
      %v672 = vadd.f32 %v431, %v671
      %673 = vmatmul.bf16.gmra.mxu0 %v527
      %v674 = vpop.f32.mrf.mxu0
      %v675 = vadd.f32 %v431, %v674
      %v676 = vpop.f32.mrf.mxu0
      %v677 = vadd.f32 %v431, %v676
      %678 = vmatmul.bf16.gmra.mxu0 %v528
      %v679 = vpop.f32.mrf.mxu0
      %v680 = vadd.f32 %v431, %v679
      %v681 = vpop.f32.mrf.mxu0
      %v682 = vadd.f32 %v431, %v681
      %683 = vmatmul.bf16.gmra.mxu0 %v529
      %v684 = vpop.f32.mrf.mxu0
      %v685 = vadd.f32 %v431, %v684
      %v686 = vpop.f32.mrf.mxu0
      %v687 = vadd.f32 %v431, %v686
      %688 = vmatmul.bf16.gmra.mxu0 %v530
      %v689 = vpop.f32.mrf.mxu0
      %v690 = vadd.f32 %v431, %v689
      %v691 = vpop.f32.mrf.mxu0
      %v692 = vadd.f32 %v431, %v691
      %693 = vmatmul.bf16.gmra.mxu0 %v531
      %v694 = vpop.f32.mrf.mxu0
      %v695 = vadd.f32 %v431, %v694
      %v696 = vpop.f32.mrf.mxu0
      %v697 = vadd.f32 %v431, %v696
      %698 = vmatmul.bf16.gmra.mxu0 %v532
      %v699 = vpop.f32.mrf.mxu0
      %v700 = vadd.f32 %v431, %v699
      %v701 = vpop.f32.mrf.mxu0
      %v702 = vadd.f32 %v431, %v701
      %703 = vmatmul.bf16.gmra.mxu0 %v533
      %v704 = vpop.f32.mrf.mxu0
      %v705 = vadd.f32 %v431, %v704
      %v706 = vpop.f32.mrf.mxu0
      %v707 = vadd.f32 %v431, %v706
      %708 = vmatmul.bf16.gmra.mxu0 %v534
      %v709 = vpop.f32.mrf.mxu0
      %v710 = vadd.f32 %v431, %v709
      %v711 = vpop.f32.mrf.mxu0
      %v712 = vadd.f32 %v431, %v711
      %713 = vmatmul.bf16.gmra.mxu0 %v535
      %v714 = vpop.f32.mrf.mxu0
      %v715 = vadd.f32 %v431, %v714
      %v716 = vpop.f32.mrf.mxu0
      %717 = vdwg.mxu0
      %v718 = vand.u32 2147483647, %v615
      %v719 = vand.u32 2147483647, %v617
      %v720 = vand.u32 2147483647, %v620
      %v721 = vand.u32 2147483647, %v622
      %v722 = vand.u32 2147483647, %v625
      %v723 = vand.u32 2147483647, %v627
      %v724 = vand.u32 2147483647, %v630
      %v725 = vand.u32 2147483647, %v632
      %v726 = vand.u32 2147483647, %v635
      %v727 = vand.u32 2147483647, %v637
      %v728 = vand.u32 2147483647, %v640
      %v729 = vand.u32 2147483647, %v642
      %v730 = vand.u32 2147483647, %v645
      %v731 = vand.u32 2147483647, %v647
      %v732 = vand.u32 2147483647, %v650
      %v733 = vand.u32 2147483647, %v652
      %v734 = vand.u32 2147483647, %v655
      %v735 = vand.u32 2147483647, %v657
      %v736 = vand.u32 2147483647, %v660
      %v737 = vand.u32 2147483647, %v662
      %v738 = vand.u32 2147483647, %v665
      %v739 = vand.u32 2147483647, %v667
      %v740 = vand.u32 2147483647, %v670
      %v741 = vand.u32 2147483647, %v672
      %v742 = vand.u32 2147483647, %v675
      %v743 = vand.u32 2147483647, %v677
      %v744 = vand.u32 2147483647, %v680
      %v745 = vand.u32 2147483647, %v682
      %v746 = vand.u32 2147483647, %v685
      %v747 = vand.u32 2147483647, %v687
      %v748 = vand.u32 2147483647, %v690
      %v749 = vand.u32 2147483647, %v692
      %v750 = vand.u32 2147483647, %v695
      %v751 = vand.u32 2147483647, %v697
      %v752 = vand.u32 2147483647, %v700
      %v753 = vand.u32 2147483647, %v702
      %v754 = vand.u32 2147483647, %v705
      %v755 = vand.u32 2147483647, %v707
      %v756 = vand.u32 2147483647, %v710
      %v757 = vand.u32 2147483647, %v712
      %v758 = vand.u32 2147483647, %v715
      %v759 = vstv %s334
      %v760 = vsub.f32 %v615, %v759
      %v761 = vsub.f32 %v617, %v759
      %v762 = vsub.f32 %v620, %v759
      %v763 = vsub.f32 %v622, %v759
      %v764 = vsub.f32 %v625, %v759
      %v765 = vsub.f32 %v627, %v759
      %v766 = vsub.f32 %v630, %v759
      %v767 = vsub.f32 %v632, %v759
      %v768 = vsub.f32 %v635, %v759
      %v769 = vsub.f32 %v637, %v759
      %v770 = vsub.f32 %v640, %v759
      %v771 = vsub.f32 %v642, %v759
      %v772 = vsub.f32 %v645, %v759
      %v773 = vsub.f32 %v647, %v759
      %v774 = vsub.f32 %v650, %v759
      %v775 = vsub.f32 %v652, %v759
      %v776 = vsub.f32 %v655, %v759
      %v777 = vsub.f32 %v657, %v759
      %v778 = vsub.f32 %v660, %v759
      %v779 = vsub.f32 %v662, %v759
      %v780 = vsub.f32 %v665, %v759
      %v781 = vsub.f32 %v667, %v759
      %v782 = vsub.f32 %v670, %v759
      %v783 = vsub.f32 %v672, %v759
      %v784 = vsub.f32 %v675, %v759
      %v785 = vsub.f32 %v677, %v759
      %v786 = vsub.f32 %v680, %v759
      %v787 = vsub.f32 %v682, %v759
      %v788 = vsub.f32 %v685, %v759
      %v789 = vsub.f32 %v687, %v759
      %v790 = vsub.f32 %v690, %v759
      %v791 = vsub.f32 %v692, %v759
      %v792 = vsub.f32 %v695, %v759
      %v793 = vsub.f32 %v697, %v759
      %v794 = vsub.f32 %v700, %v759
      %v795 = vsub.f32 %v702, %v759
      %v796 = vsub.f32 %v705, %v759
      %v797 = vsub.f32 %v707, %v759
      %v798 = vsub.f32 %v710, %v759
      %v799 = vsub.f32 %v712, %v759
      %v800 = vsub.f32 %v715, %v759
      %v801 = vand.u32 2147483647, %v760
      %v802 = vand.u32 2147483647, %v761
      %v803 = vand.u32 2147483647, %v762
      %v804 = vand.u32 2147483647, %v763
      %v805 = vand.u32 2147483647, %v764
      %v806 = vand.u32 2147483647, %v765
      %v807 = vand.u32 2147483647, %v766
      %v808 = vand.u32 2147483647, %v767
      %v809 = vand.u32 2147483647, %v768
      %v810 = vand.u32 2147483647, %v769
      %v811 = vand.u32 2147483647, %v770
      %v812 = vand.u32 2147483647, %v771
      %v813 = vand.u32 2147483647, %v772
      %v814 = vand.u32 2147483647, %v773
      %v815 = vand.u32 2147483647, %v774
      %v816 = vand.u32 2147483647, %v775
      %v817 = vand.u32 2147483647, %v776
      %v818 = vand.u32 2147483647, %v777
      %v819 = vand.u32 2147483647, %v778
      %v820 = vand.u32 2147483647, %v779
      %v821 = vand.u32 2147483647, %v780
      %v822 = vand.u32 2147483647, %v781
      %v823 = vand.u32 2147483647, %v782
      %v824 = vand.u32 2147483647, %v783
      %v825 = vand.u32 2147483647, %v784
      %v826 = vand.u32 2147483647, %v785
      %v827 = vand.u32 2147483647, %v786
      %v828 = vand.u32 2147483647, %v787
      %v829 = vand.u32 2147483647, %v788
      %v830 = vand.u32 2147483647, %v789
      %v831 = vand.u32 2147483647, %v790
      %v832 = vand.u32 2147483647, %v791
      %v833 = vand.u32 2147483647, %v792
      %v834 = vand.u32 2147483647, %v793
      %v835 = vand.u32 2147483647, %v794
      %v836 = vand.u32 2147483647, %v795
      %v837 = vand.u32 2147483647, %v796
      %v838 = vand.u32 2147483647, %v797
      %v839 = vand.u32 2147483647, %v798
      %v840 = vand.u32 2147483647, %v799
      %v841 = vand.u32 2147483647, %v800
      %v842 = vsub.f32 %v718, %v801
      %v843 = vsub.f32 %v719, %v802
      %v844 = vsub.f32 %v720, %v803
      %v845 = vsub.f32 %v721, %v804
      %v846 = vsub.f32 %v722, %v805
      %v847 = vsub.f32 %v723, %v806
      %v848 = vsub.f32 %v724, %v807
      %v849 = vsub.f32 %v725, %v808
      %v850 = vsub.f32 %v726, %v809
      %v851 = vsub.f32 %v727, %v810
      %v852 = vsub.f32 %v728, %v811
      %v853 = vsub.f32 %v729, %v812
      %v854 = vsub.f32 %v730, %v813
      %v855 = vsub.f32 %v731, %v814
      %v856 = vsub.f32 %v732, %v815
      %v857 = vsub.f32 %v733, %v816
      %v858 = vsub.f32 %v734, %v817
      %v859 = vsub.f32 %v735, %v818
      %v860 = vsub.f32 %v736, %v819
      %v861 = vsub.f32 %v737, %v820
      %v862 = vsub.f32 %v738, %v821
      %v863 = vsub.f32 %v739, %v822
      %v864 = vsub.f32 %v740, %v823
      %v865 = vsub.f32 %v741, %v824
      %v866 = vsub.f32 %v742, %v825
      %v867 = vsub.f32 %v743, %v826
      %v868 = vsub.f32 %v744, %v827
      %v869 = vsub.f32 %v745, %v828
      %v870 = vsub.f32 %v746, %v829
      %v871 = vsub.f32 %v747, %v830
      %v872 = vsub.f32 %v748, %v831
      %v873 = vsub.f32 %v749, %v832
      %v874 = vsub.f32 %v750, %v833
      %v875 = vsub.f32 %v751, %v834
      %v876 = vsub.f32 %v752, %v835
      %v877 = vsub.f32 %v753, %v836
      %v878 = vsub.f32 %v754, %v837
      %v879 = vsub.f32 %v755, %v838
      %v880 = vsub.f32 %v756, %v839
      %v881 = vsub.f32 %v757, %v840
      %v882 = vsub.f32 %v758, %v841
      %v883 = vadd.f32 %v842, %v759
      %v884 = vadd.f32 %v843, %v759
      %v885 = vadd.f32 %v844, %v759
      %v886 = vadd.f32 %v845, %v759
      %v887 = vadd.f32 %v846, %v759
      %v888 = vadd.f32 %v847, %v759
      %v889 = vadd.f32 %v848, %v759
      %v890 = vadd.f32 %v849, %v759
      %v891 = vadd.f32 %v850, %v759
      %v892 = vadd.f32 %v851, %v759
      %v893 = vadd.f32 %v852, %v759
      %v894 = vadd.f32 %v853, %v759
      %v895 = vadd.f32 %v854, %v759
      %v896 = vadd.f32 %v855, %v759
      %v897 = vadd.f32 %v856, %v759
      %v898 = vadd.f32 %v857, %v759
      %v899 = vadd.f32 %v858, %v759
      %v900 = vadd.f32 %v859, %v759
      %v901 = vadd.f32 %v860, %v759
      %v902 = vadd.f32 %v861, %v759
      %v903 = vadd.f32 %v862, %v759
      %v904 = vadd.f32 %v863, %v759
      %v905 = vadd.f32 %v864, %v759
      %v906 = vadd.f32 %v865, %v759
      %v907 = vadd.f32 %v866, %v759
      %v908 = vadd.f32 %v867, %v759
      %v909 = vadd.f32 %v868, %v759
      %v910 = vadd.f32 %v869, %v759
      %v911 = vadd.f32 %v870, %v759
      %v912 = vadd.f32 %v871, %v759
      %v913 = vadd.f32 %v872, %v759
      %v914 = vadd.f32 %v873, %v759
      %v915 = vadd.f32 %v874, %v759
      %v916 = vadd.f32 %v875, %v759
      %v917 = vadd.f32 %v876, %v759
      %v918 = vadd.f32 %v877, %v759
      %v919 = vadd.f32 %v878, %v759
      %v920 = vadd.f32 %v879, %v759
      %v921 = vadd.f32 %v880, %v759
      %v922 = vadd.f32 %v881, %v759
      %v923 = vadd.f32 %v882, %v759
      %v924 = vmul.f32 %v883, 0.5
      %v925 = vmul.f32 %v884, 0.5
      %v926 = vmul.f32 %v885, 0.5
      %v927 = vmul.f32 %v886, 0.5
      %v928 = vmul.f32 %v887, 0.5
      %v929 = vmul.f32 %v888, 0.5
      %v930 = vmul.f32 %v889, 0.5
      %v931 = vmul.f32 %v890, 0.5
      %v932 = vmul.f32 %v891, 0.5
      %v933 = vmul.f32 %v892, 0.5
      %v934 = vmul.f32 %v893, 0.5
      %v935 = vmul.f32 %v894, 0.5
      %v936 = vmul.f32 %v895, 0.5
      %v937 = vmul.f32 %v896, 0.5
      %v938 = vmul.f32 %v897, 0.5
      %v939 = vmul.f32 %v898, 0.5
      %v940 = vmul.f32 %v899, 0.5
      %v941 = vmul.f32 %v900, 0.5
      %v942 = vmul.f32 %v901, 0.5
      %v943 = vmul.f32 %v902, 0.5
      %v944 = vmul.f32 %v903, 0.5
      %v945 = vmul.f32 %v904, 0.5
      %v946 = vmul.f32 %v905, 0.5
      %v947 = vmul.f32 %v906, 0.5
      %v948 = vmul.f32 %v907, 0.5
      %v949 = vmul.f32 %v908, 0.5
      %v950 = vmul.f32 %v909, 0.5
      %v951 = vmul.f32 %v910, 0.5
      %v952 = vmul.f32 %v911, 0.5
      %v953 = vmul.f32 %v912, 0.5
      %v954 = vmul.f32 %v913, 0.5
      %v955 = vmul.f32 %v914, 0.5
      %v956 = vmul.f32 %v915, 0.5
      %v957 = vmul.f32 %v916, 0.5
      %v958 = vmul.f32 %v917, 0.5
      %v959 = vmul.f32 %v918, 0.5
      %v960 = vmul.f32 %v919, 0.5
      %v961 = vmul.f32 %v920, 0.5
      %v962 = vmul.f32 %v921, 0.5
      %v963 = vmul.f32 %v922, 0.5
      %v964 = vmul.f32 %v923, 0.5
      %v965 = vmax.f32 %v924, 0.0
      %v966 = vmax.f32 %v925, 0.0
      %v967 = vmax.f32 %v926, 0.0
      %v968 = vmax.f32 %v927, 0.0
      %v969 = vmax.f32 %v928, 0.0
      %v970 = vmax.f32 %v929, 0.0
      %v971 = vmax.f32 %v930, 0.0
      %v972 = vmax.f32 %v931, 0.0
      %v973 = vmax.f32 %v932, 0.0
      %v974 = vmax.f32 %v933, 0.0
      %v975 = vmax.f32 %v934, 0.0
      %v976 = vmax.f32 %v935, 0.0
      %v977 = vmax.f32 %v936, 0.0
      %v978 = vmax.f32 %v937, 0.0
      %v979 = vmax.f32 %v938, 0.0
      %v980 = vmax.f32 %v939, 0.0
      %v981 = vmax.f32 %v940, 0.0
      %v982 = vmax.f32 %v941, 0.0
      %v983 = vmax.f32 %v942, 0.0
      %v984 = vmax.f32 %v943, 0.0
      %v985 = vmax.f32 %v944, 0.0
      %v986 = vmax.f32 %v945, 0.0
      %v987 = vmax.f32 %v946, 0.0
      %v988 = vmax.f32 %v947, 0.0
      %v989 = vmax.f32 %v948, 0.0
      %v990 = vmax.f32 %v949, 0.0
      %v991 = vmax.f32 %v950, 0.0
      %v992 = vmax.f32 %v951, 0.0
      %v993 = vmax.f32 %v952, 0.0
      %v994 = vmax.f32 %v953, 0.0
      %v995 = vmax.f32 %v954, 0.0
      %v996 = vmax.f32 %v955, 0.0
      %v997 = vmax.f32 %v956, 0.0
      %v998 = vmax.f32 %v957, 0.0
      %v999 = vmax.f32 %v958, 0.0
      %v1000 = vmax.f32 %v959, 0.0
      %v1001 = vmax.f32 %v960, 0.0
      %v1002 = vmax.f32 %v961, 0.0
      %v1003 = vmax.f32 %v962, 0.0
      %v1004 = vmax.f32 %v963, 0.0
      %v1005 = vmax.f32 %v964, 0.0
      %v1006 = vld [vmem:[%s1] sm:$0xff]
      %v1007 = vld [vmem:[%s1 + $0x8] sm:$0xff]
      %v1008 = vld [vmem:[%s1 + $0x10] sm:$0xff]
      %v1009 = vld [vmem:[%s1 + $0x18] sm:$0xff]
      %v1010 = vld [vmem:[%s1 + $0x20] sm:$0xff]
      %v1011 = vld [vmem:[%s1 + $0x28] sm:$0xff]
      %v1012 = vld [vmem:[%s1 + $0x30] sm:$0xff]
      %v1013 = vld [vmem:[%s1 + $0x38] sm:$0xff]
      %v1014 = vld [vmem:[%s1 + $0x40] sm:$0xff]
      %v1015 = vld [vmem:[%s1 + $0x48] sm:$0xff]
      %v1016 = vld [vmem:[%s1 + $0x50] sm:$0xff]
      %v1017 = vld [vmem:[%s1 + $0x58] sm:$0xff]
      %v1018 = vld [vmem:[%s1 + $0x60] sm:$0xff]
      %v1019 = vld [vmem:[%s1 + $0x68] sm:$0xff]
      %v1020 = vld [vmem:[%s1 + $0x70] sm:$0xff]
      %v1021 = vld [vmem:[%s1 + $0x78] sm:$0xff]
      %v1022 = vld [vmem:[%s1 + $0x80] sm:$0xff]
      %v1023 = vld [vmem:[%s1 + $0x88] sm:$0xff]
      %v1024 = vld [vmem:[%s1 + $0x90] sm:$0xff]
      %v1025 = vld [vmem:[%s1 + $0x98] sm:$0xff]
      %v1026 = vld [vmem:[%s1 + $0xa0] sm:$0xff]
      %v1027 = vld [vmem:[%s1 + $0xa8] sm:$0xff]
      %v1028 = vld [vmem:[%s1 + $0xb0] sm:$0xff]
      %v1029 = vld [vmem:[%s1 + $0xb8] sm:$0xff]
      %v1030 = vld [vmem:[%s1 + $0xc0] sm:$0xff]
      %v1031 = vld [vmem:[%s1 + $0xc8] sm:$0xff]
      %v1032 = vld [vmem:[%s1 + $0xd0] sm:$0xff]
      %v1033 = vld [vmem:[%s1 + $0xd8] sm:$0xff]
      %v1034 = vld [vmem:[%s1 + $0xe0] sm:$0xff]
      %v1035 = vld [vmem:[%s1 + $0xe8] sm:$0xff]
      %v1036 = vld [vmem:[%s1 + $0xf0] sm:$0xff]
      %v1037 = vld [vmem:[%s1 + $0xf8] sm:$0xff]
      %v1038 = vld [vmem:[%s1 + $0x100] sm:$0xff]
      %v1039 = vld [vmem:[%s1 + $0x108] sm:$0xff]
      %v1040 = vld [vmem:[%s1 + $0x110] sm:$0xff]
      %v1041 = vld [vmem:[%s1 + $0x118] sm:$0xff]
      %v1042 = vld [vmem:[%s1 + $0x120] sm:$0xff]
      %v1043 = vld [vmem:[%s1 + $0x128] sm:$0xff]
      %v1044 = vld [vmem:[%s1 + $0x130] sm:$0xff]
      %v1045 = vld [vmem:[%s1 + $0x138] sm:$0xff]
      %v1046 = vld [vmem:[%s1 + $0x140] sm:$0xff]
      %1048 = vset.pattern.permute.xlu0 0
      %1049 = vperm.xlu0 %1048, %v1006
      %v1050 = vpop.permute.xlu0 %1049
      %1053 = vset.pattern.permute.xlu0 0
      %1054 = vperm.xlu0 %1053, %v1007
      %v1055 = vpop.permute.xlu0 %1054
      %1058 = vset.pattern.permute.xlu0 0
      %1059 = vperm.xlu0 %1058, %v1008
      %v1060 = vpop.permute.xlu0 %1059
      %1063 = vset.pattern.permute.xlu0 0
      %1064 = vperm.xlu0 %1063, %v1009
      %v1065 = vpop.permute.xlu0 %1064
      %1068 = vset.pattern.permute.xlu0 0
      %1069 = vperm.xlu0 %1068, %v1010
      %v1070 = vpop.permute.xlu0 %1069
      %1073 = vset.pattern.permute.xlu0 0
      %1074 = vperm.xlu0 %1073, %v1011
      %v1075 = vpop.permute.xlu0 %1074
      %1078 = vset.pattern.permute.xlu0 0
      %1079 = vperm.xlu0 %1078, %v1012
      %v1080 = vpop.permute.xlu0 %1079
      %1083 = vset.pattern.permute.xlu0 0
      %1084 = vperm.xlu0 %1083, %v1013
      %v1085 = vpop.permute.xlu0 %1084
      %1088 = vset.pattern.permute.xlu0 0
      %1089 = vperm.xlu0 %1088, %v1014
      %v1090 = vpop.permute.xlu0 %1089
      %1093 = vset.pattern.permute.xlu0 0
      %1094 = vperm.xlu0 %1093, %v1015
      %v1095 = vpop.permute.xlu0 %1094
      %1098 = vset.pattern.permute.xlu0 0
      %1099 = vperm.xlu0 %1098, %v1016
      %v1100 = vpop.permute.xlu0 %1099
      %1103 = vset.pattern.permute.xlu0 0
      %1104 = vperm.xlu0 %1103, %v1017
      %v1105 = vpop.permute.xlu0 %1104
      %1108 = vset.pattern.permute.xlu0 0
      %1109 = vperm.xlu0 %1108, %v1018
      %v1110 = vpop.permute.xlu0 %1109
      %1113 = vset.pattern.permute.xlu0 0
      %1114 = vperm.xlu0 %1113, %v1019
      %v1115 = vpop.permute.xlu0 %1114
      %1118 = vset.pattern.permute.xlu0 0
      %1119 = vperm.xlu0 %1118, %v1020
      %v1120 = vpop.permute.xlu0 %1119
      %1123 = vset.pattern.permute.xlu0 0
      %1124 = vperm.xlu0 %1123, %v1021
      %v1125 = vpop.permute.xlu0 %1124
      %1128 = vset.pattern.permute.xlu0 0
      %1129 = vperm.xlu0 %1128, %v1022
      %v1130 = vpop.permute.xlu0 %1129
      %1133 = vset.pattern.permute.xlu0 0
      %1134 = vperm.xlu0 %1133, %v1023
      %v1135 = vpop.permute.xlu0 %1134
      %1138 = vset.pattern.permute.xlu0 0
      %1139 = vperm.xlu0 %1138, %v1024
      %v1140 = vpop.permute.xlu0 %1139
      %1143 = vset.pattern.permute.xlu0 0
      %1144 = vperm.xlu0 %1143, %v1025
      %v1145 = vpop.permute.xlu0 %1144
      %1148 = vset.pattern.permute.xlu0 0
      %1149 = vperm.xlu0 %1148, %v1026
      %v1150 = vpop.permute.xlu0 %1149
      %1153 = vset.pattern.permute.xlu0 0
      %1154 = vperm.xlu0 %1153, %v1027
      %v1155 = vpop.permute.xlu0 %1154
      %1158 = vset.pattern.permute.xlu0 0
      %1159 = vperm.xlu0 %1158, %v1028
      %v1160 = vpop.permute.xlu0 %1159
      %1163 = vset.pattern.permute.xlu0 0
      %1164 = vperm.xlu0 %1163, %v1029
      %v1165 = vpop.permute.xlu0 %1164
      %1168 = vset.pattern.permute.xlu0 0
      %1169 = vperm.xlu0 %1168, %v1030
      %v1170 = vpop.permute.xlu0 %1169
      %1173 = vset.pattern.permute.xlu0 0
      %1174 = vperm.xlu0 %1173, %v1031
      %v1175 = vpop.permute.xlu0 %1174
      %1178 = vset.pattern.permute.xlu0 0
      %1179 = vperm.xlu0 %1178, %v1032
      %v1180 = vpop.permute.xlu0 %1179
      %1183 = vset.pattern.permute.xlu0 0
      %1184 = vperm.xlu0 %1183, %v1033
      %v1185 = vpop.permute.xlu0 %1184
      %1188 = vset.pattern.permute.xlu0 0
      %1189 = vperm.xlu0 %1188, %v1034
      %v1190 = vpop.permute.xlu0 %1189
      %1193 = vset.pattern.permute.xlu0 0
      %1194 = vperm.xlu0 %1193, %v1035
      %v1195 = vpop.permute.xlu0 %1194
      %1198 = vset.pattern.permute.xlu0 0
      %1199 = vperm.xlu0 %1198, %v1036
      %v1200 = vpop.permute.xlu0 %1199
      %1203 = vset.pattern.permute.xlu0 0
      %1204 = vperm.xlu0 %1203, %v1037
      %v1205 = vpop.permute.xlu0 %1204
      %1208 = vset.pattern.permute.xlu0 0
      %1209 = vperm.xlu0 %1208, %v1038
      %v1210 = vpop.permute.xlu0 %1209
      %1213 = vset.pattern.permute.xlu0 0
      %1214 = vperm.xlu0 %1213, %v1039
      %v1215 = vpop.permute.xlu0 %1214
      %1218 = vset.pattern.permute.xlu0 0
      %1219 = vperm.xlu0 %1218, %v1040
      %v1220 = vpop.permute.xlu0 %1219
      %1223 = vset.pattern.permute.xlu0 0
      %1224 = vperm.xlu0 %1223, %v1041
      %v1225 = vpop.permute.xlu0 %1224
      %1228 = vset.pattern.permute.xlu0 0
      %1229 = vperm.xlu0 %1228, %v1042
      %v1230 = vpop.permute.xlu0 %1229
      %1233 = vset.pattern.permute.xlu0 0
      %1234 = vperm.xlu0 %1233, %v1043
      %v1235 = vpop.permute.xlu0 %1234
      %1238 = vset.pattern.permute.xlu0 0
      %1239 = vperm.xlu0 %1238, %v1044
      %v1240 = vpop.permute.xlu0 %1239
      %1243 = vset.pattern.permute.xlu0 0
      %1244 = vperm.xlu0 %1243, %v1045
      %v1245 = vpop.permute.xlu0 %1244
      %1248 = vset.pattern.permute.xlu0 0
      %1249 = vperm.xlu0 %1248, %v1046
      %v1250 = vpop.permute.xlu0 %1249
      %v1252 = vmul.f32 %v965, %v1050
      %v1253 = vmul.f32 %v966, %v1055
      %v1254 = vmul.f32 %v967, %v1060
      %v1255 = vmul.f32 %v968, %v1065
      %v1256 = vmul.f32 %v969, %v1070
      %v1257 = vmul.f32 %v970, %v1075
      %v1258 = vmul.f32 %v971, %v1080
      %v1259 = vmul.f32 %v972, %v1085
      %v1260 = vmul.f32 %v973, %v1090
      %v1261 = vmul.f32 %v974, %v1095
      %v1262 = vmul.f32 %v975, %v1100
      %v1263 = vmul.f32 %v976, %v1105
      %v1264 = vmul.f32 %v977, %v1110
      %v1265 = vmul.f32 %v978, %v1115
      %v1266 = vmul.f32 %v979, %v1120
      %v1267 = vmul.f32 %v980, %v1125
      %v1268 = vmul.f32 %v981, %v1130
      %v1269 = vmul.f32 %v982, %v1135
      %v1270 = vmul.f32 %v983, %v1140
      %v1271 = vmul.f32 %v984, %v1145
      %v1272 = vmul.f32 %v985, %v1150
      %v1273 = vmul.f32 %v986, %v1155
      %v1274 = vmul.f32 %v987, %v1160
      %v1275 = vmul.f32 %v988, %v1165
      %v1276 = vmul.f32 %v989, %v1170
      %v1277 = vmul.f32 %v990, %v1175
      %v1278 = vmul.f32 %v991, %v1180
      %v1279 = vmul.f32 %v992, %v1185
      %v1280 = vmul.f32 %v993, %v1190
      %v1281 = vmul.f32 %v994, %v1195
      %v1282 = vmul.f32 %v995, %v1200
      %v1283 = vmul.f32 %v996, %v1205
      %v1284 = vmul.f32 %v997, %v1210
      %v1285 = vmul.f32 %v998, %v1215
      %v1286 = vmul.f32 %v999, %v1220
      %v1287 = vmul.f32 %v1000, %v1225
      %v1288 = vmul.f32 %v1001, %v1230
      %v1289 = vmul.f32 %v1002, %v1235
      %v1290 = vmul.f32 %v1003, %v1240
      %v1291 = vmul.f32 %v1004, %v1245
      %v1292 = vmul.f32 %v1005, %v1250
      %1293 = vst [vmem:[#allocation2] sm:$0xff] %v1252
      %1294 = vst [vmem:[#allocation2 + $0x8] sm:$0xff] %v1253
      %1295 = vst [vmem:[#allocation2 + $0x10] sm:$0xff] %v1254
      %1296 = vst [vmem:[#allocation2 + $0x18] sm:$0xff] %v1255
      %1297 = vst [vmem:[#allocation2 + $0x20] sm:$0xff] %v1256
      %1298 = vst [vmem:[#allocation2 + $0x28] sm:$0xff] %v1257
      %1299 = vst [vmem:[#allocation2 + $0x30] sm:$0xff] %v1258
      %1300 = vst [vmem:[#allocation2 + $0x38] sm:$0xff] %v1259
      %1301 = vst [vmem:[#allocation2 + $0x40] sm:$0xff] %v1260
      %1302 = vst [vmem:[#allocation2 + $0x48] sm:$0xff] %v1261
      %1303 = vst [vmem:[#allocation2 + $0x50] sm:$0xff] %v1262
      %1304 = vst [vmem:[#allocation2 + $0x58] sm:$0xff] %v1263
      %1305 = vst [vmem:[#allocation2 + $0x60] sm:$0xff] %v1264
      %1306 = vst [vmem:[#allocation2 + $0x68] sm:$0xff] %v1265
      %1307 = vst [vmem:[#allocation2 + $0x70] sm:$0xff] %v1266
      %1308 = vst [vmem:[#allocation2 + $0x78] sm:$0xff] %v1267
      %1309 = vst [vmem:[#allocation2 + $0x80] sm:$0xff] %v1268
      %1310 = vst [vmem:[#allocation2 + $0x88] sm:$0xff] %v1269
      %1311 = vst [vmem:[#allocation2 + $0x90] sm:$0xff] %v1270
      %1312 = vst [vmem:[#allocation2 + $0x98] sm:$0xff] %v1271
      %1313 = vst [vmem:[#allocation2 + $0xa0] sm:$0xff] %v1272
      %1314 = vst [vmem:[#allocation2 + $0xa8] sm:$0xff] %v1273
      %1315 = vst [vmem:[#allocation2 + $0xb0] sm:$0xff] %v1274
      %1316 = vst [vmem:[#allocation2 + $0xb8] sm:$0xff] %v1275
      %1317 = vst [vmem:[#allocation2 + $0xc0] sm:$0xff] %v1276
      %1318 = vst [vmem:[#allocation2 + $0xc8] sm:$0xff] %v1277
      %1319 = vst [vmem:[#allocation2 + $0xd0] sm:$0xff] %v1278
      %1320 = vst [vmem:[#allocation2 + $0xd8] sm:$0xff] %v1279
      %1321 = vst [vmem:[#allocation2 + $0xe0] sm:$0xff] %v1280
      %1322 = vst [vmem:[#allocation2 + $0xe8] sm:$0xff] %v1281
      %1323 = vst [vmem:[#allocation2 + $0xf0] sm:$0xff] %v1282
      %1324 = vst [vmem:[#allocation2 + $0xf8] sm:$0xff] %v1283
      %1325 = vst [vmem:[#allocation2 + $0x100] sm:$0xff] %v1284
      %1326 = vst [vmem:[#allocation2 + $0x108] sm:$0xff] %v1285
      %1327 = vst [vmem:[#allocation2 + $0x110] sm:$0xff] %v1286
      %1328 = vst [vmem:[#allocation2 + $0x118] sm:$0xff] %v1287
      %1329 = vst [vmem:[#allocation2 + $0x120] sm:$0xff] %v1288
      %1330 = vst [vmem:[#allocation2 + $0x128] sm:$0xff] %v1289
      %1331 = vst [vmem:[#allocation2 + $0x130] sm:$0xff] %v1290
      %1332 = vst [vmem:[#allocation2 + $0x138] sm:$0xff] %v1291
      %1333 = vst [vmem:[#allocation2 + $0x140] sm:$0xff] %v1292
      %v1334 = vld [vmem:[#allocation2] sm:$0xff]
      %v1335 = vld [vmem:[#allocation2 + $0x8] sm:$0xff]
      %v1336 = vld [vmem:[#allocation2 + $0x10] sm:$0xff]
      %v1337 = vld [vmem:[#allocation2 + $0x18] sm:$0xff]
      %v1338 = vld [vmem:[#allocation2 + $0x20] sm:$0xff]
      %v1339 = vld [vmem:[#allocation2 + $0x28] sm:$0xff]
      %v1340 = vld [vmem:[#allocation2 + $0x30] sm:$0xff]
      %v1341 = vld [vmem:[#allocation2 + $0x38] sm:$0xff]
      %v1342 = vld [vmem:[#allocation2 + $0x40] sm:$0xff]
      %v1343 = vld [vmem:[#allocation2 + $0x48] sm:$0xff]
      %v1344 = vld [vmem:[#allocation2 + $0x50] sm:$0xff]
      %v1345 = vld [vmem:[#allocation2 + $0x58] sm:$0xff]
      %v1346 = vld [vmem:[#allocation2 + $0x60] sm:$0xff]
      %v1347 = vld [vmem:[#allocation2 + $0x68] sm:$0xff]
      %v1348 = vld [vmem:[#allocation2 + $0x70] sm:$0xff]
      %v1349 = vld [vmem:[#allocation2 + $0x78] sm:$0xff]
      %v1350 = vld [vmem:[#allocation2 + $0x80] sm:$0xff]
      %v1351 = vld [vmem:[#allocation2 + $0x88] sm:$0xff]
      %v1352 = vld [vmem:[#allocation2 + $0x90] sm:$0xff]
      %v1353 = vld [vmem:[#allocation2 + $0x98] sm:$0xff]
      %v1354 = vld [vmem:[#allocation2 + $0xa0] sm:$0xff]
      %v1355 = vld [vmem:[#allocation2 + $0xa8] sm:$0xff]
      %v1356 = vld [vmem:[#allocation2 + $0xb0] sm:$0xff]
      %v1357 = vld [vmem:[#allocation2 + $0xb8] sm:$0xff]
      %v1358 = vld [vmem:[#allocation2 + $0xc0] sm:$0xff]
      %v1359 = vld [vmem:[#allocation2 + $0xc8] sm:$0xff]
      %v1360 = vld [vmem:[#allocation2 + $0xd0] sm:$0xff]
      %v1361 = vld [vmem:[#allocation2 + $0xd8] sm:$0xff]
      %v1362 = vld [vmem:[#allocation2 + $0xe0] sm:$0xff]
      %v1363 = vld [vmem:[#allocation2 + $0xe8] sm:$0xff]
      %v1364 = vld [vmem:[#allocation2 + $0xf0] sm:$0xff]
      %v1365 = vld [vmem:[#allocation2 + $0xf8] sm:$0xff]
      %v1366 = vld [vmem:[#allocation2 + $0x100] sm:$0xff]
      %v1367 = vld [vmem:[#allocation2 + $0x108] sm:$0xff]
      %v1368 = vld [vmem:[#allocation2 + $0x110] sm:$0xff]
      %v1369 = vld [vmem:[#allocation2 + $0x118] sm:$0xff]
      %v1370 = vpack.c.bf16 %v1335, %v1334
      %v1371 = vpack.c.bf16 %v1337, %v1336
      %v1372 = vpack.c.bf16 %v1339, %v1338
      %v1373 = vpack.c.bf16 %v1341, %v1340
      %v1374 = vpack.c.bf16 %v1343, %v1342
      %v1375 = vpack.c.bf16 %v1345, %v1344
      %v1376 = vpack.c.bf16 %v1347, %v1346
      %v1377 = vpack.c.bf16 %v1349, %v1348
      %v1378 = vpack.c.bf16 %v1351, %v1350
      %v1379 = vpack.c.bf16 %v1353, %v1352
      %v1380 = vpack.c.bf16 %v1355, %v1354
      %v1381 = vpack.c.bf16 %v1357, %v1356
      %v1382 = vpack.c.bf16 %v1359, %v1358
      %v1383 = vpack.c.bf16 %v1361, %v1360
      %v1384 = vpack.c.bf16 %v1363, %v1362
      %v1385 = vpack.c.bf16 %v1365, %v1364
      %v1386 = vpack.c.bf16 %v1367, %v1366
      %v1387 = vpack.c.bf16 %v1369, %v1368
      %v1388 = vld [vmem:[%s4] sm:$0xf]
      %v1389 = vld [vmem:[%s4 + $0x4] sm:$0xf]
      %v1390 = vld [vmem:[%s4 + $0x8] sm:$0xf]
      %v1391 = vld [vmem:[%s4 + $0xc] sm:$0xf]
      %v1392 = vld [vmem:[%s4 + $0x10] sm:$0xf]
      %v1393 = vld [vmem:[%s4 + $0x14] sm:$0xf]
      %v1394 = vld [vmem:[%s4 + $0x18] sm:$0xf]
      %v1395 = vld [vmem:[%s4 + $0x1c] sm:$0xf]
      %v1396 = vld [vmem:[%s4 + $0x20] sm:$0xf]
      %v1397 = vld [vmem:[%s4 + $0x24] sm:$0xf]
      %v1398 = vld [vmem:[%s4 + $0x28] sm:$0xf]
      %v1399 = vld [vmem:[%s4 + $0x2c] sm:$0xf]
      %v1400 = vld [vmem:[%s4 + $0x30] sm:$0xf]
      %v1401 = vld [vmem:[%s4 + $0x34] sm:$0xf]
      %v1402 = vld [vmem:[%s4 + $0x38] sm:$0xf]
      %v1403 = vld [vmem:[%s4 + $0x3c] sm:$0xf]
      %v1404 = vld [vmem:[#allocation2 + $0x1] sm:$0xff]
      %v1405 = vld [vmem:[#allocation2 + $0x9] sm:$0xff]
      %v1406 = vld [vmem:[#allocation2 + $0x11] sm:$0xff]
      %v1407 = vld [vmem:[#allocation2 + $0x19] sm:$0xff]
      %v1408 = vld [vmem:[#allocation2 + $0x21] sm:$0xff]
      %v1409 = vld [vmem:[#allocation2 + $0x29] sm:$0xff]
      %v1410 = vld [vmem:[#allocation2 + $0x31] sm:$0xff]
      %v1411 = vld [vmem:[#allocation2 + $0x39] sm:$0xff]
      %v1412 = vld [vmem:[#allocation2 + $0x41] sm:$0xff]
      %v1413 = vld [vmem:[#allocation2 + $0x49] sm:$0xff]
      %v1414 = vld [vmem:[#allocation2 + $0x51] sm:$0xff]
      %v1415 = vld [vmem:[#allocation2 + $0x59] sm:$0xff]
      %v1416 = vld [vmem:[#allocation2 + $0x61] sm:$0xff]
      %v1417 = vld [vmem:[#allocation2 + $0x69] sm:$0xff]
      %v1418 = vld [vmem:[#allocation2 + $0x71] sm:$0xff]
      %v1419 = vld [vmem:[#allocation2 + $0x79] sm:$0xff]
      %v1420 = vld [vmem:[#allocation2 + $0x81] sm:$0xff]
      %v1421 = vld [vmem:[#allocation2 + $0x89] sm:$0xff]
      %v1422 = vld [vmem:[#allocation2 + $0x91] sm:$0xff]
      %v1423 = vld [vmem:[#allocation2 + $0x99] sm:$0xff]
      %v1424 = vld [vmem:[#allocation2 + $0xa1] sm:$0xff]
      %v1425 = vld [vmem:[#allocation2 + $0xa9] sm:$0xff]
      %v1426 = vld [vmem:[#allocation2 + $0xb1] sm:$0xff]
      %v1427 = vld [vmem:[#allocation2 + $0xb9] sm:$0xff]
      %v1428 = vld [vmem:[#allocation2 + $0xc1] sm:$0xff]
      %v1429 = vld [vmem:[#allocation2 + $0xc9] sm:$0xff]
      %v1430 = vld [vmem:[#allocation2 + $0xd1] sm:$0xff]
      %v1431 = vld [vmem:[#allocation2 + $0xd9] sm:$0xff]
      %v1432 = vld [vmem:[#allocation2 + $0xe1] sm:$0xff]
      %v1433 = vld [vmem:[#allocation2 + $0xe9] sm:$0xff]
      %v1434 = vld [vmem:[#allocation2 + $0xf1] sm:$0xff]
      %v1435 = vld [vmem:[#allocation2 + $0xf9] sm:$0xff]
      %v1436 = vld [vmem:[#allocation2 + $0x101] sm:$0xff]
      %v1437 = vld [vmem:[#allocation2 + $0x109] sm:$0xff]
      %v1438 = vld [vmem:[#allocation2 + $0x111] sm:$0xff]
      %v1439 = vld [vmem:[#allocation2 + $0x119] sm:$0xff]
      %v1440 = vpack.c.bf16 %v1405, %v1404
      %v1441 = vpack.c.bf16 %v1407, %v1406
      %v1442 = vpack.c.bf16 %v1409, %v1408
      %v1443 = vpack.c.bf16 %v1411, %v1410
      %v1444 = vpack.c.bf16 %v1413, %v1412
      %v1445 = vpack.c.bf16 %v1415, %v1414
      %v1446 = vpack.c.bf16 %v1417, %v1416
      %v1447 = vpack.c.bf16 %v1419, %v1418
      %v1448 = vpack.c.bf16 %v1421, %v1420
      %v1449 = vpack.c.bf16 %v1423, %v1422
      %v1450 = vpack.c.bf16 %v1425, %v1424
      %v1451 = vpack.c.bf16 %v1427, %v1426
      %v1452 = vpack.c.bf16 %v1429, %v1428
      %v1453 = vpack.c.bf16 %v1431, %v1430
      %v1454 = vpack.c.bf16 %v1433, %v1432
      %v1455 = vpack.c.bf16 %v1435, %v1434
      %v1456 = vpack.c.bf16 %v1437, %v1436
      %v1457 = vpack.c.bf16 %v1439, %v1438
      %s1458 = scalar_lea.vmem %s4, 64
      %v1459 = vld [vmem:[%s1458] sm:$0xf]
      %v1460 = vld [vmem:[%s1458 + $0x4] sm:$0xf]
      %v1461 = vld [vmem:[%s1458 + $0x8] sm:$0xf]
      %v1462 = vld [vmem:[%s1458 + $0xc] sm:$0xf]
      %v1463 = vld [vmem:[%s1458 + $0x10] sm:$0xf]
      %v1464 = vld [vmem:[%s1458 + $0x14] sm:$0xf]
      %v1465 = vld [vmem:[%s1458 + $0x18] sm:$0xf]
      %v1466 = vld [vmem:[%s1458 + $0x1c] sm:$0xf]
      %v1467 = vld [vmem:[%s1458 + $0x20] sm:$0xf]
      %v1468 = vld [vmem:[%s1458 + $0x24] sm:$0xf]
      %v1469 = vld [vmem:[%s1458 + $0x28] sm:$0xf]
      %v1470 = vld [vmem:[%s1458 + $0x2c] sm:$0xf]
      %v1471 = vld [vmem:[%s1458 + $0x30] sm:$0xf]
      %v1472 = vld [vmem:[%s1458 + $0x34] sm:$0xf]
      %v1473 = vld [vmem:[%s1458 + $0x38] sm:$0xf]
      %v1474 = vld [vmem:[%s1458 + $0x3c] sm:$0xf]
      %v1491 = vunpack.c.l.b16 %v1459
      %v1492 = vunpack.c.l.b16 %v1460
      %v1493 = vunpack.c.l.b16 %v1461
      %v1494 = vunpack.c.l.b16 %v1462
      %v1495 = vunpack.c.l.b16 %v1463
      %v1496 = vunpack.c.l.b16 %v1464
      %v1497 = vunpack.c.l.b16 %v1465
      %v1498 = vunpack.c.l.b16 %v1466
      %v1499 = vunpack.c.l.b16 %v1467
      %v1500 = vunpack.c.l.b16 %v1468
      %v1501 = vunpack.c.l.b16 %v1469
      %v1502 = vunpack.c.l.b16 %v1470
      %v1503 = vunpack.c.l.b16 %v1471
      %v1504 = vunpack.c.l.b16 %v1472
      %v1505 = vunpack.c.l.b16 %v1473
      %v1506 = vunpack.c.l.b16 %v1474
      %v1507 = vpack.c.b16 %v1492, %v1491
      %v1508 = vpack.c.b16 %v1494, %v1493
      %v1509 = vpack.c.b16 %v1496, %v1495
      %v1510 = vpack.c.b16 %v1498, %v1497
      %v1511 = vpack.c.b16 %v1500, %v1499
      %v1512 = vpack.c.b16 %v1502, %v1501
      %v1513 = vpack.c.b16 %v1504, %v1503
      %v1514 = vpack.c.b16 %v1506, %v1505
      %1523 = vmatpush.bf16.msra.mxu0 %v1514
      %1524 = vmatpush.bf16.msra.mxu0 %v1513
      %1525 = vmatpush.bf16.msra.mxu0 %v1512
      %1526 = vmatpush.bf16.msra.mxu0 %v1511
      %1527 = vmatpush.bf16.msra.mxu0 %v1510
      %1528 = vmatpush.bf16.msra.mxu0 %v1509
      %1529 = vmatpush.bf16.msra.mxu0 %v1508
      %1530 = vmatpush.bf16.msra.mxu0 %v1507
      %1531 = vmatmul.bf16.gmra.mxu0 %v1440
      %v1532 = vpop.f32.mrf.mxu0
      %v1533 = vadd.f32 0.0, %v1532
      %v1534 = vpop.f32.mrf.mxu0
      %v1535 = vadd.f32 0.0, %v1534
      %1536 = vmatmul.bf16.gmra.mxu0 %v1441
      %v1537 = vpop.f32.mrf.mxu0
      %v1538 = vadd.f32 0.0, %v1537
      %v1539 = vpop.f32.mrf.mxu0
      %v1540 = vadd.f32 0.0, %v1539
      %1541 = vmatmul.bf16.gmra.mxu0 %v1442
      %v1542 = vpop.f32.mrf.mxu0
      %v1543 = vadd.f32 0.0, %v1542
      %v1544 = vpop.f32.mrf.mxu0
      %v1545 = vadd.f32 0.0, %v1544
      %1546 = vmatmul.bf16.gmra.mxu0 %v1443
      %v1547 = vpop.f32.mrf.mxu0
      %v1548 = vadd.f32 0.0, %v1547
      %v1549 = vpop.f32.mrf.mxu0
      %v1550 = vadd.f32 0.0, %v1549
      %1551 = vmatmul.bf16.gmra.mxu0 %v1444
      %v1552 = vpop.f32.mrf.mxu0
      %v1553 = vadd.f32 0.0, %v1552
      %v1554 = vpop.f32.mrf.mxu0
      %v1555 = vadd.f32 0.0, %v1554
      %1556 = vmatmul.bf16.gmra.mxu0 %v1445
      %v1557 = vpop.f32.mrf.mxu0
      %v1558 = vadd.f32 0.0, %v1557
      %v1559 = vpop.f32.mrf.mxu0
      %v1560 = vadd.f32 0.0, %v1559
      %1561 = vmatmul.bf16.gmra.mxu0 %v1446
      %v1562 = vpop.f32.mrf.mxu0
      %v1563 = vadd.f32 0.0, %v1562
      %v1564 = vpop.f32.mrf.mxu0
      %v1565 = vadd.f32 0.0, %v1564
      %1566 = vmatmul.bf16.gmra.mxu0 %v1447
      %v1567 = vpop.f32.mrf.mxu0
      %v1568 = vadd.f32 0.0, %v1567
      %v1569 = vpop.f32.mrf.mxu0
      %v1570 = vadd.f32 0.0, %v1569
      %1571 = vmatmul.bf16.gmra.mxu0 %v1448
      %v1572 = vpop.f32.mrf.mxu0
      %v1573 = vadd.f32 0.0, %v1572
      %v1574 = vpop.f32.mrf.mxu0
      %v1575 = vadd.f32 0.0, %v1574
      %1576 = vmatmul.bf16.gmra.mxu0 %v1449
      %v1577 = vpop.f32.mrf.mxu0
      %v1578 = vadd.f32 0.0, %v1577
      %v1579 = vpop.f32.mrf.mxu0
      %v1580 = vadd.f32 0.0, %v1579
      %1581 = vmatmul.bf16.gmra.mxu0 %v1450
      %v1582 = vpop.f32.mrf.mxu0
      %v1583 = vadd.f32 0.0, %v1582
      %v1584 = vpop.f32.mrf.mxu0
      %v1585 = vadd.f32 0.0, %v1584
      %1586 = vmatmul.bf16.gmra.mxu0 %v1451
      %v1587 = vpop.f32.mrf.mxu0
      %v1588 = vadd.f32 0.0, %v1587
      %v1589 = vpop.f32.mrf.mxu0
      %v1590 = vadd.f32 0.0, %v1589
      %1591 = vmatmul.bf16.gmra.mxu0 %v1452
      %v1592 = vpop.f32.mrf.mxu0
      %v1593 = vadd.f32 0.0, %v1592
      %v1594 = vpop.f32.mrf.mxu0
      %v1595 = vadd.f32 0.0, %v1594
      %1596 = vmatmul.bf16.gmra.mxu0 %v1453
      %v1597 = vpop.f32.mrf.mxu0
      %v1598 = vadd.f32 0.0, %v1597
      %v1599 = vpop.f32.mrf.mxu0
      %v1600 = vadd.f32 0.0, %v1599
      %1601 = vmatmul.bf16.gmra.mxu0 %v1454
      %v1602 = vpop.f32.mrf.mxu0
      %v1603 = vadd.f32 0.0, %v1602
      %v1604 = vpop.f32.mrf.mxu0
      %v1605 = vadd.f32 0.0, %v1604
      %1606 = vmatmul.bf16.gmra.mxu0 %v1455
      %v1607 = vpop.f32.mrf.mxu0
      %v1608 = vadd.f32 0.0, %v1607
      %v1609 = vpop.f32.mrf.mxu0
      %v1610 = vadd.f32 0.0, %v1609
      %1611 = vmatmul.bf16.gmra.mxu0 %v1456
      %v1612 = vpop.f32.mrf.mxu0
      %v1613 = vadd.f32 0.0, %v1612
      %v1614 = vpop.f32.mrf.mxu0
      %v1615 = vadd.f32 0.0, %v1614
      %1616 = vmatmul.bf16.gmra.mxu0 %v1457
      %v1617 = vpop.f32.mrf.mxu0
      %v1618 = vadd.f32 0.0, %v1617
      %v1619 = vpop.f32.mrf.mxu0
      %v1620 = vadd.f32 0.0, %v1619
      %1621 = vdwg.mxu0
      %v1638 = vunpack.c.l.b16 %v1388
      %v1639 = vunpack.c.l.b16 %v1389
      %v1640 = vunpack.c.l.b16 %v1390
      %v1641 = vunpack.c.l.b16 %v1391
      %v1642 = vunpack.c.l.b16 %v1392
      %v1643 = vunpack.c.l.b16 %v1393
      %v1644 = vunpack.c.l.b16 %v1394
      %v1645 = vunpack.c.l.b16 %v1395
      %v1646 = vunpack.c.l.b16 %v1396
      %v1647 = vunpack.c.l.b16 %v1397
      %v1648 = vunpack.c.l.b16 %v1398
      %v1649 = vunpack.c.l.b16 %v1399
      %v1650 = vunpack.c.l.b16 %v1400
      %v1651 = vunpack.c.l.b16 %v1401
      %v1652 = vunpack.c.l.b16 %v1402
      %v1653 = vunpack.c.l.b16 %v1403
      %v1654 = vpack.c.b16 %v1639, %v1638
      %v1655 = vpack.c.b16 %v1641, %v1640
      %v1656 = vpack.c.b16 %v1643, %v1642
      %v1657 = vpack.c.b16 %v1645, %v1644
      %v1658 = vpack.c.b16 %v1647, %v1646
      %v1659 = vpack.c.b16 %v1649, %v1648
      %v1660 = vpack.c.b16 %v1651, %v1650
      %v1661 = vpack.c.b16 %v1653, %v1652
      %1670 = vmatpush.bf16.msra.mxu0 %v1661
      %1671 = vmatpush.bf16.msra.mxu0 %v1660
      %1672 = vmatpush.bf16.msra.mxu0 %v1659
      %1673 = vmatpush.bf16.msra.mxu0 %v1658
      %1674 = vmatpush.bf16.msra.mxu0 %v1657
      %1675 = vmatpush.bf16.msra.mxu0 %v1656
      %1676 = vmatpush.bf16.msra.mxu0 %v1655
      %1677 = vmatpush.bf16.msra.mxu0 %v1654
      %1678 = vmatmul.bf16.gmra.mxu0 %v1370
      %v1679 = vpop.f32.mrf.mxu0
      %v1680 = vadd.f32 %v1533, %v1679
      %v1681 = vpop.f32.mrf.mxu0
      %v1682 = vadd.f32 %v1535, %v1681
      %1683 = vmatmul.bf16.gmra.mxu0 %v1371
      %v1684 = vpop.f32.mrf.mxu0
      %v1685 = vadd.f32 %v1538, %v1684
      %v1686 = vpop.f32.mrf.mxu0
      %v1687 = vadd.f32 %v1540, %v1686
      %1688 = vmatmul.bf16.gmra.mxu0 %v1372
      %v1689 = vpop.f32.mrf.mxu0
      %v1690 = vadd.f32 %v1543, %v1689
      %v1691 = vpop.f32.mrf.mxu0
      %v1692 = vadd.f32 %v1545, %v1691
      %1693 = vmatmul.bf16.gmra.mxu0 %v1373
      %v1694 = vpop.f32.mrf.mxu0
      %v1695 = vadd.f32 %v1548, %v1694
      %v1696 = vpop.f32.mrf.mxu0
      %v1697 = vadd.f32 %v1550, %v1696
      %1698 = vmatmul.bf16.gmra.mxu0 %v1374
      %v1699 = vpop.f32.mrf.mxu0
      %v1700 = vadd.f32 %v1553, %v1699
      %v1701 = vpop.f32.mrf.mxu0
      %v1702 = vadd.f32 %v1555, %v1701
      %1703 = vmatmul.bf16.gmra.mxu0 %v1375
      %v1704 = vpop.f32.mrf.mxu0
      %v1705 = vadd.f32 %v1558, %v1704
      %v1706 = vpop.f32.mrf.mxu0
      %v1707 = vadd.f32 %v1560, %v1706
      %1708 = vmatmul.bf16.gmra.mxu0 %v1376
      %v1709 = vpop.f32.mrf.mxu0
      %v1710 = vadd.f32 %v1563, %v1709
      %v1711 = vpop.f32.mrf.mxu0
      %v1712 = vadd.f32 %v1565, %v1711
      %1713 = vmatmul.bf16.gmra.mxu0 %v1377
      %v1714 = vpop.f32.mrf.mxu0
      %v1715 = vadd.f32 %v1568, %v1714
      %v1716 = vpop.f32.mrf.mxu0
      %v1717 = vadd.f32 %v1570, %v1716
      %1718 = vmatmul.bf16.gmra.mxu0 %v1378
      %v1719 = vpop.f32.mrf.mxu0
      %v1720 = vadd.f32 %v1573, %v1719
      %v1721 = vpop.f32.mrf.mxu0
      %v1722 = vadd.f32 %v1575, %v1721
      %1723 = vmatmul.bf16.gmra.mxu0 %v1379
      %v1724 = vpop.f32.mrf.mxu0
      %v1725 = vadd.f32 %v1578, %v1724
      %v1726 = vpop.f32.mrf.mxu0
      %v1727 = vadd.f32 %v1580, %v1726
      %1728 = vmatmul.bf16.gmra.mxu0 %v1380
      %v1729 = vpop.f32.mrf.mxu0
      %v1730 = vadd.f32 %v1583, %v1729
      %v1731 = vpop.f32.mrf.mxu0
      %v1732 = vadd.f32 %v1585, %v1731
      %1733 = vmatmul.bf16.gmra.mxu0 %v1381
      %v1734 = vpop.f32.mrf.mxu0
      %v1735 = vadd.f32 %v1588, %v1734
      %v1736 = vpop.f32.mrf.mxu0
      %v1737 = vadd.f32 %v1590, %v1736
      %1738 = vmatmul.bf16.gmra.mxu0 %v1382
      %v1739 = vpop.f32.mrf.mxu0
      %v1740 = vadd.f32 %v1593, %v1739
      %v1741 = vpop.f32.mrf.mxu0
      %v1742 = vadd.f32 %v1595, %v1741
      %1743 = vmatmul.bf16.gmra.mxu0 %v1383
      %v1744 = vpop.f32.mrf.mxu0
      %v1745 = vadd.f32 %v1598, %v1744
      %v1746 = vpop.f32.mrf.mxu0
      %v1747 = vadd.f32 %v1600, %v1746
      %1748 = vmatmul.bf16.gmra.mxu0 %v1384
      %v1749 = vpop.f32.mrf.mxu0
      %v1750 = vadd.f32 %v1603, %v1749
      %v1751 = vpop.f32.mrf.mxu0
      %v1752 = vadd.f32 %v1605, %v1751
      %1753 = vmatmul.bf16.gmra.mxu0 %v1385
      %v1754 = vpop.f32.mrf.mxu0
      %v1755 = vadd.f32 %v1608, %v1754
      %v1756 = vpop.f32.mrf.mxu0
      %v1757 = vadd.f32 %v1610, %v1756
      %1758 = vmatmul.bf16.gmra.mxu0 %v1386
      %v1759 = vpop.f32.mrf.mxu0
      %v1760 = vadd.f32 %v1613, %v1759
      %v1761 = vpop.f32.mrf.mxu0
      %v1762 = vadd.f32 %v1615, %v1761
      %1763 = vmatmul.bf16.gmra.mxu0 %v1387
      %v1764 = vpop.f32.mrf.mxu0
      %v1765 = vadd.f32 %v1618, %v1764
      %v1766 = vpop.f32.mrf.mxu0
      %v1767 = vadd.f32 %v1620, %v1766
      %1768 = vdwg.mxu0
      %v1769 = vld [vmem:[#allocation2 + $0x2] sm:$0xff]
      %v1770 = vld [vmem:[#allocation2 + $0xa] sm:$0xff]
      %v1771 = vld [vmem:[#allocation2 + $0x12] sm:$0xff]
      %v1772 = vld [vmem:[#allocation2 + $0x1a] sm:$0xff]
      %v1773 = vld [vmem:[#allocation2 + $0x22] sm:$0xff]
      %v1774 = vld [vmem:[#allocation2 + $0x2a] sm:$0xff]
      %v1775 = vld [vmem:[#allocation2 + $0x32] sm:$0xff]
      %v1776 = vld [vmem:[#allocation2 + $0x3a] sm:$0xff]
      %v1777 = vld [vmem:[#allocation2 + $0x42] sm:$0xff]
      %v1778 = vld [vmem:[#allocation2 + $0x4a] sm:$0xff]
      %v1779 = vld [vmem:[#allocation2 + $0x52] sm:$0xff]
      %v1780 = vld [vmem:[#allocation2 + $0x5a] sm:$0xff]
      %v1781 = vld [vmem:[#allocation2 + $0x62] sm:$0xff]
      %v1782 = vld [vmem:[#allocation2 + $0x6a] sm:$0xff]
      %v1783 = vld [vmem:[#allocation2 + $0x72] sm:$0xff]
      %v1784 = vld [vmem:[#allocation2 + $0x7a] sm:$0xff]
      %v1785 = vld [vmem:[#allocation2 + $0x82] sm:$0xff]
      %v1786 = vld [vmem:[#allocation2 + $0x8a] sm:$0xff]
      %v1787 = vld [vmem:[#allocation2 + $0x92] sm:$0xff]
      %v1788 = vld [vmem:[#allocation2 + $0x9a] sm:$0xff]
      %v1789 = vld [vmem:[#allocation2 + $0xa2] sm:$0xff]
      %v1790 = vld [vmem:[#allocation2 + $0xaa] sm:$0xff]
      %v1791 = vld [vmem:[#allocation2 + $0xb2] sm:$0xff]
      %v1792 = vld [vmem:[#allocation2 + $0xba] sm:$0xff]
      %v1793 = vld [vmem:[#allocation2 + $0xc2] sm:$0xff]
      %v1794 = vld [vmem:[#allocation2 + $0xca] sm:$0xff]
      %v1795 = vld [vmem:[#allocation2 + $0xd2] sm:$0xff]
      %v1796 = vld [vmem:[#allocation2 + $0xda] sm:$0xff]
      %v1797 = vld [vmem:[#allocation2 + $0xe2] sm:$0xff]
      %v1798 = vld [vmem:[#allocation2 + $0xea] sm:$0xff]
      %v1799 = vld [vmem:[#allocation2 + $0xf2] sm:$0xff]
      %v1800 = vld [vmem:[#allocation2 + $0xfa] sm:$0xff]
      %v1801 = vld [vmem:[#allocation2 + $0x102] sm:$0xff]
      %v1802 = vld [vmem:[#allocation2 + $0x10a] sm:$0xff]
      %v1803 = vld [vmem:[#allocation2 + $0x112] sm:$0xff]
      %v1804 = vld [vmem:[#allocation2 + $0x11a] sm:$0xff]
      %v1805 = vpack.c.bf16 %v1770, %v1769
      %v1806 = vpack.c.bf16 %v1772, %v1771
      %v1807 = vpack.c.bf16 %v1774, %v1773
      %v1808 = vpack.c.bf16 %v1776, %v1775
      %v1809 = vpack.c.bf16 %v1778, %v1777
      %v1810 = vpack.c.bf16 %v1780, %v1779
      %v1811 = vpack.c.bf16 %v1782, %v1781
      %v1812 = vpack.c.bf16 %v1784, %v1783
      %v1813 = vpack.c.bf16 %v1786, %v1785
      %v1814 = vpack.c.bf16 %v1788, %v1787
      %v1815 = vpack.c.bf16 %v1790, %v1789
      %v1816 = vpack.c.bf16 %v1792, %v1791
      %v1817 = vpack.c.bf16 %v1794, %v1793
      %v1818 = vpack.c.bf16 %v1796, %v1795
      %v1819 = vpack.c.bf16 %v1798, %v1797
      %v1820 = vpack.c.bf16 %v1800, %v1799
      %v1821 = vpack.c.bf16 %v1802, %v1801
      %v1822 = vpack.c.bf16 %v1804, %v1803
      %s1823 = scalar_lea.vmem %s4, 128
      %v1824 = vld [vmem:[%s1823] sm:$0xf]
      %v1825 = vld [vmem:[%s1823 + $0x4] sm:$0xf]
      %v1826 = vld [vmem:[%s1823 + $0x8] sm:$0xf]
      %v1827 = vld [vmem:[%s1823 + $0xc] sm:$0xf]
      %v1828 = vld [vmem:[%s1823 + $0x10] sm:$0xf]
      %v1829 = vld [vmem:[%s1823 + $0x14] sm:$0xf]
      %v1830 = vld [vmem:[%s1823 + $0x18] sm:$0xf]
      %v1831 = vld [vmem:[%s1823 + $0x1c] sm:$0xf]
      %v1832 = vld [vmem:[%s1823 + $0x20] sm:$0xf]
      %v1833 = vld [vmem:[%s1823 + $0x24] sm:$0xf]
      %v1834 = vld [vmem:[%s1823 + $0x28] sm:$0xf]
      %v1835 = vld [vmem:[%s1823 + $0x2c] sm:$0xf]
      %v1836 = vld [vmem:[%s1823 + $0x30] sm:$0xf]
      %v1837 = vld [vmem:[%s1823 + $0x34] sm:$0xf]
      %v1838 = vld [vmem:[%s1823 + $0x38] sm:$0xf]
      %v1839 = vld [vmem:[%s1823 + $0x3c] sm:$0xf]
      %v1856 = vunpack.c.l.b16 %v1824
      %v1857 = vunpack.c.l.b16 %v1825
      %v1858 = vunpack.c.l.b16 %v1826
      %v1859 = vunpack.c.l.b16 %v1827
      %v1860 = vunpack.c.l.b16 %v1828
      %v1861 = vunpack.c.l.b16 %v1829
      %v1862 = vunpack.c.l.b16 %v1830
      %v1863 = vunpack.c.l.b16 %v1831
      %v1864 = vunpack.c.l.b16 %v1832
      %v1865 = vunpack.c.l.b16 %v1833
      %v1866 = vunpack.c.l.b16 %v1834
      %v1867 = vunpack.c.l.b16 %v1835
      %v1868 = vunpack.c.l.b16 %v1836
      %v1869 = vunpack.c.l.b16 %v1837
      %v1870 = vunpack.c.l.b16 %v1838
      %v1871 = vunpack.c.l.b16 %v1839
      %v1872 = vpack.c.b16 %v1857, %v1856
      %v1873 = vpack.c.b16 %v1859, %v1858
      %v1874 = vpack.c.b16 %v1861, %v1860
      %v1875 = vpack.c.b16 %v1863, %v1862
      %v1876 = vpack.c.b16 %v1865, %v1864
      %v1877 = vpack.c.b16 %v1867, %v1866
      %v1878 = vpack.c.b16 %v1869, %v1868
      %v1879 = vpack.c.b16 %v1871, %v1870
      %1888 = vmatpush.bf16.msra.mxu0 %v1879
      %1889 = vmatpush.bf16.msra.mxu0 %v1878
      %1890 = vmatpush.bf16.msra.mxu0 %v1877
      %1891 = vmatpush.bf16.msra.mxu0 %v1876
      %1892 = vmatpush.bf16.msra.mxu0 %v1875
      %1893 = vmatpush.bf16.msra.mxu0 %v1874
      %1894 = vmatpush.bf16.msra.mxu0 %v1873
      %1895 = vmatpush.bf16.msra.mxu0 %v1872
      %1896 = vmatmul.bf16.gmra.mxu0 %v1805
      %v1897 = vpop.f32.mrf.mxu0
      %v1898 = vadd.f32 0.0, %v1897
      %v1899 = vpop.f32.mrf.mxu0
      %v1900 = vadd.f32 0.0, %v1899
      %1901 = vmatmul.bf16.gmra.mxu0 %v1806
      %v1902 = vpop.f32.mrf.mxu0
      %v1903 = vadd.f32 0.0, %v1902
      %v1904 = vpop.f32.mrf.mxu0
      %v1905 = vadd.f32 0.0, %v1904
      %1906 = vmatmul.bf16.gmra.mxu0 %v1807
      %v1907 = vpop.f32.mrf.mxu0
      %v1908 = vadd.f32 0.0, %v1907
      %v1909 = vpop.f32.mrf.mxu0
      %v1910 = vadd.f32 0.0, %v1909
      %1911 = vmatmul.bf16.gmra.mxu0 %v1808
      %v1912 = vpop.f32.mrf.mxu0
      %v1913 = vadd.f32 0.0, %v1912
      %v1914 = vpop.f32.mrf.mxu0
      %v1915 = vadd.f32 0.0, %v1914
      %1916 = vmatmul.bf16.gmra.mxu0 %v1809
      %v1917 = vpop.f32.mrf.mxu0
      %v1918 = vadd.f32 0.0, %v1917
      %v1919 = vpop.f32.mrf.mxu0
      %v1920 = vadd.f32 0.0, %v1919
      %1921 = vmatmul.bf16.gmra.mxu0 %v1810
      %v1922 = vpop.f32.mrf.mxu0
      %v1923 = vadd.f32 0.0, %v1922
      %v1924 = vpop.f32.mrf.mxu0
      %v1925 = vadd.f32 0.0, %v1924
      %1926 = vmatmul.bf16.gmra.mxu0 %v1811
      %v1927 = vpop.f32.mrf.mxu0
      %v1928 = vadd.f32 0.0, %v1927
      %v1929 = vpop.f32.mrf.mxu0
      %v1930 = vadd.f32 0.0, %v1929
      %1931 = vmatmul.bf16.gmra.mxu0 %v1812
      %v1932 = vpop.f32.mrf.mxu0
      %v1933 = vadd.f32 0.0, %v1932
      %v1934 = vpop.f32.mrf.mxu0
      %v1935 = vadd.f32 0.0, %v1934
      %1936 = vmatmul.bf16.gmra.mxu0 %v1813
      %v1937 = vpop.f32.mrf.mxu0
      %v1938 = vadd.f32 0.0, %v1937
      %v1939 = vpop.f32.mrf.mxu0
      %v1940 = vadd.f32 0.0, %v1939
      %1941 = vmatmul.bf16.gmra.mxu0 %v1814
      %v1942 = vpop.f32.mrf.mxu0
      %v1943 = vadd.f32 0.0, %v1942
      %v1944 = vpop.f32.mrf.mxu0
      %v1945 = vadd.f32 0.0, %v1944
      %1946 = vmatmul.bf16.gmra.mxu0 %v1815
      %v1947 = vpop.f32.mrf.mxu0
      %v1948 = vadd.f32 0.0, %v1947
      %v1949 = vpop.f32.mrf.mxu0
      %v1950 = vadd.f32 0.0, %v1949
      %1951 = vmatmul.bf16.gmra.mxu0 %v1816
      %v1952 = vpop.f32.mrf.mxu0
      %v1953 = vadd.f32 0.0, %v1952
      %v1954 = vpop.f32.mrf.mxu0
      %v1955 = vadd.f32 0.0, %v1954
      %1956 = vmatmul.bf16.gmra.mxu0 %v1817
      %v1957 = vpop.f32.mrf.mxu0
      %v1958 = vadd.f32 0.0, %v1957
      %v1959 = vpop.f32.mrf.mxu0
      %v1960 = vadd.f32 0.0, %v1959
      %1961 = vmatmul.bf16.gmra.mxu0 %v1818
      %v1962 = vpop.f32.mrf.mxu0
      %v1963 = vadd.f32 0.0, %v1962
      %v1964 = vpop.f32.mrf.mxu0
      %v1965 = vadd.f32 0.0, %v1964
      %1966 = vmatmul.bf16.gmra.mxu0 %v1819
      %v1967 = vpop.f32.mrf.mxu0
      %v1968 = vadd.f32 0.0, %v1967
      %v1969 = vpop.f32.mrf.mxu0
      %v1970 = vadd.f32 0.0, %v1969
      %1971 = vmatmul.bf16.gmra.mxu0 %v1820
      %v1972 = vpop.f32.mrf.mxu0
      %v1973 = vadd.f32 0.0, %v1972
      %v1974 = vpop.f32.mrf.mxu0
      %v1975 = vadd.f32 0.0, %v1974
      %1976 = vmatmul.bf16.gmra.mxu0 %v1821
      %v1977 = vpop.f32.mrf.mxu0
      %v1978 = vadd.f32 0.0, %v1977
      %v1979 = vpop.f32.mrf.mxu0
      %v1980 = vadd.f32 0.0, %v1979
      %1981 = vmatmul.bf16.gmra.mxu0 %v1822
      %v1982 = vpop.f32.mrf.mxu0
      %v1983 = vadd.f32 0.0, %v1982
      %v1984 = vpop.f32.mrf.mxu0
      %v1985 = vadd.f32 0.0, %v1984
      %1986 = vdwg.mxu0
      %v1987 = vadd.f32 %v1680, %v1898
      %v1988 = vadd.f32 %v1682, %v1900
      %v1989 = vadd.f32 %v1685, %v1903
      %v1990 = vadd.f32 %v1687, %v1905
      %v1991 = vadd.f32 %v1690, %v1908
      %v1992 = vadd.f32 %v1692, %v1910
      %v1993 = vadd.f32 %v1695, %v1913
      %v1994 = vadd.f32 %v1697, %v1915
      %v1995 = vadd.f32 %v1700, %v1918
      %v1996 = vadd.f32 %v1702, %v1920
      %v1997 = vadd.f32 %v1705, %v1923
      %v1998 = vadd.f32 %v1707, %v1925
      %v1999 = vadd.f32 %v1710, %v1928
      %v2000 = vadd.f32 %v1712, %v1930
      %v2001 = vadd.f32 %v1715, %v1933
      %v2002 = vadd.f32 %v1717, %v1935
      %v2003 = vadd.f32 %v1720, %v1938
      %v2004 = vadd.f32 %v1722, %v1940
      %v2005 = vadd.f32 %v1725, %v1943
      %v2006 = vadd.f32 %v1727, %v1945
      %v2007 = vadd.f32 %v1730, %v1948
      %v2008 = vadd.f32 %v1732, %v1950
      %v2009 = vadd.f32 %v1735, %v1953
      %v2010 = vadd.f32 %v1737, %v1955
      %v2011 = vadd.f32 %v1740, %v1958
      %v2012 = vadd.f32 %v1742, %v1960
      %v2013 = vadd.f32 %v1745, %v1963
      %v2014 = vadd.f32 %v1747, %v1965
      %v2015 = vadd.f32 %v1750, %v1968
      %v2016 = vadd.f32 %v1752, %v1970
      %v2017 = vadd.f32 %v1755, %v1973
      %v2018 = vadd.f32 %v1757, %v1975
      %v2019 = vadd.f32 %v1760, %v1978
      %v2020 = vadd.f32 %v1762, %v1980
      %v2021 = vadd.f32 %v1765, %v1983
      %v2022 = vadd.f32 %v1767, %v1985
      %v2023 = vld [vmem:[#allocation2 + $0x12] sm:$0xff]
      %v2024 = vld [vmem:[#allocation2 + $0x1a] sm:$0xff]
      %v2025 = vld [vmem:[#allocation2 + $0x22] sm:$0xff]
      %v2026 = vld [vmem:[#allocation2 + $0x2a] sm:$0xff]
      %v2027 = vld [vmem:[#allocation2 + $0x32] sm:$0xff]
      %v2028 = vld [vmem:[#allocation2 + $0x3a] sm:$0xff]
      %v2029 = vld [vmem:[#allocation2 + $0x42] sm:$0xff]
      %v2030 = vld [vmem:[#allocation2 + $0x4a] sm:$0xff]
      %v2031 = vld [vmem:[#allocation2 + $0x52] sm:$0xff]
      %v2032 = vld [vmem:[#allocation2 + $0x5a] sm:$0xff]
      %v2033 = vld [vmem:[#allocation2 + $0x62] sm:$0xff]
      %v2034 = vld [vmem:[#allocation2 + $0x6a] sm:$0xff]
      %v2035 = vld [vmem:[#allocation2 + $0x72] sm:$0xff]
      %v2036 = vld [vmem:[#allocation2 + $0x7a] sm:$0xff]
      %v2037 = vld [vmem:[#allocation2 + $0x82] sm:$0xff]
      %v2038 = vld [vmem:[#allocation2 + $0x8a] sm:$0xff]
      %v2039 = vld [vmem:[#allocation2 + $0x92] sm:$0xff]
      %v2040 = vld [vmem:[#allocation2 + $0x9a] sm:$0xff]
      %v2041 = vld [vmem:[#allocation2 + $0xa2] sm:$0xff]
      %v2042 = vld [vmem:[#allocation2 + $0xaa] sm:$0xff]
      %v2043 = vld [vmem:[#allocation2 + $0xb2] sm:$0xff]
      %v2044 = vld [vmem:[#allocation2 + $0xba] sm:$0xff]
      %v2045 = vld [vmem:[#allocation2 + $0xc2] sm:$0xff]
      %v2046 = vld [vmem:[#allocation2 + $0xca] sm:$0xff]
      %v2047 = vld [vmem:[#allocation2 + $0xd2] sm:$0xff]
      %v2048 = vld [vmem:[#allocation2 + $0xda] sm:$0xff]
      %v2049 = vld [vmem:[#allocation2 + $0xe2] sm:$0xff]
      %v2050 = vld [vmem:[#allocation2 + $0xea] sm:$0xff]
      %v2051 = vld [vmem:[#allocation2 + $0xf2] sm:$0xff]
      %v2052 = vld [vmem:[#allocation2 + $0xfa] sm:$0xff]
      %v2053 = vld [vmem:[#allocation2 + $0x102] sm:$0xff]
      %v2054 = vld [vmem:[#allocation2 + $0x10a] sm:$0xff]
      %v2055 = vld [vmem:[#allocation2 + $0x112] sm:$0xff]
      %v2056 = vld [vmem:[#allocation2 + $0x11a] sm:$0xff]
      %v2057 = vld [vmem:[#allocation2 + $0x122] sm:$0xff]
      %v2058 = vld [vmem:[#allocation2 + $0x12a] sm:$0xff]
      %v2059 = vpack.c.bf16 %v2024, %v2023
      %v2060 = vpack.c.bf16 %v2026, %v2025
      %v2061 = vpack.c.bf16 %v2028, %v2027
      %v2062 = vpack.c.bf16 %v2030, %v2029
      %v2063 = vpack.c.bf16 %v2032, %v2031
      %v2064 = vpack.c.bf16 %v2034, %v2033
      %v2065 = vpack.c.bf16 %v2036, %v2035
      %v2066 = vpack.c.bf16 %v2038, %v2037
      %v2067 = vpack.c.bf16 %v2040, %v2039
      %v2068 = vpack.c.bf16 %v2042, %v2041
      %v2069 = vpack.c.bf16 %v2044, %v2043
      %v2070 = vpack.c.bf16 %v2046, %v2045
      %v2071 = vpack.c.bf16 %v2048, %v2047
      %v2072 = vpack.c.bf16 %v2050, %v2049
      %v2073 = vpack.c.bf16 %v2052, %v2051
      %v2074 = vpack.c.bf16 %v2054, %v2053
      %v2075 = vpack.c.bf16 %v2056, %v2055
      %v2076 = vpack.c.bf16 %v2058, %v2057
      %s2077 = scalar_lea.vmem %s4, 192
      %v2078 = vld [vmem:[%s2077] sm:$0xf]
      %v2079 = vld [vmem:[%s2077 + $0x4] sm:$0xf]
      %v2080 = vld [vmem:[%s2077 + $0x8] sm:$0xf]
      %v2081 = vld [vmem:[%s2077 + $0xc] sm:$0xf]
      %v2082 = vld [vmem:[%s2077 + $0x10] sm:$0xf]
      %v2083 = vld [vmem:[%s2077 + $0x14] sm:$0xf]
      %v2084 = vld [vmem:[%s2077 + $0x18] sm:$0xf]
      %v2085 = vld [vmem:[%s2077 + $0x1c] sm:$0xf]
      %v2086 = vld [vmem:[%s2077 + $0x20] sm:$0xf]
      %v2087 = vld [vmem:[%s2077 + $0x24] sm:$0xf]
      %v2088 = vld [vmem:[%s2077 + $0x28] sm:$0xf]
      %v2089 = vld [vmem:[%s2077 + $0x2c] sm:$0xf]
      %v2090 = vld [vmem:[%s2077 + $0x30] sm:$0xf]
      %v2091 = vld [vmem:[%s2077 + $0x34] sm:$0xf]
      %v2092 = vld [vmem:[%s2077 + $0x38] sm:$0xf]
      %v2093 = vld [vmem:[%s2077 + $0x3c] sm:$0xf]
      %v2110 = vunpack.c.l.b16 %v2078
      %v2111 = vunpack.c.l.b16 %v2079
      %v2112 = vunpack.c.l.b16 %v2080
      %v2113 = vunpack.c.l.b16 %v2081
      %v2114 = vunpack.c.l.b16 %v2082
      %v2115 = vunpack.c.l.b16 %v2083
      %v2116 = vunpack.c.l.b16 %v2084
      %v2117 = vunpack.c.l.b16 %v2085
      %v2118 = vunpack.c.l.b16 %v2086
      %v2119 = vunpack.c.l.b16 %v2087
      %v2120 = vunpack.c.l.b16 %v2088
      %v2121 = vunpack.c.l.b16 %v2089
      %v2122 = vunpack.c.l.b16 %v2090
      %v2123 = vunpack.c.l.b16 %v2091
      %v2124 = vunpack.c.l.b16 %v2092
      %v2125 = vunpack.c.l.b16 %v2093
      %v2126 = vpack.c.b16 %v2111, %v2110
      %v2127 = vpack.c.b16 %v2113, %v2112
      %v2128 = vpack.c.b16 %v2115, %v2114
      %v2129 = vpack.c.b16 %v2117, %v2116
      %v2130 = vpack.c.b16 %v2119, %v2118
      %v2131 = vpack.c.b16 %v2121, %v2120
      %v2132 = vpack.c.b16 %v2123, %v2122
      %v2133 = vpack.c.b16 %v2125, %v2124
      %2142 = vmatpush.bf16.msra.mxu0 %v2133
      %2143 = vmatpush.bf16.msra.mxu0 %v2132
      %2144 = vmatpush.bf16.msra.mxu0 %v2131
      %2145 = vmatpush.bf16.msra.mxu0 %v2130
      %2146 = vmatpush.bf16.msra.mxu0 %v2129
      %2147 = vmatpush.bf16.msra.mxu0 %v2128
      %2148 = vmatpush.bf16.msra.mxu0 %v2127
      %2149 = vmatpush.bf16.msra.mxu0 %v2126
      %2150 = vmatmul.bf16.gmra.mxu0 %v2059
      %v2151 = vpop.f32.mrf.mxu0
      %v2152 = vadd.f32 0.0, %v2151
      %v2153 = vpop.f32.mrf.mxu0
      %v2154 = vadd.f32 0.0, %v2153
      %2155 = vmatmul.bf16.gmra.mxu0 %v2060
      %v2156 = vpop.f32.mrf.mxu0
      %v2157 = vadd.f32 0.0, %v2156
      %v2158 = vpop.f32.mrf.mxu0
      %v2159 = vadd.f32 0.0, %v2158
      %2160 = vmatmul.bf16.gmra.mxu0 %v2061
      %v2161 = vpop.f32.mrf.mxu0
      %v2162 = vadd.f32 0.0, %v2161
      %v2163 = vpop.f32.mrf.mxu0
      %v2164 = vadd.f32 0.0, %v2163
      %2165 = vmatmul.bf16.gmra.mxu0 %v2062
      %v2166 = vpop.f32.mrf.mxu0
      %v2167 = vadd.f32 0.0, %v2166
      %v2168 = vpop.f32.mrf.mxu0
      %v2169 = vadd.f32 0.0, %v2168
      %2170 = vmatmul.bf16.gmra.mxu0 %v2063
      %v2171 = vpop.f32.mrf.mxu0
      %v2172 = vadd.f32 0.0, %v2171
      %v2173 = vpop.f32.mrf.mxu0
      %v2174 = vadd.f32 0.0, %v2173
      %2175 = vmatmul.bf16.gmra.mxu0 %v2064
      %v2176 = vpop.f32.mrf.mxu0
      %v2177 = vadd.f32 0.0, %v2176
      %v2178 = vpop.f32.mrf.mxu0
      %v2179 = vadd.f32 0.0, %v2178
      %2180 = vmatmul.bf16.gmra.mxu0 %v2065
      %v2181 = vpop.f32.mrf.mxu0
      %v2182 = vadd.f32 0.0, %v2181
      %v2183 = vpop.f32.mrf.mxu0
      %v2184 = vadd.f32 0.0, %v2183
      %2185 = vmatmul.bf16.gmra.mxu0 %v2066
      %v2186 = vpop.f32.mrf.mxu0
      %v2187 = vadd.f32 0.0, %v2186
      %v2188 = vpop.f32.mrf.mxu0
      %v2189 = vadd.f32 0.0, %v2188
      %2190 = vmatmul.bf16.gmra.mxu0 %v2067
      %v2191 = vpop.f32.mrf.mxu0
      %v2192 = vadd.f32 0.0, %v2191
      %v2193 = vpop.f32.mrf.mxu0
      %v2194 = vadd.f32 0.0, %v2193
      %2195 = vmatmul.bf16.gmra.mxu0 %v2068
      %v2196 = vpop.f32.mrf.mxu0
      %v2197 = vadd.f32 0.0, %v2196
      %v2198 = vpop.f32.mrf.mxu0
      %v2199 = vadd.f32 0.0, %v2198
      %2200 = vmatmul.bf16.gmra.mxu0 %v2069
      %v2201 = vpop.f32.mrf.mxu0
      %v2202 = vadd.f32 0.0, %v2201
      %v2203 = vpop.f32.mrf.mxu0
      %v2204 = vadd.f32 0.0, %v2203
      %2205 = vmatmul.bf16.gmra.mxu0 %v2070
      %v2206 = vpop.f32.mrf.mxu0
      %v2207 = vadd.f32 0.0, %v2206
      %v2208 = vpop.f32.mrf.mxu0
      %v2209 = vadd.f32 0.0, %v2208
      %2210 = vmatmul.bf16.gmra.mxu0 %v2071
      %v2211 = vpop.f32.mrf.mxu0
      %v2212 = vadd.f32 0.0, %v2211
      %v2213 = vpop.f32.mrf.mxu0
      %v2214 = vadd.f32 0.0, %v2213
      %2215 = vmatmul.bf16.gmra.mxu0 %v2072
      %v2216 = vpop.f32.mrf.mxu0
      %v2217 = vadd.f32 0.0, %v2216
      %v2218 = vpop.f32.mrf.mxu0
      %v2219 = vadd.f32 0.0, %v2218
      %2220 = vmatmul.bf16.gmra.mxu0 %v2073
      %v2221 = vpop.f32.mrf.mxu0
      %v2222 = vadd.f32 0.0, %v2221
      %v2223 = vpop.f32.mrf.mxu0
      %v2224 = vadd.f32 0.0, %v2223
      %2225 = vmatmul.bf16.gmra.mxu0 %v2074
      %v2226 = vpop.f32.mrf.mxu0
      %v2227 = vadd.f32 0.0, %v2226
      %v2228 = vpop.f32.mrf.mxu0
      %v2229 = vadd.f32 0.0, %v2228
      %2230 = vmatmul.bf16.gmra.mxu0 %v2075
      %v2231 = vpop.f32.mrf.mxu0
      %v2232 = vadd.f32 0.0, %v2231
      %v2233 = vpop.f32.mrf.mxu0
      %v2234 = vadd.f32 0.0, %v2233
      %2235 = vmatmul.bf16.gmra.mxu0 %v2076
      %v2236 = vpop.f32.mrf.mxu0
      %v2237 = vadd.f32 0.0, %v2236
      %v2238 = vpop.f32.mrf.mxu0
      %v2239 = vadd.f32 0.0, %v2238
      %2240 = vdwg.mxu0
      %v2241 = vadd.f32 %v1987, %v2152
      %v2242 = vadd.f32 %v1988, %v2154
      %v2243 = vadd.f32 %v1989, %v2157
      %v2244 = vadd.f32 %v1990, %v2159
      %v2245 = vadd.f32 %v1991, %v2162
      %v2246 = vadd.f32 %v1992, %v2164
      %v2247 = vadd.f32 %v1993, %v2167
      %v2248 = vadd.f32 %v1994, %v2169
      %v2249 = vadd.f32 %v1995, %v2172
      %v2250 = vadd.f32 %v1996, %v2174
      %v2251 = vadd.f32 %v1997, %v2177
      %v2252 = vadd.f32 %v1998, %v2179
      %v2253 = vadd.f32 %v1999, %v2182
      %v2254 = vadd.f32 %v2000, %v2184
      %v2255 = vadd.f32 %v2001, %v2187
      %v2256 = vadd.f32 %v2002, %v2189
      %v2257 = vadd.f32 %v2003, %v2192
      %v2258 = vadd.f32 %v2004, %v2194
      %v2259 = vadd.f32 %v2005, %v2197
      %v2260 = vadd.f32 %v2006, %v2199
      %v2261 = vadd.f32 %v2007, %v2202
      %v2262 = vadd.f32 %v2008, %v2204
      %v2263 = vadd.f32 %v2009, %v2207
      %v2264 = vadd.f32 %v2010, %v2209
      %v2265 = vadd.f32 %v2011, %v2212
      %v2266 = vadd.f32 %v2012, %v2214
      %v2267 = vadd.f32 %v2013, %v2217
      %v2268 = vadd.f32 %v2014, %v2219
      %v2269 = vadd.f32 %v2015, %v2222
      %v2270 = vadd.f32 %v2016, %v2224
      %v2271 = vadd.f32 %v2017, %v2227
      %v2272 = vadd.f32 %v2018, %v2229
      %v2273 = vadd.f32 %v2019, %v2232
      %v2274 = vadd.f32 %v2020, %v2234
      %v2275 = vadd.f32 %v2021, %v2237
      %v2276 = vadd.f32 %v2022, %v2239
      %v2277 = vld [vmem:[#allocation2 + $0x13] sm:$0xff]
      %v2278 = vld [vmem:[#allocation2 + $0x1b] sm:$0xff]
      %v2279 = vld [vmem:[#allocation2 + $0x23] sm:$0xff]
      %v2280 = vld [vmem:[#allocation2 + $0x2b] sm:$0xff]
      %v2281 = vld [vmem:[#allocation2 + $0x33] sm:$0xff]
      %v2282 = vld [vmem:[#allocation2 + $0x3b] sm:$0xff]
      %v2283 = vld [vmem:[#allocation2 + $0x43] sm:$0xff]
      %v2284 = vld [vmem:[#allocation2 + $0x4b] sm:$0xff]
      %v2285 = vld [vmem:[#allocation2 + $0x53] sm:$0xff]
      %v2286 = vld [vmem:[#allocation2 + $0x5b] sm:$0xff]
      %v2287 = vld [vmem:[#allocation2 + $0x63] sm:$0xff]
      %v2288 = vld [vmem:[#allocation2 + $0x6b] sm:$0xff]
      %v2289 = vld [vmem:[#allocation2 + $0x73] sm:$0xff]
      %v2290 = vld [vmem:[#allocation2 + $0x7b] sm:$0xff]
      %v2291 = vld [vmem:[#allocation2 + $0x83] sm:$0xff]
      %v2292 = vld [vmem:[#allocation2 + $0x8b] sm:$0xff]
      %v2293 = vld [vmem:[#allocation2 + $0x93] sm:$0xff]
      %v2294 = vld [vmem:[#allocation2 + $0x9b] sm:$0xff]
      %v2295 = vld [vmem:[#allocation2 + $0xa3] sm:$0xff]
      %v2296 = vld [vmem:[#allocation2 + $0xab] sm:$0xff]
      %v2297 = vld [vmem:[#allocation2 + $0xb3] sm:$0xff]
      %v2298 = vld [vmem:[#allocation2 + $0xbb] sm:$0xff]
      %v2299 = vld [vmem:[#allocation2 + $0xc3] sm:$0xff]
      %v2300 = vld [vmem:[#allocation2 + $0xcb] sm:$0xff]
      %v2301 = vld [vmem:[#allocation2 + $0xd3] sm:$0xff]
      %v2302 = vld [vmem:[#allocation2 + $0xdb] sm:$0xff]
      %v2303 = vld [vmem:[#allocation2 + $0xe3] sm:$0xff]
      %v2304 = vld [vmem:[#allocation2 + $0xeb] sm:$0xff]
      %v2305 = vld [vmem:[#allocation2 + $0xf3] sm:$0xff]
      %v2306 = vld [vmem:[#allocation2 + $0xfb] sm:$0xff]
      %v2307 = vld [vmem:[#allocation2 + $0x103] sm:$0xff]
      %v2308 = vld [vmem:[#allocation2 + $0x10b] sm:$0xff]
      %v2309 = vld [vmem:[#allocation2 + $0x113] sm:$0xff]
      %v2310 = vld [vmem:[#allocation2 + $0x11b] sm:$0xff]
      %v2311 = vld [vmem:[#allocation2 + $0x123] sm:$0xff]
      %v2312 = vld [vmem:[#allocation2 + $0x12b] sm:$0xff]
      %v2313 = vpack.c.bf16 %v2278, %v2277
      %v2314 = vpack.c.bf16 %v2280, %v2279
      %v2315 = vpack.c.bf16 %v2282, %v2281
      %v2316 = vpack.c.bf16 %v2284, %v2283
      %v2317 = vpack.c.bf16 %v2286, %v2285
      %v2318 = vpack.c.bf16 %v2288, %v2287
      %v2319 = vpack.c.bf16 %v2290, %v2289
      %v2320 = vpack.c.bf16 %v2292, %v2291
      %v2321 = vpack.c.bf16 %v2294, %v2293
      %v2322 = vpack.c.bf16 %v2296, %v2295
      %v2323 = vpack.c.bf16 %v2298, %v2297
      %v2324 = vpack.c.bf16 %v2300, %v2299
      %v2325 = vpack.c.bf16 %v2302, %v2301
      %v2326 = vpack.c.bf16 %v2304, %v2303
      %v2327 = vpack.c.bf16 %v2306, %v2305
      %v2328 = vpack.c.bf16 %v2308, %v2307
      %v2329 = vpack.c.bf16 %v2310, %v2309
      %v2330 = vpack.c.bf16 %v2312, %v2311
      %s2331 = scalar_lea.vmem %s4, 256
      %v2332 = vld [vmem:[%s2331] sm:$0xf]
      %v2333 = vld [vmem:[%s2331 + $0x4] sm:$0xf]
      %v2334 = vld [vmem:[%s2331 + $0x8] sm:$0xf]
      %v2335 = vld [vmem:[%s2331 + $0xc] sm:$0xf]
      %v2336 = vld [vmem:[%s2331 + $0x10] sm:$0xf]
      %v2337 = vld [vmem:[%s2331 + $0x14] sm:$0xf]
      %v2338 = vld [vmem:[%s2331 + $0x18] sm:$0xf]
      %v2339 = vld [vmem:[%s2331 + $0x1c] sm:$0xf]
      %v2340 = vld [vmem:[%s2331 + $0x20] sm:$0xf]
      %v2341 = vld [vmem:[%s2331 + $0x24] sm:$0xf]
      %v2342 = vld [vmem:[%s2331 + $0x28] sm:$0xf]
      %v2343 = vld [vmem:[%s2331 + $0x2c] sm:$0xf]
      %v2344 = vld [vmem:[%s2331 + $0x30] sm:$0xf]
      %v2345 = vld [vmem:[%s2331 + $0x34] sm:$0xf]
      %v2346 = vld [vmem:[%s2331 + $0x38] sm:$0xf]
      %v2347 = vld [vmem:[%s2331 + $0x3c] sm:$0xf]
      %v2364 = vunpack.c.l.b16 %v2332
      %v2365 = vunpack.c.l.b16 %v2333
      %v2366 = vunpack.c.l.b16 %v2334
      %v2367 = vunpack.c.l.b16 %v2335
      %v2368 = vunpack.c.l.b16 %v2336
      %v2369 = vunpack.c.l.b16 %v2337
      %v2370 = vunpack.c.l.b16 %v2338
      %v2371 = vunpack.c.l.b16 %v2339
      %v2372 = vunpack.c.l.b16 %v2340
      %v2373 = vunpack.c.l.b16 %v2341
      %v2374 = vunpack.c.l.b16 %v2342
      %v2375 = vunpack.c.l.b16 %v2343
      %v2376 = vunpack.c.l.b16 %v2344
      %v2377 = vunpack.c.l.b16 %v2345
      %v2378 = vunpack.c.l.b16 %v2346
      %v2379 = vunpack.c.l.b16 %v2347
      %v2380 = vpack.c.b16 %v2365, %v2364
      %v2381 = vpack.c.b16 %v2367, %v2366
      %v2382 = vpack.c.b16 %v2369, %v2368
      %v2383 = vpack.c.b16 %v2371, %v2370
      %v2384 = vpack.c.b16 %v2373, %v2372
      %v2385 = vpack.c.b16 %v2375, %v2374
      %v2386 = vpack.c.b16 %v2377, %v2376
      %v2387 = vpack.c.b16 %v2379, %v2378
      %2396 = vmatpush.bf16.msra.mxu0 %v2387
      %2397 = vmatpush.bf16.msra.mxu0 %v2386
      %2398 = vmatpush.bf16.msra.mxu0 %v2385
      %2399 = vmatpush.bf16.msra.mxu0 %v2384
      %2400 = vmatpush.bf16.msra.mxu0 %v2383
      %2401 = vmatpush.bf16.msra.mxu0 %v2382
      %2402 = vmatpush.bf16.msra.mxu0 %v2381
      %2403 = vmatpush.bf16.msra.mxu0 %v2380
      %2404 = vmatmul.bf16.gmra.mxu0 %v2313
      %v2405 = vpop.f32.mrf.mxu0
      %v2406 = vadd.f32 0.0, %v2405
      %v2407 = vpop.f32.mrf.mxu0
      %v2408 = vadd.f32 0.0, %v2407
      %2409 = vmatmul.bf16.gmra.mxu0 %v2314
      %v2410 = vpop.f32.mrf.mxu0
      %v2411 = vadd.f32 0.0, %v2410
      %v2412 = vpop.f32.mrf.mxu0
      %v2413 = vadd.f32 0.0, %v2412
      %2414 = vmatmul.bf16.gmra.mxu0 %v2315
      %v2415 = vpop.f32.mrf.mxu0
      %v2416 = vadd.f32 0.0, %v2415
      %v2417 = vpop.f32.mrf.mxu0
      %v2418 = vadd.f32 0.0, %v2417
      %2419 = vmatmul.bf16.gmra.mxu0 %v2316
      %v2420 = vpop.f32.mrf.mxu0
      %v2421 = vadd.f32 0.0, %v2420
      %v2422 = vpop.f32.mrf.mxu0
      %v2423 = vadd.f32 0.0, %v2422
      %2424 = vmatmul.bf16.gmra.mxu0 %v2317
      %v2425 = vpop.f32.mrf.mxu0
      %v2426 = vadd.f32 0.0, %v2425
      %v2427 = vpop.f32.mrf.mxu0
      %v2428 = vadd.f32 0.0, %v2427
      %2429 = vmatmul.bf16.gmra.mxu0 %v2318
      %v2430 = vpop.f32.mrf.mxu0
      %v2431 = vadd.f32 0.0, %v2430
      %v2432 = vpop.f32.mrf.mxu0
      %v2433 = vadd.f32 0.0, %v2432
      %2434 = vmatmul.bf16.gmra.mxu0 %v2319
      %v2435 = vpop.f32.mrf.mxu0
      %v2436 = vadd.f32 0.0, %v2435
      %v2437 = vpop.f32.mrf.mxu0
      %v2438 = vadd.f32 0.0, %v2437
      %2439 = vmatmul.bf16.gmra.mxu0 %v2320
      %v2440 = vpop.f32.mrf.mxu0
      %v2441 = vadd.f32 0.0, %v2440
      %v2442 = vpop.f32.mrf.mxu0
      %v2443 = vadd.f32 0.0, %v2442
      %2444 = vmatmul.bf16.gmra.mxu0 %v2321
      %v2445 = vpop.f32.mrf.mxu0
      %v2446 = vadd.f32 0.0, %v2445
      %v2447 = vpop.f32.mrf.mxu0
      %v2448 = vadd.f32 0.0, %v2447
      %2449 = vmatmul.bf16.gmra.mxu0 %v2322
      %v2450 = vpop.f32.mrf.mxu0
      %v2451 = vadd.f32 0.0, %v2450
      %v2452 = vpop.f32.mrf.mxu0
      %v2453 = vadd.f32 0.0, %v2452
      %2454 = vmatmul.bf16.gmra.mxu0 %v2323
      %v2455 = vpop.f32.mrf.mxu0
      %v2456 = vadd.f32 0.0, %v2455
      %v2457 = vpop.f32.mrf.mxu0
      %v2458 = vadd.f32 0.0, %v2457
      %2459 = vmatmul.bf16.gmra.mxu0 %v2324
      %v2460 = vpop.f32.mrf.mxu0
      %v2461 = vadd.f32 0.0, %v2460
      %v2462 = vpop.f32.mrf.mxu0
      %v2463 = vadd.f32 0.0, %v2462
      %2464 = vmatmul.bf16.gmra.mxu0 %v2325
      %v2465 = vpop.f32.mrf.mxu0
      %v2466 = vadd.f32 0.0, %v2465
      %v2467 = vpop.f32.mrf.mxu0
      %v2468 = vadd.f32 0.0, %v2467
      %2469 = vmatmul.bf16.gmra.mxu0 %v2326
      %v2470 = vpop.f32.mrf.mxu0
      %v2471 = vadd.f32 0.0, %v2470
      %v2472 = vpop.f32.mrf.mxu0
      %v2473 = vadd.f32 0.0, %v2472
      %2474 = vmatmul.bf16.gmra.mxu0 %v2327
      %v2475 = vpop.f32.mrf.mxu0
      %v2476 = vadd.f32 0.0, %v2475
      %v2477 = vpop.f32.mrf.mxu0
      %v2478 = vadd.f32 0.0, %v2477
      %2479 = vmatmul.bf16.gmra.mxu0 %v2328
      %v2480 = vpop.f32.mrf.mxu0
      %v2481 = vadd.f32 0.0, %v2480
      %v2482 = vpop.f32.mrf.mxu0
      %v2483 = vadd.f32 0.0, %v2482
      %2484 = vmatmul.bf16.gmra.mxu0 %v2329
      %v2485 = vpop.f32.mrf.mxu0
      %v2486 = vadd.f32 0.0, %v2485
      %v2487 = vpop.f32.mrf.mxu0
      %v2488 = vadd.f32 0.0, %v2487
      %2489 = vmatmul.bf16.gmra.mxu0 %v2330
      %v2490 = vpop.f32.mrf.mxu0
      %v2491 = vadd.f32 0.0, %v2490
      %v2492 = vpop.f32.mrf.mxu0
      %v2493 = vadd.f32 0.0, %v2492
      %2494 = vdwg.mxu0
      %v2495 = vadd.f32 %v2241, %v2406
      %v2496 = vadd.f32 %v2242, %v2408
      %v2497 = vadd.f32 %v2243, %v2411
      %v2498 = vadd.f32 %v2244, %v2413
      %v2499 = vadd.f32 %v2245, %v2416
      %v2500 = vadd.f32 %v2246, %v2418
      %v2501 = vadd.f32 %v2247, %v2421
      %v2502 = vadd.f32 %v2248, %v2423
      %v2503 = vadd.f32 %v2249, %v2426
      %v2504 = vadd.f32 %v2250, %v2428
      %v2505 = vadd.f32 %v2251, %v2431
      %v2506 = vadd.f32 %v2252, %v2433
      %v2507 = vadd.f32 %v2253, %v2436
      %v2508 = vadd.f32 %v2254, %v2438
      %v2509 = vadd.f32 %v2255, %v2441
      %v2510 = vadd.f32 %v2256, %v2443
      %v2511 = vadd.f32 %v2257, %v2446
      %v2512 = vadd.f32 %v2258, %v2448
      %v2513 = vadd.f32 %v2259, %v2451
      %v2514 = vadd.f32 %v2260, %v2453
      %v2515 = vadd.f32 %v2261, %v2456
      %v2516 = vadd.f32 %v2262, %v2458
      %v2517 = vadd.f32 %v2263, %v2461
      %v2518 = vadd.f32 %v2264, %v2463
      %v2519 = vadd.f32 %v2265, %v2466
      %v2520 = vadd.f32 %v2266, %v2468
      %v2521 = vadd.f32 %v2267, %v2471
      %v2522 = vadd.f32 %v2268, %v2473
      %v2523 = vadd.f32 %v2269, %v2476
      %v2524 = vadd.f32 %v2270, %v2478
      %v2525 = vadd.f32 %v2271, %v2481
      %v2526 = vadd.f32 %v2272, %v2483
      %v2527 = vadd.f32 %v2273, %v2486
      %v2528 = vadd.f32 %v2274, %v2488
      %v2529 = vadd.f32 %v2275, %v2491
      %v2530 = vadd.f32 %v2276, %v2493
      %v2531 = vld [vmem:[#allocation2 + $0x14] sm:$0xff]
      %v2532 = vld [vmem:[#allocation2 + $0x1c] sm:$0xff]
      %v2533 = vld [vmem:[#allocation2 + $0x24] sm:$0xff]
      %v2534 = vld [vmem:[#allocation2 + $0x2c] sm:$0xff]
      %v2535 = vld [vmem:[#allocation2 + $0x34] sm:$0xff]
      %v2536 = vld [vmem:[#allocation2 + $0x3c] sm:$0xff]
      %v2537 = vld [vmem:[#allocation2 + $0x44] sm:$0xff]
      %v2538 = vld [vmem:[#allocation2 + $0x4c] sm:$0xff]
      %v2539 = vld [vmem:[#allocation2 + $0x54] sm:$0xff]
      %v2540 = vld [vmem:[#allocation2 + $0x5c] sm:$0xff]
      %v2541 = vld [vmem:[#allocation2 + $0x64] sm:$0xff]
      %v2542 = vld [vmem:[#allocation2 + $0x6c] sm:$0xff]
      %v2543 = vld [vmem:[#allocation2 + $0x74] sm:$0xff]
      %v2544 = vld [vmem:[#allocation2 + $0x7c] sm:$0xff]
      %v2545 = vld [vmem:[#allocation2 + $0x84] sm:$0xff]
      %v2546 = vld [vmem:[#allocation2 + $0x8c] sm:$0xff]
      %v2547 = vld [vmem:[#allocation2 + $0x94] sm:$0xff]
      %v2548 = vld [vmem:[#allocation2 + $0x9c] sm:$0xff]
      %v2549 = vld [vmem:[#allocation2 + $0xa4] sm:$0xff]
      %v2550 = vld [vmem:[#allocation2 + $0xac] sm:$0xff]
      %v2551 = vld [vmem:[#allocation2 + $0xb4] sm:$0xff]
      %v2552 = vld [vmem:[#allocation2 + $0xbc] sm:$0xff]
      %v2553 = vld [vmem:[#allocation2 + $0xc4] sm:$0xff]
      %v2554 = vld [vmem:[#allocation2 + $0xcc] sm:$0xff]
      %v2555 = vld [vmem:[#allocation2 + $0xd4] sm:$0xff]
      %v2556 = vld [vmem:[#allocation2 + $0xdc] sm:$0xff]
      %v2557 = vld [vmem:[#allocation2 + $0xe4] sm:$0xff]
      %v2558 = vld [vmem:[#allocation2 + $0xec] sm:$0xff]
      %v2559 = vld [vmem:[#allocation2 + $0xf4] sm:$0xff]
      %v2560 = vld [vmem:[#allocation2 + $0xfc] sm:$0xff]
      %v2561 = vld [vmem:[#allocation2 + $0x104] sm:$0xff]
      %v2562 = vld [vmem:[#allocation2 + $0x10c] sm:$0xff]
      %v2563 = vld [vmem:[#allocation2 + $0x114] sm:$0xff]
      %v2564 = vld [vmem:[#allocation2 + $0x11c] sm:$0xff]
      %v2565 = vld [vmem:[#allocation2 + $0x124] sm:$0xff]
      %v2566 = vld [vmem:[#allocation2 + $0x12c] sm:$0xff]
      %v2567 = vpack.c.bf16 %v2532, %v2531
      %v2568 = vpack.c.bf16 %v2534, %v2533
      %v2569 = vpack.c.bf16 %v2536, %v2535
      %v2570 = vpack.c.bf16 %v2538, %v2537
      %v2571 = vpack.c.bf16 %v2540, %v2539
      %v2572 = vpack.c.bf16 %v2542, %v2541
      %v2573 = vpack.c.bf16 %v2544, %v2543
      %v2574 = vpack.c.bf16 %v2546, %v2545
      %v2575 = vpack.c.bf16 %v2548, %v2547
      %v2576 = vpack.c.bf16 %v2550, %v2549
      %v2577 = vpack.c.bf16 %v2552, %v2551
      %v2578 = vpack.c.bf16 %v2554, %v2553
      %v2579 = vpack.c.bf16 %v2556, %v2555
      %v2580 = vpack.c.bf16 %v2558, %v2557
      %v2581 = vpack.c.bf16 %v2560, %v2559
      %v2582 = vpack.c.bf16 %v2562, %v2561
      %v2583 = vpack.c.bf16 %v2564, %v2563
      %v2584 = vpack.c.bf16 %v2566, %v2565
      %s2585 = scalar_lea.vmem %s4, 320
      %v2586 = vld [vmem:[%s2585] sm:$0xf]
      %v2587 = vld [vmem:[%s2585 + $0x4] sm:$0xf]
      %v2588 = vld [vmem:[%s2585 + $0x8] sm:$0xf]
      %v2589 = vld [vmem:[%s2585 + $0xc] sm:$0xf]
      %v2590 = vld [vmem:[%s2585 + $0x10] sm:$0xf]
      %v2591 = vld [vmem:[%s2585 + $0x14] sm:$0xf]
      %v2592 = vld [vmem:[%s2585 + $0x18] sm:$0xf]
      %v2593 = vld [vmem:[%s2585 + $0x1c] sm:$0xf]
      %v2594 = vld [vmem:[%s2585 + $0x20] sm:$0xf]
      %v2595 = vld [vmem:[%s2585 + $0x24] sm:$0xf]
      %v2596 = vld [vmem:[%s2585 + $0x28] sm:$0xf]
      %v2597 = vld [vmem:[%s2585 + $0x2c] sm:$0xf]
      %v2598 = vld [vmem:[%s2585 + $0x30] sm:$0xf]
      %v2599 = vld [vmem:[%s2585 + $0x34] sm:$0xf]
      %v2600 = vld [vmem:[%s2585 + $0x38] sm:$0xf]
      %v2601 = vld [vmem:[%s2585 + $0x3c] sm:$0xf]
      %v2618 = vunpack.c.l.b16 %v2586
      %v2619 = vunpack.c.l.b16 %v2587
      %v2620 = vunpack.c.l.b16 %v2588
      %v2621 = vunpack.c.l.b16 %v2589
      %v2622 = vunpack.c.l.b16 %v2590
      %v2623 = vunpack.c.l.b16 %v2591
      %v2624 = vunpack.c.l.b16 %v2592
      %v2625 = vunpack.c.l.b16 %v2593
      %v2626 = vunpack.c.l.b16 %v2594
      %v2627 = vunpack.c.l.b16 %v2595
      %v2628 = vunpack.c.l.b16 %v2596
      %v2629 = vunpack.c.l.b16 %v2597
      %v2630 = vunpack.c.l.b16 %v2598
      %v2631 = vunpack.c.l.b16 %v2599
      %v2632 = vunpack.c.l.b16 %v2600
      %v2633 = vunpack.c.l.b16 %v2601
      %v2634 = vpack.c.b16 %v2619, %v2618
      %v2635 = vpack.c.b16 %v2621, %v2620
      %v2636 = vpack.c.b16 %v2623, %v2622
      %v2637 = vpack.c.b16 %v2625, %v2624
      %v2638 = vpack.c.b16 %v2627, %v2626
      %v2639 = vpack.c.b16 %v2629, %v2628
      %v2640 = vpack.c.b16 %v2631, %v2630
      %v2641 = vpack.c.b16 %v2633, %v2632
      %2650 = vmatpush.bf16.msra.mxu0 %v2641
      %2651 = vmatpush.bf16.msra.mxu0 %v2640
      %2652 = vmatpush.bf16.msra.mxu0 %v2639
      %2653 = vmatpush.bf16.msra.mxu0 %v2638
      %2654 = vmatpush.bf16.msra.mxu0 %v2637
      %2655 = vmatpush.bf16.msra.mxu0 %v2636
      %2656 = vmatpush.bf16.msra.mxu0 %v2635
      %2657 = vmatpush.bf16.msra.mxu0 %v2634
      %2658 = vmatmul.bf16.gmra.mxu0 %v2567
      %v2659 = vpop.f32.mrf.mxu0
      %v2660 = vadd.f32 0.0, %v2659
      %v2661 = vpop.f32.mrf.mxu0
      %v2662 = vadd.f32 0.0, %v2661
      %2663 = vmatmul.bf16.gmra.mxu0 %v2568
      %v2664 = vpop.f32.mrf.mxu0
      %v2665 = vadd.f32 0.0, %v2664
      %v2666 = vpop.f32.mrf.mxu0
      %v2667 = vadd.f32 0.0, %v2666
      %2668 = vmatmul.bf16.gmra.mxu0 %v2569
      %v2669 = vpop.f32.mrf.mxu0
      %v2670 = vadd.f32 0.0, %v2669
      %v2671 = vpop.f32.mrf.mxu0
      %v2672 = vadd.f32 0.0, %v2671
      %2673 = vmatmul.bf16.gmra.mxu0 %v2570
      %v2674 = vpop.f32.mrf.mxu0
      %v2675 = vadd.f32 0.0, %v2674
      %v2676 = vpop.f32.mrf.mxu0
      %v2677 = vadd.f32 0.0, %v2676
      %2678 = vmatmul.bf16.gmra.mxu0 %v2571
      %v2679 = vpop.f32.mrf.mxu0
      %v2680 = vadd.f32 0.0, %v2679
      %v2681 = vpop.f32.mrf.mxu0
      %v2682 = vadd.f32 0.0, %v2681
      %2683 = vmatmul.bf16.gmra.mxu0 %v2572
      %v2684 = vpop.f32.mrf.mxu0
      %v2685 = vadd.f32 0.0, %v2684
      %v2686 = vpop.f32.mrf.mxu0
      %v2687 = vadd.f32 0.0, %v2686
      %2688 = vmatmul.bf16.gmra.mxu0 %v2573
      %v2689 = vpop.f32.mrf.mxu0
      %v2690 = vadd.f32 0.0, %v2689
      %v2691 = vpop.f32.mrf.mxu0
      %v2692 = vadd.f32 0.0, %v2691
      %2693 = vmatmul.bf16.gmra.mxu0 %v2574
      %v2694 = vpop.f32.mrf.mxu0
      %v2695 = vadd.f32 0.0, %v2694
      %v2696 = vpop.f32.mrf.mxu0
      %v2697 = vadd.f32 0.0, %v2696
      %2698 = vmatmul.bf16.gmra.mxu0 %v2575
      %v2699 = vpop.f32.mrf.mxu0
      %v2700 = vadd.f32 0.0, %v2699
      %v2701 = vpop.f32.mrf.mxu0
      %v2702 = vadd.f32 0.0, %v2701
      %2703 = vmatmul.bf16.gmra.mxu0 %v2576
      %v2704 = vpop.f32.mrf.mxu0
      %v2705 = vadd.f32 0.0, %v2704
      %v2706 = vpop.f32.mrf.mxu0
      %v2707 = vadd.f32 0.0, %v2706
      %2708 = vmatmul.bf16.gmra.mxu0 %v2577
      %v2709 = vpop.f32.mrf.mxu0
      %v2710 = vadd.f32 0.0, %v2709
      %v2711 = vpop.f32.mrf.mxu0
      %v2712 = vadd.f32 0.0, %v2711
      %2713 = vmatmul.bf16.gmra.mxu0 %v2578
      %v2714 = vpop.f32.mrf.mxu0
      %v2715 = vadd.f32 0.0, %v2714
      %v2716 = vpop.f32.mrf.mxu0
      %v2717 = vadd.f32 0.0, %v2716
      %2718 = vmatmul.bf16.gmra.mxu0 %v2579
      %v2719 = vpop.f32.mrf.mxu0
      %v2720 = vadd.f32 0.0, %v2719
      %v2721 = vpop.f32.mrf.mxu0
      %v2722 = vadd.f32 0.0, %v2721
      %2723 = vmatmul.bf16.gmra.mxu0 %v2580
      %v2724 = vpop.f32.mrf.mxu0
      %v2725 = vadd.f32 0.0, %v2724
      %v2726 = vpop.f32.mrf.mxu0
      %v2727 = vadd.f32 0.0, %v2726
      %2728 = vmatmul.bf16.gmra.mxu0 %v2581
      %v2729 = vpop.f32.mrf.mxu0
      %v2730 = vadd.f32 0.0, %v2729
      %v2731 = vpop.f32.mrf.mxu0
      %v2732 = vadd.f32 0.0, %v2731
      %2733 = vmatmul.bf16.gmra.mxu0 %v2582
      %v2734 = vpop.f32.mrf.mxu0
      %v2735 = vadd.f32 0.0, %v2734
      %v2736 = vpop.f32.mrf.mxu0
      %v2737 = vadd.f32 0.0, %v2736
      %2738 = vmatmul.bf16.gmra.mxu0 %v2583
      %v2739 = vpop.f32.mrf.mxu0
      %v2740 = vadd.f32 0.0, %v2739
      %v2741 = vpop.f32.mrf.mxu0
      %v2742 = vadd.f32 0.0, %v2741
      %2743 = vmatmul.bf16.gmra.mxu0 %v2584
      %v2744 = vpop.f32.mrf.mxu0
      %v2745 = vadd.f32 0.0, %v2744
      %v2746 = vpop.f32.mrf.mxu0
      %v2747 = vadd.f32 0.0, %v2746
      %2748 = vdwg.mxu0
      %v2749 = vadd.f32 %v2495, %v2660
      %v2750 = vadd.f32 %v2496, %v2662
      %v2751 = vadd.f32 %v2497, %v2665
      %v2752 = vadd.f32 %v2498, %v2667
      %v2753 = vadd.f32 %v2499, %v2670
      %v2754 = vadd.f32 %v2500, %v2672
      %v2755 = vadd.f32 %v2501, %v2675
      %v2756 = vadd.f32 %v2502, %v2677
      %v2757 = vadd.f32 %v2503, %v2680
      %v2758 = vadd.f32 %v2504, %v2682
      %v2759 = vadd.f32 %v2505, %v2685
      %v2760 = vadd.f32 %v2506, %v2687
      %v2761 = vadd.f32 %v2507, %v2690
      %v2762 = vadd.f32 %v2508, %v2692
      %v2763 = vadd.f32 %v2509, %v2695
      %v2764 = vadd.f32 %v2510, %v2697
      %v2765 = vadd.f32 %v2511, %v2700
      %v2766 = vadd.f32 %v2512, %v2702
      %v2767 = vadd.f32 %v2513, %v2705
      %v2768 = vadd.f32 %v2514, %v2707
      %v2769 = vadd.f32 %v2515, %v2710
      %v2770 = vadd.f32 %v2516, %v2712
      %v2771 = vadd.f32 %v2517, %v2715
      %v2772 = vadd.f32 %v2518, %v2717
      %v2773 = vadd.f32 %v2519, %v2720
      %v2774 = vadd.f32 %v2520, %v2722
      %v2775 = vadd.f32 %v2521, %v2725
      %v2776 = vadd.f32 %v2522, %v2727
      %v2777 = vadd.f32 %v2523, %v2730
      %v2778 = vadd.f32 %v2524, %v2732
      %v2779 = vadd.f32 %v2525, %v2735
      %v2780 = vadd.f32 %v2526, %v2737
      %v2781 = vadd.f32 %v2527, %v2740
      %v2782 = vadd.f32 %v2528, %v2742
      %v2783 = vadd.f32 %v2529, %v2745
      %v2784 = vadd.f32 %v2530, %v2747
      %v2785 = vld [vmem:[#allocation2 + $0x24] sm:$0xff]
      %v2786 = vld [vmem:[#allocation2 + $0x2c] sm:$0xff]
      %v2787 = vld [vmem:[#allocation2 + $0x34] sm:$0xff]
      %v2788 = vld [vmem:[#allocation2 + $0x3c] sm:$0xff]
      %v2789 = vld [vmem:[#allocation2 + $0x44] sm:$0xff]
      %v2790 = vld [vmem:[#allocation2 + $0x4c] sm:$0xff]
      %v2791 = vld [vmem:[#allocation2 + $0x54] sm:$0xff]
      %v2792 = vld [vmem:[#allocation2 + $0x5c] sm:$0xff]
      %v2793 = vld [vmem:[#allocation2 + $0x64] sm:$0xff]
      %v2794 = vld [vmem:[#allocation2 + $0x6c] sm:$0xff]
      %v2795 = vld [vmem:[#allocation2 + $0x74] sm:$0xff]
      %v2796 = vld [vmem:[#allocation2 + $0x7c] sm:$0xff]
      %v2797 = vld [vmem:[#allocation2 + $0x84] sm:$0xff]
      %v2798 = vld [vmem:[#allocation2 + $0x8c] sm:$0xff]
      %v2799 = vld [vmem:[#allocation2 + $0x94] sm:$0xff]
      %v2800 = vld [vmem:[#allocation2 + $0x9c] sm:$0xff]
      %v2801 = vld [vmem:[#allocation2 + $0xa4] sm:$0xff]
      %v2802 = vld [vmem:[#allocation2 + $0xac] sm:$0xff]
      %v2803 = vld [vmem:[#allocation2 + $0xb4] sm:$0xff]
      %v2804 = vld [vmem:[#allocation2 + $0xbc] sm:$0xff]
      %v2805 = vld [vmem:[#allocation2 + $0xc4] sm:$0xff]
      %v2806 = vld [vmem:[#allocation2 + $0xcc] sm:$0xff]
      %v2807 = vld [vmem:[#allocation2 + $0xd4] sm:$0xff]
      %v2808 = vld [vmem:[#allocation2 + $0xdc] sm:$0xff]
      %v2809 = vld [vmem:[#allocation2 + $0xe4] sm:$0xff]
      %v2810 = vld [vmem:[#allocation2 + $0xec] sm:$0xff]
      %v2811 = vld [vmem:[#allocation2 + $0xf4] sm:$0xff]
      %v2812 = vld [vmem:[#allocation2 + $0xfc] sm:$0xff]
      %v2813 = vld [vmem:[#allocation2 + $0x104] sm:$0xff]
      %v2814 = vld [vmem:[#allocation2 + $0x10c] sm:$0xff]
      %v2815 = vld [vmem:[#allocation2 + $0x114] sm:$0xff]
      %v2816 = vld [vmem:[#allocation2 + $0x11c] sm:$0xff]
      %v2817 = vld [vmem:[#allocation2 + $0x124] sm:$0xff]
      %v2818 = vld [vmem:[#allocation2 + $0x12c] sm:$0xff]
      %v2819 = vld [vmem:[#allocation2 + $0x134] sm:$0xff]
      %v2820 = vld [vmem:[#allocation2 + $0x13c] sm:$0xff]
      %v2821 = vpack.c.bf16 %v2786, %v2785
      %v2822 = vpack.c.bf16 %v2788, %v2787
      %v2823 = vpack.c.bf16 %v2790, %v2789
      %v2824 = vpack.c.bf16 %v2792, %v2791
      %v2825 = vpack.c.bf16 %v2794, %v2793
      %v2826 = vpack.c.bf16 %v2796, %v2795
      %v2827 = vpack.c.bf16 %v2798, %v2797
      %v2828 = vpack.c.bf16 %v2800, %v2799
      %v2829 = vpack.c.bf16 %v2802, %v2801
      %v2830 = vpack.c.bf16 %v2804, %v2803
      %v2831 = vpack.c.bf16 %v2806, %v2805
      %v2832 = vpack.c.bf16 %v2808, %v2807
      %v2833 = vpack.c.bf16 %v2810, %v2809
      %v2834 = vpack.c.bf16 %v2812, %v2811
      %v2835 = vpack.c.bf16 %v2814, %v2813
      %v2836 = vpack.c.bf16 %v2816, %v2815
      %v2837 = vpack.c.bf16 %v2818, %v2817
      %v2838 = vpack.c.bf16 %v2820, %v2819
      %s2839 = scalar_lea.vmem %s4, 384
      %v2840 = vld [vmem:[%s2839] sm:$0xf]
      %v2841 = vld [vmem:[%s2839 + $0x4] sm:$0xf]
      %v2842 = vld [vmem:[%s2839 + $0x8] sm:$0xf]
      %v2843 = vld [vmem:[%s2839 + $0xc] sm:$0xf]
      %v2844 = vld [vmem:[%s2839 + $0x10] sm:$0xf]
      %v2845 = vld [vmem:[%s2839 + $0x14] sm:$0xf]
      %v2846 = vld [vmem:[%s2839 + $0x18] sm:$0xf]
      %v2847 = vld [vmem:[%s2839 + $0x1c] sm:$0xf]
      %v2848 = vld [vmem:[%s2839 + $0x20] sm:$0xf]
      %v2849 = vld [vmem:[%s2839 + $0x24] sm:$0xf]
      %v2850 = vld [vmem:[%s2839 + $0x28] sm:$0xf]
      %v2851 = vld [vmem:[%s2839 + $0x2c] sm:$0xf]
      %v2852 = vld [vmem:[%s2839 + $0x30] sm:$0xf]
      %v2853 = vld [vmem:[%s2839 + $0x34] sm:$0xf]
      %v2854 = vld [vmem:[%s2839 + $0x38] sm:$0xf]
      %v2855 = vld [vmem:[%s2839 + $0x3c] sm:$0xf]
      %v2872 = vunpack.c.l.b16 %v2840
      %v2873 = vunpack.c.l.b16 %v2841
      %v2874 = vunpack.c.l.b16 %v2842
      %v2875 = vunpack.c.l.b16 %v2843
      %v2876 = vunpack.c.l.b16 %v2844
      %v2877 = vunpack.c.l.b16 %v2845
      %v2878 = vunpack.c.l.b16 %v2846
      %v2879 = vunpack.c.l.b16 %v2847
      %v2880 = vunpack.c.l.b16 %v2848
      %v2881 = vunpack.c.l.b16 %v2849
      %v2882 = vunpack.c.l.b16 %v2850
      %v2883 = vunpack.c.l.b16 %v2851
      %v2884 = vunpack.c.l.b16 %v2852
      %v2885 = vunpack.c.l.b16 %v2853
      %v2886 = vunpack.c.l.b16 %v2854
      %v2887 = vunpack.c.l.b16 %v2855
      %v2888 = vpack.c.b16 %v2873, %v2872
      %v2889 = vpack.c.b16 %v2875, %v2874
      %v2890 = vpack.c.b16 %v2877, %v2876
      %v2891 = vpack.c.b16 %v2879, %v2878
      %v2892 = vpack.c.b16 %v2881, %v2880
      %v2893 = vpack.c.b16 %v2883, %v2882
      %v2894 = vpack.c.b16 %v2885, %v2884
      %v2895 = vpack.c.b16 %v2887, %v2886
      %2904 = vmatpush.bf16.msra.mxu0 %v2895
      %2905 = vmatpush.bf16.msra.mxu0 %v2894
      %2906 = vmatpush.bf16.msra.mxu0 %v2893
      %2907 = vmatpush.bf16.msra.mxu0 %v2892
      %2908 = vmatpush.bf16.msra.mxu0 %v2891
      %2909 = vmatpush.bf16.msra.mxu0 %v2890
      %2910 = vmatpush.bf16.msra.mxu0 %v2889
      %2911 = vmatpush.bf16.msra.mxu0 %v2888
      %2912 = vmatmul.bf16.gmra.mxu0 %v2821
      %v2913 = vpop.f32.mrf.mxu0
      %v2914 = vadd.f32 0.0, %v2913
      %v2915 = vpop.f32.mrf.mxu0
      %v2916 = vadd.f32 0.0, %v2915
      %2917 = vmatmul.bf16.gmra.mxu0 %v2822
      %v2918 = vpop.f32.mrf.mxu0
      %v2919 = vadd.f32 0.0, %v2918
      %v2920 = vpop.f32.mrf.mxu0
      %v2921 = vadd.f32 0.0, %v2920
      %2922 = vmatmul.bf16.gmra.mxu0 %v2823
      %v2923 = vpop.f32.mrf.mxu0
      %v2924 = vadd.f32 0.0, %v2923
      %v2925 = vpop.f32.mrf.mxu0
      %v2926 = vadd.f32 0.0, %v2925
      %2927 = vmatmul.bf16.gmra.mxu0 %v2824
      %v2928 = vpop.f32.mrf.mxu0
      %v2929 = vadd.f32 0.0, %v2928
      %v2930 = vpop.f32.mrf.mxu0
      %v2931 = vadd.f32 0.0, %v2930
      %2932 = vmatmul.bf16.gmra.mxu0 %v2825
      %v2933 = vpop.f32.mrf.mxu0
      %v2934 = vadd.f32 0.0, %v2933
      %v2935 = vpop.f32.mrf.mxu0
      %v2936 = vadd.f32 0.0, %v2935
      %2937 = vmatmul.bf16.gmra.mxu0 %v2826
      %v2938 = vpop.f32.mrf.mxu0
      %v2939 = vadd.f32 0.0, %v2938
      %v2940 = vpop.f32.mrf.mxu0
      %v2941 = vadd.f32 0.0, %v2940
      %2942 = vmatmul.bf16.gmra.mxu0 %v2827
      %v2943 = vpop.f32.mrf.mxu0
      %v2944 = vadd.f32 0.0, %v2943
      %v2945 = vpop.f32.mrf.mxu0
      %v2946 = vadd.f32 0.0, %v2945
      %2947 = vmatmul.bf16.gmra.mxu0 %v2828
      %v2948 = vpop.f32.mrf.mxu0
      %v2949 = vadd.f32 0.0, %v2948
      %v2950 = vpop.f32.mrf.mxu0
      %v2951 = vadd.f32 0.0, %v2950
      %2952 = vmatmul.bf16.gmra.mxu0 %v2829
      %v2953 = vpop.f32.mrf.mxu0
      %v2954 = vadd.f32 0.0, %v2953
      %v2955 = vpop.f32.mrf.mxu0
      %v2956 = vadd.f32 0.0, %v2955
      %2957 = vmatmul.bf16.gmra.mxu0 %v2830
      %v2958 = vpop.f32.mrf.mxu0
      %v2959 = vadd.f32 0.0, %v2958
      %v2960 = vpop.f32.mrf.mxu0
      %v2961 = vadd.f32 0.0, %v2960
      %2962 = vmatmul.bf16.gmra.mxu0 %v2831
      %v2963 = vpop.f32.mrf.mxu0
      %v2964 = vadd.f32 0.0, %v2963
      %v2965 = vpop.f32.mrf.mxu0
      %v2966 = vadd.f32 0.0, %v2965
      %2967 = vmatmul.bf16.gmra.mxu0 %v2832
      %v2968 = vpop.f32.mrf.mxu0
      %v2969 = vadd.f32 0.0, %v2968
      %v2970 = vpop.f32.mrf.mxu0
      %v2971 = vadd.f32 0.0, %v2970
      %2972 = vmatmul.bf16.gmra.mxu0 %v2833
      %v2973 = vpop.f32.mrf.mxu0
      %v2974 = vadd.f32 0.0, %v2973
      %v2975 = vpop.f32.mrf.mxu0
      %v2976 = vadd.f32 0.0, %v2975
      %2977 = vmatmul.bf16.gmra.mxu0 %v2834
      %v2978 = vpop.f32.mrf.mxu0
      %v2979 = vadd.f32 0.0, %v2978
      %v2980 = vpop.f32.mrf.mxu0
      %v2981 = vadd.f32 0.0, %v2980
      %2982 = vmatmul.bf16.gmra.mxu0 %v2835
      %v2983 = vpop.f32.mrf.mxu0
      %v2984 = vadd.f32 0.0, %v2983
      %v2985 = vpop.f32.mrf.mxu0
      %v2986 = vadd.f32 0.0, %v2985
      %2987 = vmatmul.bf16.gmra.mxu0 %v2836
      %v2988 = vpop.f32.mrf.mxu0
      %v2989 = vadd.f32 0.0, %v2988
      %v2990 = vpop.f32.mrf.mxu0
      %v2991 = vadd.f32 0.0, %v2990
      %2992 = vmatmul.bf16.gmra.mxu0 %v2837
      %v2993 = vpop.f32.mrf.mxu0
      %v2994 = vadd.f32 0.0, %v2993
      %v2995 = vpop.f32.mrf.mxu0
      %v2996 = vadd.f32 0.0, %v2995
      %2997 = vmatmul.bf16.gmra.mxu0 %v2838
      %v2998 = vpop.f32.mrf.mxu0
      %v2999 = vadd.f32 0.0, %v2998
      %v3000 = vpop.f32.mrf.mxu0
      %v3001 = vadd.f32 0.0, %v3000
      %3002 = vdwg.mxu0
      %v3003 = vadd.f32 %v2749, %v2914
      %v3004 = vadd.f32 %v2750, %v2916
      %v3005 = vadd.f32 %v2751, %v2919
      %v3006 = vadd.f32 %v2752, %v2921
      %v3007 = vadd.f32 %v2753, %v2924
      %v3008 = vadd.f32 %v2754, %v2926
      %v3009 = vadd.f32 %v2755, %v2929
      %v3010 = vadd.f32 %v2756, %v2931
      %v3011 = vadd.f32 %v2757, %v2934
      %v3012 = vadd.f32 %v2758, %v2936
      %v3013 = vadd.f32 %v2759, %v2939
      %v3014 = vadd.f32 %v2760, %v2941
      %v3015 = vadd.f32 %v2761, %v2944
      %v3016 = vadd.f32 %v2762, %v2946
      %v3017 = vadd.f32 %v2763, %v2949
      %v3018 = vadd.f32 %v2764, %v2951
      %v3019 = vadd.f32 %v2765, %v2954
      %v3020 = vadd.f32 %v2766, %v2956
      %v3021 = vadd.f32 %v2767, %v2959
      %v3022 = vadd.f32 %v2768, %v2961
      %v3023 = vadd.f32 %v2769, %v2964
      %v3024 = vadd.f32 %v2770, %v2966
      %v3025 = vadd.f32 %v2771, %v2969
      %v3026 = vadd.f32 %v2772, %v2971
      %v3027 = vadd.f32 %v2773, %v2974
      %v3028 = vadd.f32 %v2774, %v2976
      %v3029 = vadd.f32 %v2775, %v2979
      %v3030 = vadd.f32 %v2776, %v2981
      %v3031 = vadd.f32 %v2777, %v2984
      %v3032 = vadd.f32 %v2778, %v2986
      %v3033 = vadd.f32 %v2779, %v2989
      %v3034 = vadd.f32 %v2780, %v2991
      %v3035 = vadd.f32 %v2781, %v2994
      %v3036 = vadd.f32 %v2782, %v2996
      %v3037 = vadd.f32 %v2783, %v2999
      %v3038 = vadd.f32 %v2784, %v3001
      %v3039 = vld [vmem:[#allocation2 + $0x25] sm:$0xff]
      %v3040 = vld [vmem:[#allocation2 + $0x2d] sm:$0xff]
      %v3041 = vld [vmem:[#allocation2 + $0x35] sm:$0xff]
      %v3042 = vld [vmem:[#allocation2 + $0x3d] sm:$0xff]
      %v3043 = vld [vmem:[#allocation2 + $0x45] sm:$0xff]
      %v3044 = vld [vmem:[#allocation2 + $0x4d] sm:$0xff]
      %v3045 = vld [vmem:[#allocation2 + $0x55] sm:$0xff]
      %v3046 = vld [vmem:[#allocation2 + $0x5d] sm:$0xff]
      %v3047 = vld [vmem:[#allocation2 + $0x65] sm:$0xff]
      %v3048 = vld [vmem:[#allocation2 + $0x6d] sm:$0xff]
      %v3049 = vld [vmem:[#allocation2 + $0x75] sm:$0xff]
      %v3050 = vld [vmem:[#allocation2 + $0x7d] sm:$0xff]
      %v3051 = vld [vmem:[#allocation2 + $0x85] sm:$0xff]
      %v3052 = vld [vmem:[#allocation2 + $0x8d] sm:$0xff]
      %v3053 = vld [vmem:[#allocation2 + $0x95] sm:$0xff]
      %v3054 = vld [vmem:[#allocation2 + $0x9d] sm:$0xff]
      %v3055 = vld [vmem:[#allocation2 + $0xa5] sm:$0xff]
      %v3056 = vld [vmem:[#allocation2 + $0xad] sm:$0xff]
      %v3057 = vld [vmem:[#allocation2 + $0xb5] sm:$0xff]
      %v3058 = vld [vmem:[#allocation2 + $0xbd] sm:$0xff]
      %v3059 = vld [vmem:[#allocation2 + $0xc5] sm:$0xff]
      %v3060 = vld [vmem:[#allocation2 + $0xcd] sm:$0xff]
      %v3061 = vld [vmem:[#allocation2 + $0xd5] sm:$0xff]
      %v3062 = vld [vmem:[#allocation2 + $0xdd] sm:$0xff]
      %v3063 = vld [vmem:[#allocation2 + $0xe5] sm:$0xff]
      %v3064 = vld [vmem:[#allocation2 + $0xed] sm:$0xff]
      %v3065 = vld [vmem:[#allocation2 + $0xf5] sm:$0xff]
      %v3066 = vld [vmem:[#allocation2 + $0xfd] sm:$0xff]
      %v3067 = vld [vmem:[#allocation2 + $0x105] sm:$0xff]
      %v3068 = vld [vmem:[#allocation2 + $0x10d] sm:$0xff]
      %v3069 = vld [vmem:[#allocation2 + $0x115] sm:$0xff]
      %v3070 = vld [vmem:[#allocation2 + $0x11d] sm:$0xff]
      %v3071 = vld [vmem:[#allocation2 + $0x125] sm:$0xff]
      %v3072 = vld [vmem:[#allocation2 + $0x12d] sm:$0xff]
      %v3073 = vld [vmem:[#allocation2 + $0x135] sm:$0xff]
      %v3074 = vld [vmem:[#allocation2 + $0x13d] sm:$0xff]
      %v3075 = vpack.c.bf16 %v3040, %v3039
      %v3076 = vpack.c.bf16 %v3042, %v3041
      %v3077 = vpack.c.bf16 %v3044, %v3043
      %v3078 = vpack.c.bf16 %v3046, %v3045
      %v3079 = vpack.c.bf16 %v3048, %v3047
      %v3080 = vpack.c.bf16 %v3050, %v3049
      %v3081 = vpack.c.bf16 %v3052, %v3051
      %v3082 = vpack.c.bf16 %v3054, %v3053
      %v3083 = vpack.c.bf16 %v3056, %v3055
      %v3084 = vpack.c.bf16 %v3058, %v3057
      %v3085 = vpack.c.bf16 %v3060, %v3059
      %v3086 = vpack.c.bf16 %v3062, %v3061
      %v3087 = vpack.c.bf16 %v3064, %v3063
      %v3088 = vpack.c.bf16 %v3066, %v3065
      %v3089 = vpack.c.bf16 %v3068, %v3067
      %v3090 = vpack.c.bf16 %v3070, %v3069
      %v3091 = vpack.c.bf16 %v3072, %v3071
      %v3092 = vpack.c.bf16 %v3074, %v3073
      %s3093 = scalar_lea.vmem %s4, 448
      %v3094 = vld [vmem:[%s3093] sm:$0xf]
      %v3095 = vld [vmem:[%s3093 + $0x4] sm:$0xf]
      %v3096 = vld [vmem:[%s3093 + $0x8] sm:$0xf]
      %v3097 = vld [vmem:[%s3093 + $0xc] sm:$0xf]
      %v3098 = vld [vmem:[%s3093 + $0x10] sm:$0xf]
      %v3099 = vld [vmem:[%s3093 + $0x14] sm:$0xf]
      %v3100 = vld [vmem:[%s3093 + $0x18] sm:$0xf]
      %v3101 = vld [vmem:[%s3093 + $0x1c] sm:$0xf]
      %v3102 = vld [vmem:[%s3093 + $0x20] sm:$0xf]
      %v3103 = vld [vmem:[%s3093 + $0x24] sm:$0xf]
      %v3104 = vld [vmem:[%s3093 + $0x28] sm:$0xf]
      %v3105 = vld [vmem:[%s3093 + $0x2c] sm:$0xf]
      %v3106 = vld [vmem:[%s3093 + $0x30] sm:$0xf]
      %v3107 = vld [vmem:[%s3093 + $0x34] sm:$0xf]
      %v3108 = vld [vmem:[%s3093 + $0x38] sm:$0xf]
      %v3109 = vld [vmem:[%s3093 + $0x3c] sm:$0xf]
      %v3126 = vunpack.c.l.b16 %v3094
      %v3127 = vunpack.c.l.b16 %v3095
      %v3128 = vunpack.c.l.b16 %v3096
      %v3129 = vunpack.c.l.b16 %v3097
      %v3130 = vunpack.c.l.b16 %v3098
      %v3131 = vunpack.c.l.b16 %v3099
      %v3132 = vunpack.c.l.b16 %v3100
      %v3133 = vunpack.c.l.b16 %v3101
      %v3134 = vunpack.c.l.b16 %v3102
      %v3135 = vunpack.c.l.b16 %v3103
      %v3136 = vunpack.c.l.b16 %v3104
      %v3137 = vunpack.c.l.b16 %v3105
      %v3138 = vunpack.c.l.b16 %v3106
      %v3139 = vunpack.c.l.b16 %v3107
      %v3140 = vunpack.c.l.b16 %v3108
      %v3141 = vunpack.c.l.b16 %v3109
      %v3142 = vpack.c.b16 %v3127, %v3126
      %v3143 = vpack.c.b16 %v3129, %v3128
      %v3144 = vpack.c.b16 %v3131, %v3130
      %v3145 = vpack.c.b16 %v3133, %v3132
      %v3146 = vpack.c.b16 %v3135, %v3134
      %v3147 = vpack.c.b16 %v3137, %v3136
      %v3148 = vpack.c.b16 %v3139, %v3138
      %v3149 = vpack.c.b16 %v3141, %v3140
      %3158 = vmatpush.bf16.msra.mxu0 %v3149
      %3159 = vmatpush.bf16.msra.mxu0 %v3148
      %3160 = vmatpush.bf16.msra.mxu0 %v3147
      %3161 = vmatpush.bf16.msra.mxu0 %v3146
      %3162 = vmatpush.bf16.msra.mxu0 %v3145
      %3163 = vmatpush.bf16.msra.mxu0 %v3144
      %3164 = vmatpush.bf16.msra.mxu0 %v3143
      %3165 = vmatpush.bf16.msra.mxu0 %v3142
      %3166 = vmatmul.bf16.gmra.mxu0 %v3075
      %v3167 = vpop.f32.mrf.mxu0
      %v3168 = vadd.f32 0.0, %v3167
      %v3169 = vpop.f32.mrf.mxu0
      %v3170 = vadd.f32 0.0, %v3169
      %3171 = vmatmul.bf16.gmra.mxu0 %v3076
      %v3172 = vpop.f32.mrf.mxu0
      %v3173 = vadd.f32 0.0, %v3172
      %v3174 = vpop.f32.mrf.mxu0
      %v3175 = vadd.f32 0.0, %v3174
      %3176 = vmatmul.bf16.gmra.mxu0 %v3077
      %v3177 = vpop.f32.mrf.mxu0
      %v3178 = vadd.f32 0.0, %v3177
      %v3179 = vpop.f32.mrf.mxu0
      %v3180 = vadd.f32 0.0, %v3179
      %3181 = vmatmul.bf16.gmra.mxu0 %v3078
      %v3182 = vpop.f32.mrf.mxu0
      %v3183 = vadd.f32 0.0, %v3182
      %v3184 = vpop.f32.mrf.mxu0
      %v3185 = vadd.f32 0.0, %v3184
      %3186 = vmatmul.bf16.gmra.mxu0 %v3079
      %v3187 = vpop.f32.mrf.mxu0
      %v3188 = vadd.f32 0.0, %v3187
      %v3189 = vpop.f32.mrf.mxu0
      %v3190 = vadd.f32 0.0, %v3189
      %3191 = vmatmul.bf16.gmra.mxu0 %v3080
      %v3192 = vpop.f32.mrf.mxu0
      %v3193 = vadd.f32 0.0, %v3192
      %v3194 = vpop.f32.mrf.mxu0
      %v3195 = vadd.f32 0.0, %v3194
      %3196 = vmatmul.bf16.gmra.mxu0 %v3081
      %v3197 = vpop.f32.mrf.mxu0
      %v3198 = vadd.f32 0.0, %v3197
      %v3199 = vpop.f32.mrf.mxu0
      %v3200 = vadd.f32 0.0, %v3199
      %3201 = vmatmul.bf16.gmra.mxu0 %v3082
      %v3202 = vpop.f32.mrf.mxu0
      %v3203 = vadd.f32 0.0, %v3202
      %v3204 = vpop.f32.mrf.mxu0
      %v3205 = vadd.f32 0.0, %v3204
      %3206 = vmatmul.bf16.gmra.mxu0 %v3083
      %v3207 = vpop.f32.mrf.mxu0
      %v3208 = vadd.f32 0.0, %v3207
      %v3209 = vpop.f32.mrf.mxu0
      %v3210 = vadd.f32 0.0, %v3209
      %3211 = vmatmul.bf16.gmra.mxu0 %v3084
      %v3212 = vpop.f32.mrf.mxu0
      %v3213 = vadd.f32 0.0, %v3212
      %v3214 = vpop.f32.mrf.mxu0
      %v3215 = vadd.f32 0.0, %v3214
      %3216 = vmatmul.bf16.gmra.mxu0 %v3085
      %v3217 = vpop.f32.mrf.mxu0
      %v3218 = vadd.f32 0.0, %v3217
      %v3219 = vpop.f32.mrf.mxu0
      %v3220 = vadd.f32 0.0, %v3219
      %3221 = vmatmul.bf16.gmra.mxu0 %v3086
      %v3222 = vpop.f32.mrf.mxu0
      %v3223 = vadd.f32 0.0, %v3222
      %v3224 = vpop.f32.mrf.mxu0
      %v3225 = vadd.f32 0.0, %v3224
      %3226 = vmatmul.bf16.gmra.mxu0 %v3087
      %v3227 = vpop.f32.mrf.mxu0
      %v3228 = vadd.f32 0.0, %v3227
      %v3229 = vpop.f32.mrf.mxu0
      %v3230 = vadd.f32 0.0, %v3229
      %3231 = vmatmul.bf16.gmra.mxu0 %v3088
      %v3232 = vpop.f32.mrf.mxu0
      %v3233 = vadd.f32 0.0, %v3232
      %v3234 = vpop.f32.mrf.mxu0
      %v3235 = vadd.f32 0.0, %v3234
      %3236 = vmatmul.bf16.gmra.mxu0 %v3089
      %v3237 = vpop.f32.mrf.mxu0
      %v3238 = vadd.f32 0.0, %v3237
      %v3239 = vpop.f32.mrf.mxu0
      %v3240 = vadd.f32 0.0, %v3239
      %3241 = vmatmul.bf16.gmra.mxu0 %v3090
      %v3242 = vpop.f32.mrf.mxu0
      %v3243 = vadd.f32 0.0, %v3242
      %v3244 = vpop.f32.mrf.mxu0
      %v3245 = vadd.f32 0.0, %v3244
      %3246 = vmatmul.bf16.gmra.mxu0 %v3091
      %v3247 = vpop.f32.mrf.mxu0
      %v3248 = vadd.f32 0.0, %v3247
      %v3249 = vpop.f32.mrf.mxu0
      %v3250 = vadd.f32 0.0, %v3249
      %3251 = vmatmul.bf16.gmra.mxu0 %v3092
      %v3252 = vpop.f32.mrf.mxu0
      %v3253 = vadd.f32 0.0, %v3252
      %v3254 = vpop.f32.mrf.mxu0
      %v3255 = vadd.f32 0.0, %v3254
      %3256 = vdwg.mxu0
      %v3257 = vadd.f32 %v3003, %v3168
      %v3258 = vadd.f32 %v3004, %v3170
      %v3259 = vadd.f32 %v3005, %v3173
      %v3260 = vadd.f32 %v3006, %v3175
      %v3261 = vadd.f32 %v3007, %v3178
      %v3262 = vadd.f32 %v3008, %v3180
      %v3263 = vadd.f32 %v3009, %v3183
      %v3264 = vadd.f32 %v3010, %v3185
      %v3265 = vadd.f32 %v3011, %v3188
      %v3266 = vadd.f32 %v3012, %v3190
      %v3267 = vadd.f32 %v3013, %v3193
      %v3268 = vadd.f32 %v3014, %v3195
      %v3269 = vadd.f32 %v3015, %v3198
      %v3270 = vadd.f32 %v3016, %v3200
      %v3271 = vadd.f32 %v3017, %v3203
      %v3272 = vadd.f32 %v3018, %v3205
      %v3273 = vadd.f32 %v3019, %v3208
      %v3274 = vadd.f32 %v3020, %v3210
      %v3275 = vadd.f32 %v3021, %v3213
      %v3276 = vadd.f32 %v3022, %v3215
      %v3277 = vadd.f32 %v3023, %v3218
      %v3278 = vadd.f32 %v3024, %v3220
      %v3279 = vadd.f32 %v3025, %v3223
      %v3280 = vadd.f32 %v3026, %v3225
      %v3281 = vadd.f32 %v3027, %v3228
      %v3282 = vadd.f32 %v3028, %v3230
      %v3283 = vadd.f32 %v3029, %v3233
      %v3284 = vadd.f32 %v3030, %v3235
      %v3285 = vadd.f32 %v3031, %v3238
      %v3286 = vadd.f32 %v3032, %v3240
      %v3287 = vadd.f32 %v3033, %v3243
      %v3288 = vadd.f32 %v3034, %v3245
      %v3289 = vadd.f32 %v3035, %v3248
      %v3290 = vadd.f32 %v3036, %v3250
      %v3291 = vadd.f32 %v3037, %v3253
      %v3292 = vadd.f32 %v3038, %v3255
      %v3293 = vld [vmem:[#allocation2 + $0x26] sm:$0xff]
      %v3294 = vld [vmem:[#allocation2 + $0x2e] sm:$0xff]
      %v3295 = vld [vmem:[#allocation2 + $0x36] sm:$0xff]
      %v3296 = vld [vmem:[#allocation2 + $0x3e] sm:$0xff]
      %v3297 = vld [vmem:[#allocation2 + $0x46] sm:$0xff]
      %v3298 = vld [vmem:[#allocation2 + $0x4e] sm:$0xff]
      %v3299 = vld [vmem:[#allocation2 + $0x56] sm:$0xff]
      %v3300 = vld [vmem:[#allocation2 + $0x5e] sm:$0xff]
      %v3301 = vld [vmem:[#allocation2 + $0x66] sm:$0xff]
      %v3302 = vld [vmem:[#allocation2 + $0x6e] sm:$0xff]
      %v3303 = vld [vmem:[#allocation2 + $0x76] sm:$0xff]
      %v3304 = vld [vmem:[#allocation2 + $0x7e] sm:$0xff]
      %v3305 = vld [vmem:[#allocation2 + $0x86] sm:$0xff]
      %v3306 = vld [vmem:[#allocation2 + $0x8e] sm:$0xff]
      %v3307 = vld [vmem:[#allocation2 + $0x96] sm:$0xff]
      %v3308 = vld [vmem:[#allocation2 + $0x9e] sm:$0xff]
      %v3309 = vld [vmem:[#allocation2 + $0xa6] sm:$0xff]
      %v3310 = vld [vmem:[#allocation2 + $0xae] sm:$0xff]
      %v3311 = vld [vmem:[#allocation2 + $0xb6] sm:$0xff]
      %v3312 = vld [vmem:[#allocation2 + $0xbe] sm:$0xff]
      %v3313 = vld [vmem:[#allocation2 + $0xc6] sm:$0xff]
      %v3314 = vld [vmem:[#allocation2 + $0xce] sm:$0xff]
      %v3315 = vld [vmem:[#allocation2 + $0xd6] sm:$0xff]
      %v3316 = vld [vmem:[#allocation2 + $0xde] sm:$0xff]
      %v3317 = vld [vmem:[#allocation2 + $0xe6] sm:$0xff]
      %v3318 = vld [vmem:[#allocation2 + $0xee] sm:$0xff]
      %v3319 = vld [vmem:[#allocation2 + $0xf6] sm:$0xff]
      %v3320 = vld [vmem:[#allocation2 + $0xfe] sm:$0xff]
      %v3321 = vld [vmem:[#allocation2 + $0x106] sm:$0xff]
      %v3322 = vld [vmem:[#allocation2 + $0x10e] sm:$0xff]
      %v3323 = vld [vmem:[#allocation2 + $0x116] sm:$0xff]
      %v3324 = vld [vmem:[#allocation2 + $0x11e] sm:$0xff]
      %v3325 = vld [vmem:[#allocation2 + $0x126] sm:$0xff]
      %v3326 = vld [vmem:[#allocation2 + $0x12e] sm:$0xff]
      %v3327 = vld [vmem:[#allocation2 + $0x136] sm:$0xff]
      %v3328 = vld [vmem:[#allocation2 + $0x13e] sm:$0xff]
      %v3329 = vpack.c.bf16 %v3294, %v3293
      %v3330 = vpack.c.bf16 %v3296, %v3295
      %v3331 = vpack.c.bf16 %v3298, %v3297
      %v3332 = vpack.c.bf16 %v3300, %v3299
      %v3333 = vpack.c.bf16 %v3302, %v3301
      %v3334 = vpack.c.bf16 %v3304, %v3303
      %v3335 = vpack.c.bf16 %v3306, %v3305
      %v3336 = vpack.c.bf16 %v3308, %v3307
      %v3337 = vpack.c.bf16 %v3310, %v3309
      %v3338 = vpack.c.bf16 %v3312, %v3311
      %v3339 = vpack.c.bf16 %v3314, %v3313
      %v3340 = vpack.c.bf16 %v3316, %v3315
      %v3341 = vpack.c.bf16 %v3318, %v3317
      %v3342 = vpack.c.bf16 %v3320, %v3319
      %v3343 = vpack.c.bf16 %v3322, %v3321
      %v3344 = vpack.c.bf16 %v3324, %v3323
      %v3345 = vpack.c.bf16 %v3326, %v3325
      %v3346 = vpack.c.bf16 %v3328, %v3327
      %s3347 = scalar_lea.vmem %s4, 512
      %v3348 = vld [vmem:[%s3347] sm:$0xf]
      %v3349 = vld [vmem:[%s3347 + $0x4] sm:$0xf]
      %v3350 = vld [vmem:[%s3347 + $0x8] sm:$0xf]
      %v3351 = vld [vmem:[%s3347 + $0xc] sm:$0xf]
      %v3352 = vld [vmem:[%s3347 + $0x10] sm:$0xf]
      %v3353 = vld [vmem:[%s3347 + $0x14] sm:$0xf]
      %v3354 = vld [vmem:[%s3347 + $0x18] sm:$0xf]
      %v3355 = vld [vmem:[%s3347 + $0x1c] sm:$0xf]
      %v3356 = vld [vmem:[%s3347 + $0x20] sm:$0xf]
      %v3357 = vld [vmem:[%s3347 + $0x24] sm:$0xf]
      %v3358 = vld [vmem:[%s3347 + $0x28] sm:$0xf]
      %v3359 = vld [vmem:[%s3347 + $0x2c] sm:$0xf]
      %v3360 = vld [vmem:[%s3347 + $0x30] sm:$0xf]
      %v3361 = vld [vmem:[%s3347 + $0x34] sm:$0xf]
      %v3362 = vld [vmem:[%s3347 + $0x38] sm:$0xf]
      %v3363 = vld [vmem:[%s3347 + $0x3c] sm:$0xf]
      %v3380 = vunpack.c.l.b16 %v3348
      %v3381 = vunpack.c.l.b16 %v3349
      %v3382 = vunpack.c.l.b16 %v3350
      %v3383 = vunpack.c.l.b16 %v3351
      %v3384 = vunpack.c.l.b16 %v3352
      %v3385 = vunpack.c.l.b16 %v3353
      %v3386 = vunpack.c.l.b16 %v3354
      %v3387 = vunpack.c.l.b16 %v3355
      %v3388 = vunpack.c.l.b16 %v3356
      %v3389 = vunpack.c.l.b16 %v3357
      %v3390 = vunpack.c.l.b16 %v3358
      %v3391 = vunpack.c.l.b16 %v3359
      %v3392 = vunpack.c.l.b16 %v3360
      %v3393 = vunpack.c.l.b16 %v3361
      %v3394 = vunpack.c.l.b16 %v3362
      %v3395 = vunpack.c.l.b16 %v3363
      %v3396 = vpack.c.b16 %v3381, %v3380
      %v3397 = vpack.c.b16 %v3383, %v3382
      %v3398 = vpack.c.b16 %v3385, %v3384
      %v3399 = vpack.c.b16 %v3387, %v3386
      %v3400 = vpack.c.b16 %v3389, %v3388
      %v3401 = vpack.c.b16 %v3391, %v3390
      %v3402 = vpack.c.b16 %v3393, %v3392
      %v3403 = vpack.c.b16 %v3395, %v3394
      %3412 = vmatpush.bf16.msra.mxu0 %v3403
      %3413 = vmatpush.bf16.msra.mxu0 %v3402
      %3414 = vmatpush.bf16.msra.mxu0 %v3401
      %3415 = vmatpush.bf16.msra.mxu0 %v3400
      %3416 = vmatpush.bf16.msra.mxu0 %v3399
      %3417 = vmatpush.bf16.msra.mxu0 %v3398
      %3418 = vmatpush.bf16.msra.mxu0 %v3397
      %3419 = vmatpush.bf16.msra.mxu0 %v3396
      %3420 = vmatmul.bf16.gmra.mxu0 %v3329
      %v3421 = vpop.f32.mrf.mxu0
      %v3422 = vadd.f32 0.0, %v3421
      %v3423 = vpop.f32.mrf.mxu0
      %v3424 = vadd.f32 0.0, %v3423
      %3425 = vmatmul.bf16.gmra.mxu0 %v3330
      %v3426 = vpop.f32.mrf.mxu0
      %v3427 = vadd.f32 0.0, %v3426
      %v3428 = vpop.f32.mrf.mxu0
      %v3429 = vadd.f32 0.0, %v3428
      %3430 = vmatmul.bf16.gmra.mxu0 %v3331
      %v3431 = vpop.f32.mrf.mxu0
      %v3432 = vadd.f32 0.0, %v3431
      %v3433 = vpop.f32.mrf.mxu0
      %v3434 = vadd.f32 0.0, %v3433
      %3435 = vmatmul.bf16.gmra.mxu0 %v3332
      %v3436 = vpop.f32.mrf.mxu0
      %v3437 = vadd.f32 0.0, %v3436
      %v3438 = vpop.f32.mrf.mxu0
      %v3439 = vadd.f32 0.0, %v3438
      %3440 = vmatmul.bf16.gmra.mxu0 %v3333
      %v3441 = vpop.f32.mrf.mxu0
      %v3442 = vadd.f32 0.0, %v3441
      %v3443 = vpop.f32.mrf.mxu0
      %v3444 = vadd.f32 0.0, %v3443
      %3445 = vmatmul.bf16.gmra.mxu0 %v3334
      %v3446 = vpop.f32.mrf.mxu0
      %v3447 = vadd.f32 0.0, %v3446
      %v3448 = vpop.f32.mrf.mxu0
      %v3449 = vadd.f32 0.0, %v3448
      %3450 = vmatmul.bf16.gmra.mxu0 %v3335
      %v3451 = vpop.f32.mrf.mxu0
      %v3452 = vadd.f32 0.0, %v3451
      %v3453 = vpop.f32.mrf.mxu0
      %v3454 = vadd.f32 0.0, %v3453
      %3455 = vmatmul.bf16.gmra.mxu0 %v3336
      %v3456 = vpop.f32.mrf.mxu0
      %v3457 = vadd.f32 0.0, %v3456
      %v3458 = vpop.f32.mrf.mxu0
      %v3459 = vadd.f32 0.0, %v3458
      %3460 = vmatmul.bf16.gmra.mxu0 %v3337
      %v3461 = vpop.f32.mrf.mxu0
      %v3462 = vadd.f32 0.0, %v3461
      %v3463 = vpop.f32.mrf.mxu0
      %v3464 = vadd.f32 0.0, %v3463
      %3465 = vmatmul.bf16.gmra.mxu0 %v3338
      %v3466 = vpop.f32.mrf.mxu0
      %v3467 = vadd.f32 0.0, %v3466
      %v3468 = vpop.f32.mrf.mxu0
      %v3469 = vadd.f32 0.0, %v3468
      %3470 = vmatmul.bf16.gmra.mxu0 %v3339
      %v3471 = vpop.f32.mrf.mxu0
      %v3472 = vadd.f32 0.0, %v3471
      %v3473 = vpop.f32.mrf.mxu0
      %v3474 = vadd.f32 0.0, %v3473
      %3475 = vmatmul.bf16.gmra.mxu0 %v3340
      %v3476 = vpop.f32.mrf.mxu0
      %v3477 = vadd.f32 0.0, %v3476
      %v3478 = vpop.f32.mrf.mxu0
      %v3479 = vadd.f32 0.0, %v3478
      %3480 = vmatmul.bf16.gmra.mxu0 %v3341
      %v3481 = vpop.f32.mrf.mxu0
      %v3482 = vadd.f32 0.0, %v3481
      %v3483 = vpop.f32.mrf.mxu0
      %v3484 = vadd.f32 0.0, %v3483
      %3485 = vmatmul.bf16.gmra.mxu0 %v3342
      %v3486 = vpop.f32.mrf.mxu0
      %v3487 = vadd.f32 0.0, %v3486
      %v3488 = vpop.f32.mrf.mxu0
      %v3489 = vadd.f32 0.0, %v3488
      %3490 = vmatmul.bf16.gmra.mxu0 %v3343
      %v3491 = vpop.f32.mrf.mxu0
      %v3492 = vadd.f32 0.0, %v3491
      %v3493 = vpop.f32.mrf.mxu0
      %v3494 = vadd.f32 0.0, %v3493
      %3495 = vmatmul.bf16.gmra.mxu0 %v3344
      %v3496 = vpop.f32.mrf.mxu0
      %v3497 = vadd.f32 0.0, %v3496
      %v3498 = vpop.f32.mrf.mxu0
      %v3499 = vadd.f32 0.0, %v3498
      %3500 = vmatmul.bf16.gmra.mxu0 %v3345
      %v3501 = vpop.f32.mrf.mxu0
      %v3502 = vadd.f32 0.0, %v3501
      %v3503 = vpop.f32.mrf.mxu0
      %v3504 = vadd.f32 0.0, %v3503
      %3505 = vmatmul.bf16.gmra.mxu0 %v3346
      %v3506 = vpop.f32.mrf.mxu0
      %v3507 = vadd.f32 0.0, %v3506
      %v3508 = vpop.f32.mrf.mxu0
      %v3509 = vadd.f32 0.0, %v3508
      %3510 = vdwg.mxu0
      %v3511 = vadd.f32 %v3257, %v3422
      %v3512 = vadd.f32 %v3258, %v3424
      %v3513 = vadd.f32 %v3259, %v3427
      %v3514 = vadd.f32 %v3260, %v3429
      %v3515 = vadd.f32 %v3261, %v3432
      %v3516 = vadd.f32 %v3262, %v3434
      %v3517 = vadd.f32 %v3263, %v3437
      %v3518 = vadd.f32 %v3264, %v3439
      %v3519 = vadd.f32 %v3265, %v3442
      %v3520 = vadd.f32 %v3266, %v3444
      %v3521 = vadd.f32 %v3267, %v3447
      %v3522 = vadd.f32 %v3268, %v3449
      %v3523 = vadd.f32 %v3269, %v3452
      %v3524 = vadd.f32 %v3270, %v3454
      %v3525 = vadd.f32 %v3271, %v3457
      %v3526 = vadd.f32 %v3272, %v3459
      %v3527 = vadd.f32 %v3273, %v3462
      %v3528 = vadd.f32 %v3274, %v3464
      %v3529 = vadd.f32 %v3275, %v3467
      %v3530 = vadd.f32 %v3276, %v3469
      %v3531 = vadd.f32 %v3277, %v3472
      %v3532 = vadd.f32 %v3278, %v3474
      %v3533 = vadd.f32 %v3279, %v3477
      %v3534 = vadd.f32 %v3280, %v3479
      %v3535 = vadd.f32 %v3281, %v3482
      %v3536 = vadd.f32 %v3282, %v3484
      %v3537 = vadd.f32 %v3283, %v3487
      %v3538 = vadd.f32 %v3284, %v3489
      %v3539 = vadd.f32 %v3285, %v3492
      %v3540 = vadd.f32 %v3286, %v3494
      %v3541 = vadd.f32 %v3287, %v3497
      %v3542 = vadd.f32 %v3288, %v3499
      %v3543 = vadd.f32 %v3289, %v3502
      %v3544 = vadd.f32 %v3290, %v3504
      %v3545 = vadd.f32 %v3291, %v3507
      %v3546 = vadd.f32 %v3292, %v3509
      %v3547 = vld [vmem:[%s5] sm:$0x1]
      %v3549 = vperm.slane %v3547, 0
      %v3551 = vadd.f32 %v3511, %v3549
      %v3552 = vadd.f32 %v3512, %v3549
      %v3553 = vadd.f32 %v3513, %v3549
      %v3554 = vadd.f32 %v3514, %v3549
      %v3555 = vadd.f32 %v3515, %v3549
      %v3556 = vadd.f32 %v3516, %v3549
      %v3557 = vadd.f32 %v3517, %v3549
      %v3558 = vadd.f32 %v3518, %v3549
      %v3559 = vadd.f32 %v3519, %v3549
      %v3560 = vadd.f32 %v3520, %v3549
      %v3561 = vadd.f32 %v3521, %v3549
      %v3562 = vadd.f32 %v3522, %v3549
      %v3563 = vadd.f32 %v3523, %v3549
      %v3564 = vadd.f32 %v3524, %v3549
      %v3565 = vadd.f32 %v3525, %v3549
      %v3566 = vadd.f32 %v3526, %v3549
      %v3567 = vadd.f32 %v3527, %v3549
      %v3568 = vadd.f32 %v3528, %v3549
      %v3569 = vadd.f32 %v3529, %v3549
      %v3570 = vadd.f32 %v3530, %v3549
      %v3571 = vadd.f32 %v3531, %v3549
      %v3572 = vadd.f32 %v3532, %v3549
      %v3573 = vadd.f32 %v3533, %v3549
      %v3574 = vadd.f32 %v3534, %v3549
      %v3575 = vadd.f32 %v3535, %v3549
      %v3576 = vadd.f32 %v3536, %v3549
      %v3577 = vadd.f32 %v3537, %v3549
      %v3578 = vadd.f32 %v3538, %v3549
      %v3579 = vadd.f32 %v3539, %v3549
      %v3580 = vadd.f32 %v3540, %v3549
      %v3581 = vadd.f32 %v3541, %v3549
      %v3582 = vadd.f32 %v3542, %v3549
      %v3583 = vadd.f32 %v3543, %v3549
      %v3584 = vadd.f32 %v3544, %v3549
      %v3585 = vadd.f32 %v3545, %v3549
      %v3586 = vadd.f32 %v3546, %v3549
      %v3587 = vand.u32 2147483647, %v3551
      %v3588 = vand.u32 2147483647, %v3552
      %v3589 = vand.u32 2147483647, %v3553
      %v3590 = vand.u32 2147483647, %v3554
      %v3591 = vand.u32 2147483647, %v3555
      %v3592 = vand.u32 2147483647, %v3556
      %v3593 = vand.u32 2147483647, %v3557
      %v3594 = vand.u32 2147483647, %v3558
      %v3595 = vand.u32 2147483647, %v3559
      %v3596 = vand.u32 2147483647, %v3560
      %v3597 = vand.u32 2147483647, %v3561
      %v3598 = vand.u32 2147483647, %v3562
      %v3599 = vand.u32 2147483647, %v3563
      %v3600 = vand.u32 2147483647, %v3564
      %v3601 = vand.u32 2147483647, %v3565
      %v3602 = vand.u32 2147483647, %v3566
      %v3603 = vand.u32 2147483647, %v3567
      %v3604 = vand.u32 2147483647, %v3568
      %v3605 = vand.u32 2147483647, %v3569
      %v3606 = vand.u32 2147483647, %v3570
      %v3607 = vand.u32 2147483647, %v3571
      %v3608 = vand.u32 2147483647, %v3572
      %v3609 = vand.u32 2147483647, %v3573
      %v3610 = vand.u32 2147483647, %v3574
      %v3611 = vand.u32 2147483647, %v3575
      %v3612 = vand.u32 2147483647, %v3576
      %v3613 = vand.u32 2147483647, %v3577
      %v3614 = vand.u32 2147483647, %v3578
      %v3615 = vand.u32 2147483647, %v3579
      %v3616 = vand.u32 2147483647, %v3580
      %v3617 = vand.u32 2147483647, %v3581
      %v3618 = vand.u32 2147483647, %v3582
      %v3619 = vand.u32 2147483647, %v3583
      %v3620 = vand.u32 2147483647, %v3584
      %v3621 = vand.u32 2147483647, %v3585
      %v3622 = vand.u32 2147483647, %v3586
      %v3623 = vsub.f32 %v3551, %v759
      %v3624 = vsub.f32 %v3552, %v759
      %v3625 = vsub.f32 %v3553, %v759
      %v3626 = vsub.f32 %v3554, %v759
      %v3627 = vsub.f32 %v3555, %v759
      %v3628 = vsub.f32 %v3556, %v759
      %v3629 = vsub.f32 %v3557, %v759
      %v3630 = vsub.f32 %v3558, %v759
      %v3631 = vsub.f32 %v3559, %v759
      %v3632 = vsub.f32 %v3560, %v759
      %v3633 = vsub.f32 %v3561, %v759
      %v3634 = vsub.f32 %v3562, %v759
      %v3635 = vsub.f32 %v3563, %v759
      %v3636 = vsub.f32 %v3564, %v759
      %v3637 = vsub.f32 %v3565, %v759
      %v3638 = vsub.f32 %v3566, %v759
      %v3639 = vsub.f32 %v3567, %v759
      %v3640 = vsub.f32 %v3568, %v759
      %v3641 = vsub.f32 %v3569, %v759
      %v3642 = vsub.f32 %v3570, %v759
      %v3643 = vsub.f32 %v3571, %v759
      %v3644 = vsub.f32 %v3572, %v759
      %v3645 = vsub.f32 %v3573, %v759
      %v3646 = vsub.f32 %v3574, %v759
      %v3647 = vsub.f32 %v3575, %v759
      %v3648 = vsub.f32 %v3576, %v759
      %v3649 = vsub.f32 %v3577, %v759
      %v3650 = vsub.f32 %v3578, %v759
      %v3651 = vsub.f32 %v3579, %v759
      %v3652 = vsub.f32 %v3580, %v759
      %v3653 = vsub.f32 %v3581, %v759
      %v3654 = vsub.f32 %v3582, %v759
      %v3655 = vsub.f32 %v3583, %v759
      %v3656 = vsub.f32 %v3584, %v759
      %v3657 = vsub.f32 %v3585, %v759
      %v3658 = vsub.f32 %v3586, %v759
      %v3659 = vand.u32 2147483647, %v3623
      %v3660 = vand.u32 2147483647, %v3624
      %v3661 = vand.u32 2147483647, %v3625
      %v3662 = vand.u32 2147483647, %v3626
      %v3663 = vand.u32 2147483647, %v3627
      %v3664 = vand.u32 2147483647, %v3628
      %v3665 = vand.u32 2147483647, %v3629
      %v3666 = vand.u32 2147483647, %v3630
      %v3667 = vand.u32 2147483647, %v3631
      %v3668 = vand.u32 2147483647, %v3632
      %v3669 = vand.u32 2147483647, %v3633
      %v3670 = vand.u32 2147483647, %v3634
      %v3671 = vand.u32 2147483647, %v3635
      %v3672 = vand.u32 2147483647, %v3636
      %v3673 = vand.u32 2147483647, %v3637
      %v3674 = vand.u32 2147483647, %v3638
      %v3675 = vand.u32 2147483647, %v3639
      %v3676 = vand.u32 2147483647, %v3640
      %v3677 = vand.u32 2147483647, %v3641
      %v3678 = vand.u32 2147483647, %v3642
      %v3679 = vand.u32 2147483647, %v3643
      %v3680 = vand.u32 2147483647, %v3644
      %v3681 = vand.u32 2147483647, %v3645
      %v3682 = vand.u32 2147483647, %v3646
      %v3683 = vand.u32 2147483647, %v3647
      %v3684 = vand.u32 2147483647, %v3648
      %v3685 = vand.u32 2147483647, %v3649
      %v3686 = vand.u32 2147483647, %v3650
      %v3687 = vand.u32 2147483647, %v3651
      %v3688 = vand.u32 2147483647, %v3652
      %v3689 = vand.u32 2147483647, %v3653
      %v3690 = vand.u32 2147483647, %v3654
      %v3691 = vand.u32 2147483647, %v3655
      %v3692 = vand.u32 2147483647, %v3656
      %v3693 = vand.u32 2147483647, %v3657
      %v3694 = vand.u32 2147483647, %v3658
      %v3695 = vsub.f32 %v3587, %v3659
      %v3696 = vsub.f32 %v3588, %v3660
      %v3697 = vsub.f32 %v3589, %v3661
      %v3698 = vsub.f32 %v3590, %v3662
      %v3699 = vsub.f32 %v3591, %v3663
      %v3700 = vsub.f32 %v3592, %v3664
      %v3701 = vsub.f32 %v3593, %v3665
      %v3702 = vsub.f32 %v3594, %v3666
      %v3703 = vsub.f32 %v3595, %v3667
      %v3704 = vsub.f32 %v3596, %v3668
      %v3705 = vsub.f32 %v3597, %v3669
      %v3706 = vsub.f32 %v3598, %v3670
      %v3707 = vsub.f32 %v3599, %v3671
      %v3708 = vsub.f32 %v3600, %v3672
      %v3709 = vsub.f32 %v3601, %v3673
      %v3710 = vsub.f32 %v3602, %v3674
      %v3711 = vsub.f32 %v3603, %v3675
      %v3712 = vsub.f32 %v3604, %v3676
      %v3713 = vsub.f32 %v3605, %v3677
      %v3714 = vsub.f32 %v3606, %v3678
      %v3715 = vsub.f32 %v3607, %v3679
      %v3716 = vsub.f32 %v3608, %v3680
      %v3717 = vsub.f32 %v3609, %v3681
      %v3718 = vsub.f32 %v3610, %v3682
      %v3719 = vsub.f32 %v3611, %v3683
      %v3720 = vsub.f32 %v3612, %v3684
      %v3721 = vsub.f32 %v3613, %v3685
      %v3722 = vsub.f32 %v3614, %v3686
      %v3723 = vsub.f32 %v3615, %v3687
      %v3724 = vsub.f32 %v3616, %v3688
      %v3725 = vsub.f32 %v3617, %v3689
      %v3726 = vsub.f32 %v3618, %v3690
      %v3727 = vsub.f32 %v3619, %v3691
      %v3728 = vsub.f32 %v3620, %v3692
      %v3729 = vsub.f32 %v3621, %v3693
      %v3730 = vsub.f32 %v3622, %v3694
      %v3731 = vadd.f32 %v3695, %v759
      %v3732 = vadd.f32 %v3696, %v759
      %v3733 = vadd.f32 %v3697, %v759
      %v3734 = vadd.f32 %v3698, %v759
      %v3735 = vadd.f32 %v3699, %v759
      %v3736 = vadd.f32 %v3700, %v759
      %v3737 = vadd.f32 %v3701, %v759
      %v3738 = vadd.f32 %v3702, %v759
      %v3739 = vadd.f32 %v3703, %v759
      %v3740 = vadd.f32 %v3704, %v759
      %v3741 = vadd.f32 %v3705, %v759
      %v3742 = vadd.f32 %v3706, %v759
      %v3743 = vadd.f32 %v3707, %v759
      %v3744 = vadd.f32 %v3708, %v759
      %v3745 = vadd.f32 %v3709, %v759
      %v3746 = vadd.f32 %v3710, %v759
      %v3747 = vadd.f32 %v3711, %v759
      %v3748 = vadd.f32 %v3712, %v759
      %v3749 = vadd.f32 %v3713, %v759
      %v3750 = vadd.f32 %v3714, %v759
      %v3751 = vadd.f32 %v3715, %v759
      %v3752 = vadd.f32 %v3716, %v759
      %v3753 = vadd.f32 %v3717, %v759
      %v3754 = vadd.f32 %v3718, %v759
      %v3755 = vadd.f32 %v3719, %v759
      %v3756 = vadd.f32 %v3720, %v759
      %v3757 = vadd.f32 %v3721, %v759
      %v3758 = vadd.f32 %v3722, %v759
      %v3759 = vadd.f32 %v3723, %v759
      %v3760 = vadd.f32 %v3724, %v759
      %v3761 = vadd.f32 %v3725, %v759
      %v3762 = vadd.f32 %v3726, %v759
      %v3763 = vadd.f32 %v3727, %v759
      %v3764 = vadd.f32 %v3728, %v759
      %v3765 = vadd.f32 %v3729, %v759
      %v3766 = vadd.f32 %v3730, %v759
      %v3767 = vmul.f32 %v3731, 0.5
      %v3768 = vmul.f32 %v3732, 0.5
      %v3769 = vmul.f32 %v3733, 0.5
      %v3770 = vmul.f32 %v3734, 0.5
      %v3771 = vmul.f32 %v3735, 0.5
      %v3772 = vmul.f32 %v3736, 0.5
      %v3773 = vmul.f32 %v3737, 0.5
      %v3774 = vmul.f32 %v3738, 0.5
      %v3775 = vmul.f32 %v3739, 0.5
      %v3776 = vmul.f32 %v3740, 0.5
      %v3777 = vmul.f32 %v3741, 0.5
      %v3778 = vmul.f32 %v3742, 0.5
      %v3779 = vmul.f32 %v3743, 0.5
      %v3780 = vmul.f32 %v3744, 0.5
      %v3781 = vmul.f32 %v3745, 0.5
      %v3782 = vmul.f32 %v3746, 0.5
      %v3783 = vmul.f32 %v3747, 0.5
      %v3784 = vmul.f32 %v3748, 0.5
      %v3785 = vmul.f32 %v3749, 0.5
      %v3786 = vmul.f32 %v3750, 0.5
      %v3787 = vmul.f32 %v3751, 0.5
      %v3788 = vmul.f32 %v3752, 0.5
      %v3789 = vmul.f32 %v3753, 0.5
      %v3790 = vmul.f32 %v3754, 0.5
      %v3791 = vmul.f32 %v3755, 0.5
      %v3792 = vmul.f32 %v3756, 0.5
      %v3793 = vmul.f32 %v3757, 0.5
      %v3794 = vmul.f32 %v3758, 0.5
      %v3795 = vmul.f32 %v3759, 0.5
      %v3796 = vmul.f32 %v3760, 0.5
      %v3797 = vmul.f32 %v3761, 0.5
      %v3798 = vmul.f32 %v3762, 0.5
      %v3799 = vmul.f32 %v3763, 0.5
      %v3800 = vmul.f32 %v3764, 0.5
      %v3801 = vmul.f32 %v3765, 0.5
      %v3802 = vmul.f32 %v3766, 0.5
      %v3803 = vmax.f32 %v3767, 0.0
      %v3804 = vmax.f32 %v3768, 0.0
      %v3805 = vmax.f32 %v3769, 0.0
      %v3806 = vmax.f32 %v3770, 0.0
      %v3807 = vmax.f32 %v3771, 0.0
      %v3808 = vmax.f32 %v3772, 0.0
      %v3809 = vmax.f32 %v3773, 0.0
      %v3810 = vmax.f32 %v3774, 0.0
      %v3811 = vmax.f32 %v3775, 0.0
      %v3812 = vmax.f32 %v3776, 0.0
      %v3813 = vmax.f32 %v3777, 0.0
      %v3814 = vmax.f32 %v3778, 0.0
      %v3815 = vmax.f32 %v3779, 0.0
      %v3816 = vmax.f32 %v3780, 0.0
      %v3817 = vmax.f32 %v3781, 0.0
      %v3818 = vmax.f32 %v3782, 0.0
      %v3819 = vmax.f32 %v3783, 0.0
      %v3820 = vmax.f32 %v3784, 0.0
      %v3821 = vmax.f32 %v3785, 0.0
      %v3822 = vmax.f32 %v3786, 0.0
      %v3823 = vmax.f32 %v3787, 0.0
      %v3824 = vmax.f32 %v3788, 0.0
      %v3825 = vmax.f32 %v3789, 0.0
      %v3826 = vmax.f32 %v3790, 0.0
      %v3827 = vmax.f32 %v3791, 0.0
      %v3828 = vmax.f32 %v3792, 0.0
      %v3829 = vmax.f32 %v3793, 0.0
      %v3830 = vmax.f32 %v3794, 0.0
      %v3831 = vmax.f32 %v3795, 0.0
      %v3832 = vmax.f32 %v3796, 0.0
      %v3833 = vmax.f32 %v3797, 0.0
      %v3834 = vmax.f32 %v3798, 0.0
      %v3835 = vmax.f32 %v3799, 0.0
      %v3836 = vmax.f32 %v3800, 0.0
      %v3837 = vmax.f32 %v3801, 0.0
      %v3838 = vmax.f32 %v3802, 0.0
      %v3839 = vpack.c.bf16 %v3804, %v3803
      %v3840 = vpack.c.bf16 %v3806, %v3805
      %v3841 = vpack.c.bf16 %v3808, %v3807
      %v3842 = vpack.c.bf16 %v3810, %v3809
      %v3843 = vpack.c.bf16 %v3812, %v3811
      %v3844 = vpack.c.bf16 %v3814, %v3813
      %v3845 = vpack.c.bf16 %v3816, %v3815
      %v3846 = vpack.c.bf16 %v3818, %v3817
      %v3847 = vpack.c.bf16 %v3820, %v3819
      %v3848 = vpack.c.bf16 %v3822, %v3821
      %v3849 = vpack.c.bf16 %v3824, %v3823
      %v3850 = vpack.c.bf16 %v3826, %v3825
      %v3851 = vpack.c.bf16 %v3828, %v3827
      %v3852 = vpack.c.bf16 %v3830, %v3829
      %v3853 = vpack.c.bf16 %v3832, %v3831
      %v3854 = vpack.c.bf16 %v3834, %v3833
      %v3855 = vpack.c.bf16 %v3836, %v3835
      %v3856 = vpack.c.bf16 %v3838, %v3837
      %v3857 = vld [vmem:[%s6] sm:$0xf]
      %v3858 = vld [vmem:[%s6 + $0x4] sm:$0xf]
      %v3859 = vld [vmem:[%s6 + $0x8] sm:$0xf]
      %v3860 = vld [vmem:[%s6 + $0xc] sm:$0xf]
      %v3861 = vld [vmem:[%s6 + $0x10] sm:$0xf]
      %v3862 = vld [vmem:[%s6 + $0x14] sm:$0xf]
      %v3863 = vld [vmem:[%s6 + $0x18] sm:$0xf]
      %v3864 = vld [vmem:[%s6 + $0x1c] sm:$0xf]
      %v3865 = vld [vmem:[%s6 + $0x20] sm:$0xf]
      %v3866 = vld [vmem:[%s6 + $0x24] sm:$0xf]
      %v3867 = vld [vmem:[%s6 + $0x28] sm:$0xf]
      %v3868 = vld [vmem:[%s6 + $0x2c] sm:$0xf]
      %v3869 = vld [vmem:[%s6 + $0x30] sm:$0xf]
      %v3870 = vld [vmem:[%s6 + $0x34] sm:$0xf]
      %v3871 = vld [vmem:[%s6 + $0x38] sm:$0xf]
      %v3872 = vld [vmem:[%s6 + $0x3c] sm:$0xf]
      %v3873 = vld [vmem:[%s7] sm:$0x1]
      %v3875 = vperm.slane %v3873, 0
      %v3893 = vunpack.c.l.b16 %v3857
      %v3894 = vunpack.c.l.b16 %v3858
      %v3895 = vunpack.c.l.b16 %v3859
      %v3896 = vunpack.c.l.b16 %v3860
      %v3897 = vunpack.c.l.b16 %v3861
      %v3898 = vunpack.c.l.b16 %v3862
      %v3899 = vunpack.c.l.b16 %v3863
      %v3900 = vunpack.c.l.b16 %v3864
      %v3901 = vunpack.c.l.b16 %v3865
      %v3902 = vunpack.c.l.b16 %v3866
      %v3903 = vunpack.c.l.b16 %v3867
      %v3904 = vunpack.c.l.b16 %v3868
      %v3905 = vunpack.c.l.b16 %v3869
      %v3906 = vunpack.c.l.b16 %v3870
      %v3907 = vunpack.c.l.b16 %v3871
      %v3908 = vunpack.c.l.b16 %v3872
      %v3909 = vpack.c.b16 %v3894, %v3893
      %v3910 = vpack.c.b16 %v3896, %v3895
      %v3911 = vpack.c.b16 %v3898, %v3897
      %v3912 = vpack.c.b16 %v3900, %v3899
      %v3913 = vpack.c.b16 %v3902, %v3901
      %v3914 = vpack.c.b16 %v3904, %v3903
      %v3915 = vpack.c.b16 %v3906, %v3905
      %v3916 = vpack.c.b16 %v3908, %v3907
      %3925 = vmatpush.bf16.msra.mxu0 %v3916
      %3926 = vmatpush.bf16.msra.mxu0 %v3915
      %3927 = vmatpush.bf16.msra.mxu0 %v3914
      %3928 = vmatpush.bf16.msra.mxu0 %v3913
      %3929 = vmatpush.bf16.msra.mxu0 %v3912
      %3930 = vmatpush.bf16.msra.mxu0 %v3911
      %3931 = vmatpush.bf16.msra.mxu0 %v3910
      %3932 = vmatpush.bf16.msra.mxu0 %v3909
      %3933 = vmatmul.bf16.gmra.mxu0 %v3839
      %v3934 = vpop.f32.mrf.mxu0
      %v3935 = vadd.f32 %v3875, %v3934
      %v3936 = vpop.f32.mrf.mxu0
      %v3937 = vadd.f32 %v3875, %v3936
      %3938 = vmatmul.bf16.gmra.mxu0 %v3840
      %v3939 = vpop.f32.mrf.mxu0
      %v3940 = vadd.f32 %v3875, %v3939
      %v3941 = vpop.f32.mrf.mxu0
      %v3942 = vadd.f32 %v3875, %v3941
      %3943 = vmatmul.bf16.gmra.mxu0 %v3841
      %v3944 = vpop.f32.mrf.mxu0
      %v3945 = vadd.f32 %v3875, %v3944
      %v3946 = vpop.f32.mrf.mxu0
      %v3947 = vadd.f32 %v3875, %v3946
      %3948 = vmatmul.bf16.gmra.mxu0 %v3842
      %v3949 = vpop.f32.mrf.mxu0
      %v3950 = vadd.f32 %v3875, %v3949
      %v3951 = vpop.f32.mrf.mxu0
      %v3952 = vadd.f32 %v3875, %v3951
      %3953 = vmatmul.bf16.gmra.mxu0 %v3843
      %v3954 = vpop.f32.mrf.mxu0
      %v3955 = vadd.f32 %v3875, %v3954
      %v3956 = vpop.f32.mrf.mxu0
      %v3957 = vadd.f32 %v3875, %v3956
      %3958 = vmatmul.bf16.gmra.mxu0 %v3844
      %v3959 = vpop.f32.mrf.mxu0
      %v3960 = vadd.f32 %v3875, %v3959
      %v3961 = vpop.f32.mrf.mxu0
      %v3962 = vadd.f32 %v3875, %v3961
      %3963 = vmatmul.bf16.gmra.mxu0 %v3845
      %v3964 = vpop.f32.mrf.mxu0
      %v3965 = vadd.f32 %v3875, %v3964
      %v3966 = vpop.f32.mrf.mxu0
      %v3967 = vadd.f32 %v3875, %v3966
      %3968 = vmatmul.bf16.gmra.mxu0 %v3846
      %v3969 = vpop.f32.mrf.mxu0
      %v3970 = vadd.f32 %v3875, %v3969
      %v3971 = vpop.f32.mrf.mxu0
      %v3972 = vadd.f32 %v3875, %v3971
      %3973 = vmatmul.bf16.gmra.mxu0 %v3847
      %v3974 = vpop.f32.mrf.mxu0
      %v3975 = vadd.f32 %v3875, %v3974
      %v3976 = vpop.f32.mrf.mxu0
      %v3977 = vadd.f32 %v3875, %v3976
      %3978 = vmatmul.bf16.gmra.mxu0 %v3848
      %v3979 = vpop.f32.mrf.mxu0
      %v3980 = vadd.f32 %v3875, %v3979
      %v3981 = vpop.f32.mrf.mxu0
      %v3982 = vadd.f32 %v3875, %v3981
      %3983 = vmatmul.bf16.gmra.mxu0 %v3849
      %v3984 = vpop.f32.mrf.mxu0
      %v3985 = vadd.f32 %v3875, %v3984
      %v3986 = vpop.f32.mrf.mxu0
      %v3987 = vadd.f32 %v3875, %v3986
      %3988 = vmatmul.bf16.gmra.mxu0 %v3850
      %v3989 = vpop.f32.mrf.mxu0
      %v3990 = vadd.f32 %v3875, %v3989
      %v3991 = vpop.f32.mrf.mxu0
      %v3992 = vadd.f32 %v3875, %v3991
      %3993 = vmatmul.bf16.gmra.mxu0 %v3851
      %v3994 = vpop.f32.mrf.mxu0
      %v3995 = vadd.f32 %v3875, %v3994
      %v3996 = vpop.f32.mrf.mxu0
      %v3997 = vadd.f32 %v3875, %v3996
      %3998 = vmatmul.bf16.gmra.mxu0 %v3852
      %v3999 = vpop.f32.mrf.mxu0
      %v4000 = vadd.f32 %v3875, %v3999
      %v4001 = vpop.f32.mrf.mxu0
      %v4002 = vadd.f32 %v3875, %v4001
      %4003 = vmatmul.bf16.gmra.mxu0 %v3853
      %v4004 = vpop.f32.mrf.mxu0
      %v4005 = vadd.f32 %v3875, %v4004
      %v4006 = vpop.f32.mrf.mxu0
      %v4007 = vadd.f32 %v3875, %v4006
      %4008 = vmatmul.bf16.gmra.mxu0 %v3854
      %v4009 = vpop.f32.mrf.mxu0
      %v4010 = vadd.f32 %v3875, %v4009
      %v4011 = vpop.f32.mrf.mxu0
      %v4012 = vadd.f32 %v3875, %v4011
      %4013 = vmatmul.bf16.gmra.mxu0 %v3855
      %v4014 = vpop.f32.mrf.mxu0
      %v4015 = vadd.f32 %v3875, %v4014
      %v4016 = vpop.f32.mrf.mxu0
      %v4017 = vadd.f32 %v3875, %v4016
      %4018 = vmatmul.bf16.gmra.mxu0 %v3856
      %v4019 = vpop.f32.mrf.mxu0
      %v4020 = vadd.f32 %v3875, %v4019
      %v4021 = vpop.f32.mrf.mxu0
      %v4022 = vadd.f32 %v3875, %v4021
      %4023 = vdwg.mxu0
      %vm4061 = vcmask 1044480
      %v4062 = vrot.slane %v376, 3
      %v4063 = vrot.slane %v377, 3
      %v4064 = vsel %vm4061, %v4062, %v4063
      %v4065 = vrot.slane %v378, 3
      %v4066 = vsel %vm4061, %v4063, %v4065
      %v4067 = vrot.slane %v379, 3
      %v4068 = vsel %vm4061, %v4065, %v4067
      %v4069 = vrot.slane %v380, 3
      %v4070 = vsel %vm4061, %v4067, %v4069
      %v4071 = vrot.slane %v381, 3
      %v4072 = vsel %vm4061, %v4069, %v4071
      %v4073 = vrot.slane %v382, 3
      %v4074 = vsel %vm4061, %v4071, %v4073
      %v4075 = vrot.slane %v383, 3
      %v4076 = vsel %vm4061, %v4073, %v4075
      %v4077 = vrot.slane %v384, 3
      %v4078 = vsel %vm4061, %v4075, %v4077
      %v4079 = vrot.slane %v385, 3
      %v4080 = vsel %vm4061, %v4077, %v4079
      %v4081 = vrot.slane %v386, 3
      %v4082 = vsel %vm4061, %v4079, %v4081
      %v4083 = vrot.slane %v387, 3
      %v4084 = vsel %vm4061, %v4081, %v4083
      %v4085 = vrot.slane %v388, 3
      %v4086 = vsel %vm4061, %v4083, %v4085
      %v4087 = vrot.slane %v389, 3
      %v4088 = vsel %vm4061, %v4085, %v4087
      %v4089 = vrot.slane %v390, 3
      %v4090 = vsel %vm4061, %v4087, %v4089
      %v4091 = vrot.slane %v391, 3
      %v4092 = vsel %vm4061, %v4089, %v4091
      %v4093 = vrot.slane %v392, 3
      %v4094 = vsel %vm4061, %v4091, %v4093
      %v4095 = vrot.slane %v393, 3
      %v4096 = vsel %vm4061, %v4093, %v4095
      %v4097 = vrot.slane %v394, 3
      %v4098 = vsel %vm4061, %v4095, %v4097
      %v4099 = vrot.slane %v395, 3
      %v4100 = vsel %vm4061, %v4097, %v4099
      %v4101 = vrot.slane %v396, 3
      %v4102 = vsel %vm4061, %v4099, %v4101
      %v4103 = vrot.slane %v397, 3
      %v4104 = vsel %vm4061, %v4101, %v4103
      %v4105 = vrot.slane %v398, 3
      %v4106 = vsel %vm4061, %v4103, %v4105
      %v4107 = vrot.slane %v399, 3
      %v4108 = vsel %vm4061, %v4105, %v4107
      %v4109 = vrot.slane %v400, 3
      %v4110 = vsel %vm4061, %v4107, %v4109
      %v4111 = vrot.slane %v401, 3
      %v4112 = vsel %vm4061, %v4109, %v4111
      %v4113 = vrot.slane %v402, 3
      %v4114 = vsel %vm4061, %v4111, %v4113
      %v4115 = vrot.slane %v403, 3
      %v4116 = vsel %vm4061, %v4113, %v4115
      %v4117 = vrot.slane %v404, 3
      %v4118 = vsel %vm4061, %v4115, %v4117
      %v4119 = vrot.slane %v405, 3
      %v4120 = vsel %vm4061, %v4117, %v4119
      %v4121 = vrot.slane %v406, 3
      %v4122 = vsel %vm4061, %v4119, %v4121
      %v4123 = vrot.slane %v407, 3
      %v4124 = vsel %vm4061, %v4121, %v4123
      %v4125 = vrot.slane %v408, 3
      %v4126 = vsel %vm4061, %v4123, %v4125
      %v4127 = vrot.slane %v409, 3
      %v4128 = vsel %vm4061, %v4125, %v4127
      %v4129 = vrot.slane %v410, 3
      %v4130 = vsel %vm4061, %v4127, %v4129
      %v4131 = vrot.slane %v411, 3
      %v4132 = vsel %vm4061, %v4129, %v4131
      %v4133 = vrot.slane %v412, 3
      %v4134 = vsel %vm4061, %v4131, %v4133
      %v4171 = vadd.f32 %v3935, %v4064
      %v4172 = vadd.f32 %v3937, %v4066
      %v4173 = vadd.f32 %v3940, %v4068
      %v4174 = vadd.f32 %v3942, %v4070
      %v4175 = vadd.f32 %v3945, %v4072
      %v4176 = vadd.f32 %v3947, %v4074
      %v4177 = vadd.f32 %v3950, %v4076
      %v4178 = vadd.f32 %v3952, %v4078
      %v4179 = vadd.f32 %v3955, %v4080
      %v4180 = vadd.f32 %v3957, %v4082
      %v4181 = vadd.f32 %v3960, %v4084
      %v4182 = vadd.f32 %v3962, %v4086
      %v4183 = vadd.f32 %v3965, %v4088
      %v4184 = vadd.f32 %v3967, %v4090
      %v4185 = vadd.f32 %v3970, %v4092
      %v4186 = vadd.f32 %v3972, %v4094
      %v4187 = vadd.f32 %v3975, %v4096
      %v4188 = vadd.f32 %v3977, %v4098
      %v4189 = vadd.f32 %v3980, %v4100
      %v4190 = vadd.f32 %v3982, %v4102
      %v4191 = vadd.f32 %v3985, %v4104
      %v4192 = vadd.f32 %v3987, %v4106
      %v4193 = vadd.f32 %v3990, %v4108
      %v4194 = vadd.f32 %v3992, %v4110
      %v4195 = vadd.f32 %v3995, %v4112
      %v4196 = vadd.f32 %v3997, %v4114
      %v4197 = vadd.f32 %v4000, %v4116
      %v4198 = vadd.f32 %v4002, %v4118
      %v4199 = vadd.f32 %v4005, %v4120
      %v4200 = vadd.f32 %v4007, %v4122
      %v4201 = vadd.f32 %v4010, %v4124
      %v4202 = vadd.f32 %v4012, %v4126
      %v4203 = vadd.f32 %v4015, %v4128
      %v4204 = vadd.f32 %v4017, %v4130
      %v4205 = vadd.f32 %v4020, %v4132
      %v4206 = vadd.f32 %v4022, %v4134
      %v4207 = vand.u32 2147483647, %v4171
      %v4208 = vand.u32 2147483647, %v4172
      %v4209 = vand.u32 2147483647, %v4173
      %v4210 = vand.u32 2147483647, %v4174
      %v4211 = vand.u32 2147483647, %v4175
      %v4212 = vand.u32 2147483647, %v4176
      %v4213 = vand.u32 2147483647, %v4177
      %v4214 = vand.u32 2147483647, %v4178
      %v4215 = vand.u32 2147483647, %v4179
      %v4216 = vand.u32 2147483647, %v4180
      %v4217 = vand.u32 2147483647, %v4181
      %v4218 = vand.u32 2147483647, %v4182
      %v4219 = vand.u32 2147483647, %v4183
      %v4220 = vand.u32 2147483647, %v4184
      %v4221 = vand.u32 2147483647, %v4185
      %v4222 = vand.u32 2147483647, %v4186
      %v4223 = vand.u32 2147483647, %v4187
      %v4224 = vand.u32 2147483647, %v4188
      %v4225 = vand.u32 2147483647, %v4189
      %v4226 = vand.u32 2147483647, %v4190
      %v4227 = vand.u32 2147483647, %v4191
      %v4228 = vand.u32 2147483647, %v4192
      %v4229 = vand.u32 2147483647, %v4193
      %v4230 = vand.u32 2147483647, %v4194
      %v4231 = vand.u32 2147483647, %v4195
      %v4232 = vand.u32 2147483647, %v4196
      %v4233 = vand.u32 2147483647, %v4197
      %v4234 = vand.u32 2147483647, %v4198
      %v4235 = vand.u32 2147483647, %v4199
      %v4236 = vand.u32 2147483647, %v4200
      %v4237 = vand.u32 2147483647, %v4201
      %v4238 = vand.u32 2147483647, %v4202
      %v4239 = vand.u32 2147483647, %v4203
      %v4240 = vand.u32 2147483647, %v4204
      %v4241 = vand.u32 2147483647, %v4205
      %v4242 = vand.u32 2147483647, %v4206
      %v4243 = vsub.f32 %v4171, %v759
      %v4244 = vsub.f32 %v4172, %v759
      %v4245 = vsub.f32 %v4173, %v759
      %v4246 = vsub.f32 %v4174, %v759
      %v4247 = vsub.f32 %v4175, %v759
      %v4248 = vsub.f32 %v4176, %v759
      %v4249 = vsub.f32 %v4177, %v759
      %v4250 = vsub.f32 %v4178, %v759
      %v4251 = vsub.f32 %v4179, %v759
      %v4252 = vsub.f32 %v4180, %v759
      %v4253 = vsub.f32 %v4181, %v759
      %v4254 = vsub.f32 %v4182, %v759
      %v4255 = vsub.f32 %v4183, %v759
      %v4256 = vsub.f32 %v4184, %v759
      %v4257 = vsub.f32 %v4185, %v759
      %v4258 = vsub.f32 %v4186, %v759
      %v4259 = vsub.f32 %v4187, %v759
      %v4260 = vsub.f32 %v4188, %v759
      %v4261 = vsub.f32 %v4189, %v759
      %v4262 = vsub.f32 %v4190, %v759
      %v4263 = vsub.f32 %v4191, %v759
      %v4264 = vsub.f32 %v4192, %v759
      %v4265 = vsub.f32 %v4193, %v759
      %v4266 = vsub.f32 %v4194, %v759
      %v4267 = vsub.f32 %v4195, %v759
      %v4268 = vsub.f32 %v4196, %v759
      %v4269 = vsub.f32 %v4197, %v759
      %v4270 = vsub.f32 %v4198, %v759
      %v4271 = vsub.f32 %v4199, %v759
      %v4272 = vsub.f32 %v4200, %v759
      %v4273 = vsub.f32 %v4201, %v759
      %v4274 = vsub.f32 %v4202, %v759
      %v4275 = vsub.f32 %v4203, %v759
      %v4276 = vsub.f32 %v4204, %v759
      %v4277 = vsub.f32 %v4205, %v759
      %v4278 = vsub.f32 %v4206, %v759
      %v4279 = vand.u32 2147483647, %v4243
      %v4280 = vand.u32 2147483647, %v4244
      %v4281 = vand.u32 2147483647, %v4245
      %v4282 = vand.u32 2147483647, %v4246
      %v4283 = vand.u32 2147483647, %v4247
      %v4284 = vand.u32 2147483647, %v4248
      %v4285 = vand.u32 2147483647, %v4249
      %v4286 = vand.u32 2147483647, %v4250
      %v4287 = vand.u32 2147483647, %v4251
      %v4288 = vand.u32 2147483647, %v4252
      %v4289 = vand.u32 2147483647, %v4253
      %v4290 = vand.u32 2147483647, %v4254
      %v4291 = vand.u32 2147483647, %v4255
      %v4292 = vand.u32 2147483647, %v4256
      %v4293 = vand.u32 2147483647, %v4257
      %v4294 = vand.u32 2147483647, %v4258
      %v4295 = vand.u32 2147483647, %v4259
      %v4296 = vand.u32 2147483647, %v4260
      %v4297 = vand.u32 2147483647, %v4261
      %v4298 = vand.u32 2147483647, %v4262
      %v4299 = vand.u32 2147483647, %v4263
      %v4300 = vand.u32 2147483647, %v4264
      %v4301 = vand.u32 2147483647, %v4265
      %v4302 = vand.u32 2147483647, %v4266
      %v4303 = vand.u32 2147483647, %v4267
      %v4304 = vand.u32 2147483647, %v4268
      %v4305 = vand.u32 2147483647, %v4269
      %v4306 = vand.u32 2147483647, %v4270
      %v4307 = vand.u32 2147483647, %v4271
      %v4308 = vand.u32 2147483647, %v4272
      %v4309 = vand.u32 2147483647, %v4273
      %v4310 = vand.u32 2147483647, %v4274
      %v4311 = vand.u32 2147483647, %v4275
      %v4312 = vand.u32 2147483647, %v4276
      %v4313 = vand.u32 2147483647, %v4277
      %v4314 = vand.u32 2147483647, %v4278
      %v4315 = vsub.f32 %v4207, %v4279
      %v4316 = vsub.f32 %v4208, %v4280
      %v4317 = vsub.f32 %v4209, %v4281
      %v4318 = vsub.f32 %v4210, %v4282
      %v4319 = vsub.f32 %v4211, %v4283
      %v4320 = vsub.f32 %v4212, %v4284
      %v4321 = vsub.f32 %v4213, %v4285
      %v4322 = vsub.f32 %v4214, %v4286
      %v4323 = vsub.f32 %v4215, %v4287
      %v4324 = vsub.f32 %v4216, %v4288
      %v4325 = vsub.f32 %v4217, %v4289
      %v4326 = vsub.f32 %v4218, %v4290
      %v4327 = vsub.f32 %v4219, %v4291
      %v4328 = vsub.f32 %v4220, %v4292
      %v4329 = vsub.f32 %v4221, %v4293
      %v4330 = vsub.f32 %v4222, %v4294
      %v4331 = vsub.f32 %v4223, %v4295
      %v4332 = vsub.f32 %v4224, %v4296
      %v4333 = vsub.f32 %v4225, %v4297
      %v4334 = vsub.f32 %v4226, %v4298
      %v4335 = vsub.f32 %v4227, %v4299
      %v4336 = vsub.f32 %v4228, %v4300
      %v4337 = vsub.f32 %v4229, %v4301
      %v4338 = vsub.f32 %v4230, %v4302
      %v4339 = vsub.f32 %v4231, %v4303
      %v4340 = vsub.f32 %v4232, %v4304
      %v4341 = vsub.f32 %v4233, %v4305
      %v4342 = vsub.f32 %v4234, %v4306
      %v4343 = vsub.f32 %v4235, %v4307
      %v4344 = vsub.f32 %v4236, %v4308
      %v4345 = vsub.f32 %v4237, %v4309
      %v4346 = vsub.f32 %v4238, %v4310
      %v4347 = vsub.f32 %v4239, %v4311
      %v4348 = vsub.f32 %v4240, %v4312
      %v4349 = vsub.f32 %v4241, %v4313
      %v4350 = vsub.f32 %v4242, %v4314
      %v4351 = vadd.f32 %v4315, %v759
      %v4352 = vadd.f32 %v4316, %v759
      %v4353 = vadd.f32 %v4317, %v759
      %v4354 = vadd.f32 %v4318, %v759
      %v4355 = vadd.f32 %v4319, %v759
      %v4356 = vadd.f32 %v4320, %v759
      %v4357 = vadd.f32 %v4321, %v759
      %v4358 = vadd.f32 %v4322, %v759
      %v4359 = vadd.f32 %v4323, %v759
      %v4360 = vadd.f32 %v4324, %v759
      %v4361 = vadd.f32 %v4325, %v759
      %v4362 = vadd.f32 %v4326, %v759
      %v4363 = vadd.f32 %v4327, %v759
      %v4364 = vadd.f32 %v4328, %v759
      %v4365 = vadd.f32 %v4329, %v759
      %v4366 = vadd.f32 %v4330, %v759
      %v4367 = vadd.f32 %v4331, %v759
      %v4368 = vadd.f32 %v4332, %v759
      %v4369 = vadd.f32 %v4333, %v759
      %v4370 = vadd.f32 %v4334, %v759
      %v4371 = vadd.f32 %v4335, %v759
      %v4372 = vadd.f32 %v4336, %v759
      %v4373 = vadd.f32 %v4337, %v759
      %v4374 = vadd.f32 %v4338, %v759
      %v4375 = vadd.f32 %v4339, %v759
      %v4376 = vadd.f32 %v4340, %v759
      %v4377 = vadd.f32 %v4341, %v759
      %v4378 = vadd.f32 %v4342, %v759
      %v4379 = vadd.f32 %v4343, %v759
      %v4380 = vadd.f32 %v4344, %v759
      %v4381 = vadd.f32 %v4345, %v759
      %v4382 = vadd.f32 %v4346, %v759
      %v4383 = vadd.f32 %v4347, %v759
      %v4384 = vadd.f32 %v4348, %v759
      %v4385 = vadd.f32 %v4349, %v759
      %v4386 = vadd.f32 %v4350, %v759
      %v4387 = vmul.f32 %v4351, 0.5
      %v4388 = vmul.f32 %v4352, 0.5
      %v4389 = vmul.f32 %v4353, 0.5
      %v4390 = vmul.f32 %v4354, 0.5
      %v4391 = vmul.f32 %v4355, 0.5
      %v4392 = vmul.f32 %v4356, 0.5
      %v4393 = vmul.f32 %v4357, 0.5
      %v4394 = vmul.f32 %v4358, 0.5
      %v4395 = vmul.f32 %v4359, 0.5
      %v4396 = vmul.f32 %v4360, 0.5
      %v4397 = vmul.f32 %v4361, 0.5
      %v4398 = vmul.f32 %v4362, 0.5
      %v4399 = vmul.f32 %v4363, 0.5
      %v4400 = vmul.f32 %v4364, 0.5
      %v4401 = vmul.f32 %v4365, 0.5
      %v4402 = vmul.f32 %v4366, 0.5
      %v4403 = vmul.f32 %v4367, 0.5
      %v4404 = vmul.f32 %v4368, 0.5
      %v4405 = vmul.f32 %v4369, 0.5
      %v4406 = vmul.f32 %v4370, 0.5
      %v4407 = vmul.f32 %v4371, 0.5
      %v4408 = vmul.f32 %v4372, 0.5
      %v4409 = vmul.f32 %v4373, 0.5
      %v4410 = vmul.f32 %v4374, 0.5
      %v4411 = vmul.f32 %v4375, 0.5
      %v4412 = vmul.f32 %v4376, 0.5
      %v4413 = vmul.f32 %v4377, 0.5
      %v4414 = vmul.f32 %v4378, 0.5
      %v4415 = vmul.f32 %v4379, 0.5
      %v4416 = vmul.f32 %v4380, 0.5
      %v4417 = vmul.f32 %v4381, 0.5
      %v4418 = vmul.f32 %v4382, 0.5
      %v4419 = vmul.f32 %v4383, 0.5
      %v4420 = vmul.f32 %v4384, 0.5
      %v4421 = vmul.f32 %v4385, 0.5
      %v4422 = vmul.f32 %v4386, 0.5
      %v4423 = vmax.f32 %v4387, 0.0
      %v4424 = vmax.f32 %v4388, 0.0
      %v4425 = vmax.f32 %v4389, 0.0
      %v4426 = vmax.f32 %v4390, 0.0
      %v4427 = vmax.f32 %v4391, 0.0
      %v4428 = vmax.f32 %v4392, 0.0
      %v4429 = vmax.f32 %v4393, 0.0
      %v4430 = vmax.f32 %v4394, 0.0
      %v4431 = vmax.f32 %v4395, 0.0
      %v4432 = vmax.f32 %v4396, 0.0
      %v4433 = vmax.f32 %v4397, 0.0
      %v4434 = vmax.f32 %v4398, 0.0
      %v4435 = vmax.f32 %v4399, 0.0
      %v4436 = vmax.f32 %v4400, 0.0
      %v4437 = vmax.f32 %v4401, 0.0
      %v4438 = vmax.f32 %v4402, 0.0
      %v4439 = vmax.f32 %v4403, 0.0
      %v4440 = vmax.f32 %v4404, 0.0
      %v4441 = vmax.f32 %v4405, 0.0
      %v4442 = vmax.f32 %v4406, 0.0
      %v4443 = vmax.f32 %v4407, 0.0
      %v4444 = vmax.f32 %v4408, 0.0
      %v4445 = vmax.f32 %v4409, 0.0
      %v4446 = vmax.f32 %v4410, 0.0
      %v4447 = vmax.f32 %v4411, 0.0
      %v4448 = vmax.f32 %v4412, 0.0
      %v4449 = vmax.f32 %v4413, 0.0
      %v4450 = vmax.f32 %v4414, 0.0
      %v4451 = vmax.f32 %v4415, 0.0
      %v4452 = vmax.f32 %v4416, 0.0
      %v4453 = vmax.f32 %v4417, 0.0
      %v4454 = vmax.f32 %v4418, 0.0
      %v4455 = vmax.f32 %v4419, 0.0
      %v4456 = vmax.f32 %v4420, 0.0
      %v4457 = vmax.f32 %v4421, 0.0
      %v4458 = vmax.f32 %v4422, 0.0
      %4459 = vst [vmem:[%s333] sm:$0xff] %v4423
      %4460 = vst [vmem:[%s333 + $0x8] sm:$0xff] %v4424
      %4461 = vst [vmem:[%s333 + $0x10] sm:$0xff] %v4425
      %4462 = vst [vmem:[%s333 + $0x18] sm:$0xff] %v4426
      %4463 = vst [vmem:[%s333 + $0x20] sm:$0xff] %v4427
      %4464 = vst [vmem:[%s333 + $0x28] sm:$0xff] %v4428
      %4465 = vst [vmem:[%s333 + $0x30] sm:$0xff] %v4429
      %4466 = vst [vmem:[%s333 + $0x38] sm:$0xff] %v4430
      %4467 = vst [vmem:[%s333 + $0x40] sm:$0xff] %v4431
      %4468 = vst [vmem:[%s333 + $0x48] sm:$0xff] %v4432
      %4469 = vst [vmem:[%s333 + $0x50] sm:$0xff] %v4433
      %4470 = vst [vmem:[%s333 + $0x58] sm:$0xff] %v4434
      %4471 = vst [vmem:[%s333 + $0x60] sm:$0xff] %v4435
      %4472 = vst [vmem:[%s333 + $0x68] sm:$0xff] %v4436
      %4473 = vst [vmem:[%s333 + $0x70] sm:$0xff] %v4437
      %4474 = vst [vmem:[%s333 + $0x78] sm:$0xff] %v4438
      %4475 = vst [vmem:[%s333 + $0x80] sm:$0xff] %v4439
      %4476 = vst [vmem:[%s333 + $0x88] sm:$0xff] %v4440
      %4477 = vst [vmem:[%s333 + $0x90] sm:$0xff] %v4441
      %4478 = vst [vmem:[%s333 + $0x98] sm:$0xff] %v4442
      %4479 = vst [vmem:[%s333 + $0xa0] sm:$0xff] %v4443
      %4480 = vst [vmem:[%s333 + $0xa8] sm:$0xff] %v4444
      %4481 = vst [vmem:[%s333 + $0xb0] sm:$0xff] %v4445
      %4482 = vst [vmem:[%s333 + $0xb8] sm:$0xff] %v4446
      %4483 = vst [vmem:[%s333 + $0xc0] sm:$0xff] %v4447
      %4484 = vst [vmem:[%s333 + $0xc8] sm:$0xff] %v4448
      %4485 = vst [vmem:[%s333 + $0xd0] sm:$0xff] %v4449
      %4486 = vst [vmem:[%s333 + $0xd8] sm:$0xff] %v4450
      %4487 = vst [vmem:[%s333 + $0xe0] sm:$0xff] %v4451
      %4488 = vst [vmem:[%s333 + $0xe8] sm:$0xff] %v4452
      %4489 = vst [vmem:[%s333 + $0xf0] sm:$0xff] %v4453
      %4490 = vst [vmem:[%s333 + $0xf8] sm:$0xff] %v4454
      %4491 = vst [vmem:[%s333 + $0x100] sm:$0xff] %v4455
      %4492 = vst [vmem:[%s333 + $0x108] sm:$0xff] %v4456
      %4493 = vst [vmem:[%s333 + $0x110] sm:$0xff] %v4457
      %4494 = vst [vmem:[%s333 + $0x118] sm:$0xff] %v4458
      %p4495 = scmp.lt.s32.totalorder %s21, 1
      %s4496 = scalar_select %p4495, %s21, 1
      %s4497 = smul.addr %s4496, 36
      %s4498 = smul.addr %s4497, 8
      %s4499 = scalar_lea.vmem %s9, %s4498
      // Predicated region
      $region57: #{bottleneck_forward.1} parent=55 // pred_check
        %p4500 = pneg %p233
      $region58: #{bottleneck_forward.1} parent=55 // pred_check_branch
        %4502 = sbr.rel (%p4500) target = $region60
      $region59: #{bottleneck_forward.1} parent=55 // pred_region
        _
      $region60: #{bottleneck_forward.1} parent=55 // pred_fallthru
        _
    $region56: #{bottleneck_forward.1} parent=5 // pred_fallthru
      _
    %p4503 = scmp.le.s32.totalorder 2, %s16
    // Predicated region
    $region61: #{bottleneck_forward.1} parent=5 // pred_check
      %p4504 = pneg %p4503
    $region62: #{bottleneck_forward.1} parent=5 // pred_check_branch
      %4506 = sbr.rel (%p4504) target = $region64
    $region63: #{bottleneck_forward.1} parent=5 // pred_region
      %s4507 = ssub.s32 %s16, 2
      // Predicated region
      $region65: #{bottleneck_forward.1} parent=63 // pred_check
        %p4508 = pneg %p239
      $region66: #{bottleneck_forward.1} parent=63 // pred_check_branch
        %4510 = sbr.rel (%p4508) target = $region68
      $region67: #{bottleneck_forward.1} parent=63 // pred_region
        %p4511 = scmp.lt.s32.totalorder %s22, 1
        %s4512 = scalar_select %p4511, %s22, 1
        %s4513 = smul.addr %s4512, 36
        %s4514 = smul.addr %s4513, 8
        %s4515 = scalar_lea.vmem %s9, %s4514
      $region68: #{bottleneck_forward.1} parent=63 // pred_fallthru
        _
    $region64: #{bottleneck_forward.1} parent=5 // pred_fallthru
      _
  $region6: #{bottleneck_forward.1} parent=0 // loop_footer
    %s20 = sadd.s32 1, %s16
  $region7: #{bottleneck_forward.1} parent=0 // loop_footer_branch
    %15 = sbr.rel target = $region3
  $region8: #{bottleneck_forward.1} parent=0 // loop_exit
    _

</llo_original>
